<compile_context>
chip_gen: v5e
topology: v5e:2x2
jax: 0.10.0
libtpu: 0.0.40
codegen_flags: <defaults>
</compile_context>

<pallas_src>
import functools
import math

import jax
import jax.numpy as jnp
from jax.experimental import pallas as pl
from jax.experimental.pallas import tpu as pltpu

_TS = 512          # spatial tile (lane) width: multiple of 128 -> lane-dense stores
_EPS = 1e-5

_CPARAMS = pltpu.CompilerParams(
    dimension_semantics=("parallel", "parallel"),   # (batch, spatial tile)
    vmem_limit_bytes=32 * 1024 * 1024,
)


def _round_up(x, m):
    return ((x + m - 1) // m) * m


# ------------------------------ Pallas kernels ------------------------------

def _pe_matmul_stats_kernel(w_ref, p_ref, y_ref, psum_ref, psq_ref):
    """Patch-embed conv as matmul: y(E, TS) = W(E, CKp) @ patches(CKp, TS).

    Emits per-tile sum / sum-of-squares so BN_pe (and, analytically, BN1) stats need no
    full-tensor reduction.  Conv bias omitted: a per-channel constant is cancelled
    exactly by the training-mode BN mean subtraction.  Padded spatial columns are zero
    and contribute nothing to the partials.
    """
    acc = jnp.dot(w_ref[...], p_ref[0], preferred_element_type=jnp.float32)
    y_ref[0] = acc
    psum_ref[0, 0] = jnp.sum(acc, axis=1, keepdims=True)
    psq_ref[0, 0] = jnp.sum(acc * acc, axis=1, keepdims=True)


def _matmul_affine_kernel(w_ref, b_ref, x_ref, o_ref, *, post_gelu):
    """1x1x1 conv over channels with (optionally) fused GELU on the output side.
    Preceding BatchNorm affines are folded into (w, b) host-side; bf16 MXU operands,
    f32 accumulation."""
    x = x_ref[0].astype(jnp.bfloat16)
    acc = jnp.dot(w_ref[...], x, preferred_element_type=jnp.float32) + b_ref[...]
    if post_gelu:
        acc = jax.nn.gelu(acc, approximate=True)
    o_ref[0] = acc.astype(o_ref.dtype)


def _attn_tail_kernel(wl_ref, bl_ref, w2_ref, a2_ref, b2_ref,
                      u_ref, adw_ref, y_ref,
                      x2_ref, psum_ref, psq_ref):
    """Fused attention tail:
        a   = W_lka1 @ a_dw + b_lka1                (LKA 1x1 conv)
        g   = u * a                                 (gating)
        x2  = A2*y + B2 + (ls1*W_proj2) @ g         (proj_2 + attn residual + x +
                                                     layer_scale_1, with BN_pe/BN1
                                                     affines folded into A2/B2)
    Also emits per-tile sum / sum-sq of x2 so BN2 stats need no extra pass."""
    a = jnp.dot(wl_ref[...], adw_ref[0].astype(jnp.bfloat16),
                preferred_element_type=jnp.float32) + bl_ref[...]
    g = (u_ref[0].astype(jnp.float32) * a).astype(jnp.bfloat16)
    acc = jnp.dot(w2_ref[...], g, preferred_element_type=jnp.float32)
    x2 = a2_ref[...] * y_ref[0] + b2_ref[...] + acc
    x2_ref[0] = x2
    psum_ref[0, 0] = jnp.sum(x2, axis=1, keepdims=True)
    psq_ref[0, 0] = jnp.sum(x2 * x2, axis=1, keepdims=True)


def _mlp_tail_kernel(w_ref, b_ref, g_ref, be_ref, m_ref, x2_ref, o_ref):
    """Fused MLP tail + block epilogue:
        x3  = x2 + (ls2*W_fc2) @ GELU(m) + ls2*b_fc2
        out = LayerNorm_channels(x3) * gamma + beta
    The channel LayerNorm reduces over the sublane axis of the same (C, TS) tile."""
    h = jax.nn.gelu(m_ref[0], approximate=True).astype(jnp.bfloat16)
    acc = jnp.dot(w_ref[...], h, preferred_element_type=jnp.float32) + b_ref[...]
    x3 = x2_ref[0] + acc
    mean = jnp.mean(x3, axis=0, keepdims=True)
    var = jnp.mean((x3 - mean) * (x3 - mean), axis=0, keepdims=True)
    o_ref[0] = (x3 - mean) * jax.lax.rsqrt(var + _EPS) * g_ref[...] + be_ref[...]


# ------------------------------ spec / layout helpers ------------------------------

def _tile_spec(c):
    return pl.BlockSpec((1, c, _TS), lambda n, j: (n, 0, j))


def _vec_spec(c):
    return pl.BlockSpec((c, 1), lambda n, j: (0, 0))


def _mat_spec(co, ci):
    return pl.BlockSpec((co, ci), lambda n, j: (0, 0))


def _stat_spec(c):
    return pl.BlockSpec((1, 1, c, 1), lambda n, j: (n, j, 0, 0))


def _flatten_pad(x5):
    """(N, C, D1, D2, D3) -> channel-major flat (N, C, Sp), zero-padded to tile width."""
    N, C, D1, D2, D3 = x5.shape
    S = D1 * D2 * D3
    Sp = _round_up(S, _TS)
    xf = x5.reshape(N, C, S)
    if Sp != S:
        xf = jnp.pad(xf, ((0, 0), (0, 0), (0, Sp - S)))
    return xf


def _unflatten(xf, S, sp):
    N, C = xf.shape[:2]
    return xf[:, :, :S].reshape(N, C, *sp)


# ------------------------------ Pallas op wrappers ------------------------------

def _pallas_matmul(w, b, xf, *, out_dtype, post_gelu=False):
    """o(Cout, TS) = W @ x + b (+ GELU) on the flat (N, C, Sp) layout."""
    N, Cin, Sp = xf.shape
    Cout = w.shape[0]
    kern = functools.partial(_matmul_affine_kernel, post_gelu=post_gelu)
    return pl.pallas_call(
        kern,
        out_shape=jax.ShapeDtypeStruct((N, Cout, Sp), out_dtype),
        grid_spec=pltpu.PrefetchScalarGridSpec(
            num_scalar_prefetch=0, grid=(N, Sp // _TS),
            in_specs=[_mat_spec(Cout, Cin), _vec_spec(Cout), _tile_spec(Cin)],
            out_specs=_tile_spec(Cout)),
        compiler_params=_CPARAMS,
    )(w.astype(jnp.bfloat16), b.reshape(Cout, 1).astype(jnp.float32), xf)


def _attn_tail(wl, bl, w2_eff, a2, b2, u_f, adw_f, y_f):
    N, E, Sp = y_f.shape
    n_sp = Sp // _TS
    return pl.pallas_call(
        _attn_tail_kernel,
        out_shape=(jax.ShapeDtypeStruct((N, E, Sp), jnp.float32),
                   jax.ShapeDtypeStruct((N, n_sp, E, 1), jnp.float32),
                   jax.ShapeDtypeStruct((N, n_sp, E, 1), jnp.float32)),
        grid_spec=pltpu.PrefetchScalarGridSpec(
            num_scalar_prefetch=0, grid=(N, n_sp),
            in_specs=[_mat_spec(E, E), _vec_spec(E), _mat_spec(E, E),
                      _vec_spec(E), _vec_spec(E),
                      _tile_spec(E), _tile_spec(E), _tile_spec(E)],
            out_specs=(_tile_spec(E), _stat_spec(E), _stat_spec(E))),
        compiler_params=_CPARAMS,
    )(wl.astype(jnp.bfloat16), bl.reshape(E, 1).astype(jnp.float32),
      w2_eff.astype(jnp.bfloat16),
      a2.reshape(E, 1).astype(jnp.float32), b2.reshape(E, 1).astype(jnp.float32),
      u_f, adw_f, y_f)


def _mlp_tail(w_eff, b_eff, ln_g, ln_b, m_f, x2_f):
    N, Hd, Sp = m_f.shape
    E = x2_f.shape[1]
    return pl.pallas_call(
        _mlp_tail_kernel,
        out_shape=jax.ShapeDtypeStruct((N, E, Sp), jnp.float32),
        grid_spec=pltpu.PrefetchScalarGridSpec(
            num_scalar_prefetch=0, grid=(N, Sp // _TS),
            in_specs=[_mat_spec(E, Hd), _vec_spec(E), _vec_spec(E), _vec_spec(E),
                      _tile_spec(Hd), _tile_spec(E)],
            out_specs=_tile_spec(E)),
        compiler_params=_CPARAMS,
    )(w_eff.astype(jnp.bfloat16), b_eff.reshape(E, 1).astype(jnp.float32),
      ln_g.reshape(E, 1).astype(jnp.float32), ln_b.reshape(E, 1).astype(jnp.float32),
      m_f, x2_f)


# ------------------------------ patch embed ------------------------------

def _im2col_3d_cm(x, k, stride, pad):
    """(N, C, D1, D2, D3) -> (N, C*k^3, O1*O2*O3); contraction order (C, kd, kh, kw)
    matches torch Conv3d weight.reshape(E, C*k^3).
    TODO(synk): patches are still materialized in HBM (27x the input); pulling the
    27-tap gather into the kernel would need strided slicing of a 5-D VMEM tile, which
    does not lower cleanly today — left in XLA (input is ~130 KiB here)."""
    N, C, D1, D2, D3 = x.shape
    xp = jnp.pad(x, ((0, 0), (0, 0), (pad, pad), (pad, pad), (pad, pad)))
    O1 = (D1 + 2 * pad - k) // stride + 1
    O2 = (D2 + 2 * pad - k) // stride + 1
    O3 = (D3 + 2 * pad - k) // stride + 1
    cols = []
    for kd in range(k):
        for kh in range(k):
            for kw in range(k):
                sl = xp[:, :,
                        kd:kd + stride * (O1 - 1) + 1:stride,
                        kh:kh + stride * (O2 - 1) + 1:stride,
                        kw:kw + stride * (O3 - 1) + 1:stride]
                cols.append(sl.reshape(N, C, 1, O1 * O2 * O3))
    cols = jnp.concatenate(cols, axis=2)                 # (N, C, k^3, Osp)
    return cols.reshape(N, C * k ** 3, O1 * O2 * O3), (O1, O2, O3)


def _patch_embed_conv(x, conv_w, *, patch_size, stride):
    """Conv3d(k=patch_size, stride, pad=k//2) as a Pallas matmul, bias dropped (it is
    cancelled by the training-mode BN).  Returns the raw conv output (flat, padded) and
    its batch statistics (from the in-kernel partial sums)."""
    k = patch_size
    pad = k // 2
    N = x.shape[0]
    E = conv_w.shape[0]

    patches, sp = _im2col_3d_cm(x, k, stride, pad)
    O1, O2, O3 = sp
    Osp = O1 * O2 * O3
    CK = patches.shape[1]
    CKp = _round_up(CK, 128)
    Sp = _round_up(Osp, _TS)
    n_sp = Sp // _TS

    patches = jnp.pad(patches, ((0, 0), (0, CKp - CK), (0, Sp - Osp))).astype(jnp.bfloat16)
    w2 = jnp.pad(conv_w.reshape(E, CK), ((0, 0), (0, CKp - CK))).astype(jnp.bfloat16)

    # NOTE: psum/psq stay per-(batch, tile) — at n_sp == 1 a VMEM-scratch accumulation
    # across the spatial axis buys nothing and would force that axis "arbitrary".
    y, psum, psq = pl.pallas_call(
        _pe_matmul_stats_kernel,
        out_shape=(jax.ShapeDtypeStruct((N, E, Sp), jnp.float32),
                   jax.ShapeDtypeStruct((N, n_sp, E, 1), jnp.float32),
                   jax.ShapeDtypeStruct((N, n_sp, E, 1), jnp.float32)),
        grid_spec=pltpu.PrefetchScalarGridSpec(
            num_scalar_prefetch=0, grid=(N, n_sp),
            in_specs=[pl.BlockSpec((E, CKp), lambda n, j: (0, 0)),
                      pl.BlockSpec((1, CKp, _TS), lambda n, j: (n, 0, j))],
            out_specs=(pl.BlockSpec((1, E, _TS), lambda n, j: (n, 0, j)),
                       _stat_spec(E), _stat_spec(E))),
        compiler_params=_CPARAMS,
    )(w2, patches)

    cnt = float(N * Osp)
    s = jnp.sum(psum, axis=(0, 1))[:, 0]
    sq = jnp.sum(psq, axis=(0, 1))[:, 0]
    mean_y = s / cnt
    # NOTE: E[y^2]-E[y]^2 can cancel if channel means are large vs std; conv outputs of
    # roughly zero-mean inputs keep this benign here (clamped at 0 for safety).
    var_y = jnp.maximum(sq / cnt - mean_y * mean_y, 0.0)
    return y, mean_y, var_y, Osp, sp


# ------------------------------ depthwise convs (XLA) ------------------------------

def _depthwise_conv3d(x, w, b, *, padding, dilation=1):
    """Depthwise 3-D conv (groups == channels), f32 accumulation.
    TODO(synk): per-channel spatial stencils have no clean MXU mapping; a Pallas VPU
    shift-MAC kernel fused with the neighboring 1x1 convs is future work."""
    C = x.shape[1]
    y = jax.lax.conv_general_dilated(
        x, w.astype(x.dtype), window_strides=(1, 1, 1),
        padding=[(padding, padding)] * 3,
        rhs_dilation=(dilation, dilation, dilation),
        dimension_numbers=("NCDHW", "OIDHW", "NCDHW"), feature_group_count=C,
        preferred_element_type=jnp.float32)
    return y + b[None, :, None, None, None]


def _lka_spatial_conv(x, w, b):
    """LKA.conv_spatial: depthwise 7^3, dilation 3, padding 9.  When every spatial
    extent is <= 9 the outermost tap ring (offsets +-9) only ever reads zero padding,
    so the kernel can be sliced to its central 5^3 taps with padding 6 — identical
    output, ~2.7x fewer taps."""
    if max(x.shape[2:]) <= 9:
        return _depthwise_conv3d(x, w[:, :, 1:6, 1:6, 1:6], b, padding=6, dilation=3)
    return _depthwise_conv3d(x, w, b, padding=9, dilation=3)


# ------------------------------ MDBlock forward ------------------------------

def mdblock_forward(x, p, x_skip=None, *, patch_size=3, stride=2):
    N = x.shape[0]

    # --- OverlapPatchEmbed conv (+ batch stats from the same pass) ---
    y, mean_y, var_y, Osp, sp = _patch_embed_conv(x, p["pe_w"],
                                                  patch_size=patch_size, stride=stride)
    Sp = y.shape[2]

    # --- BN_pe and BN1 affines; BN1 stats derived analytically (no extra pass) ---
    s_pe = p["pe_gamma"] * jax.lax.rsqrt(var_y + _EPS)
    t_pe = p["pe_beta"] - mean_y * s_pe                       # x1 = s_pe*y + t_pe
    mean1 = s_pe * mean_y + t_pe
    var1 = s_pe * s_pe * var_y
    s1 = p["bn1_gamma"] * jax.lax.rsqrt(var1 + _EPS)
    t1 = p["bn1_beta"] - mean1 * s1
    A1 = s1 * s_pe                                            # h = A1*y + B1 (= BN1(x1))
    B1 = s1 * t_pe + t1

    # --- proj_1 with BN_pe+BN1 folded into its weights, GELU fused, bf16 out ---
    w1f = p["proj1_w"] * A1[None, :]
    b1f = p["proj1_w"] @ B1 + p["proj1_b"]
    h1 = _pallas_matmul(w1f, b1f, y, out_dtype=jnp.bfloat16, post_gelu=True)

    # --- LKA depthwise stack (XLA) ---
    h1v = _unflatten(h1, Osp, sp)
    a = _depthwise_conv3d(h1v, p["lka0_w"], p["lka0_b"], padding=2)
    a = _lka_spatial_conv(a, p["lkas_w"], p["lkas_b"])
    a_f = _flatten_pad(a)

    # --- fused attention tail: lka.conv1 + gating + proj_2 + residual(ls1) ---
    ls1 = p["ls1"]
    w2e = ls1[:, None] * p["proj2_w"]
    A2 = s_pe + ls1 * A1
    B2 = t_pe + ls1 * B1 + ls1 * p["proj2_b"]
    x2, p2sum, p2sq = _attn_tail(p["lka1_w"], p["lka1_b"], w2e, A2, B2, h1, a_f, y)

    # --- BN2 stats from the tile partials (padded columns hold a known constant) ---
    cnt = float(N * Osp)
    pad_cols = float(N * (Sp - Osp))
    c_pad = B2 + w2e @ (jax.nn.gelu(b1f, approximate=True) * p["lka1_b"])
    s2sum = jnp.sum(p2sum, axis=(0, 1))[:, 0] - pad_cols * c_pad
    s2sq = jnp.sum(p2sq, axis=(0, 1))[:, 0] - pad_cols * c_pad * c_pad
    mean2 = s2sum / cnt
    var2 = jnp.maximum(s2sq / cnt - mean2 * mean2, 0.0)
    s2 = p["bn2_gamma"] * jax.lax.rsqrt(var2 + _EPS)
    t2 = p["bn2_beta"] - mean2 * s2

    # --- fc1 with BN2 folded into its weights, bf16 out ---
    wf1 = p["fc1_w"] * s2[None, :]
    bf1 = p["fc1_w"] @ t2 + p["fc1_b"]
    m1 = _pallas_matmul(wf1, bf1, x2, out_dtype=jnp.bfloat16)

    # --- DWConv 3^3 (XLA) ---
    m1v = _unflatten(m1, Osp, sp)
    m2 = _depthwise_conv3d(m1v, p["dw_w"], p["dw_b"], padding=1)
    m2f = _flatten_pad(m2)

    # --- fused MLP tail: GELU + fc2 + residual(ls2) + final channel LayerNorm ---
    ls2 = p["ls2"]
    wf2 = ls2[:, None] * p["fc2_w"]
    bf2 = ls2 * p["fc2_b"]
    out_f = _mlp_tail(wf2, bf2, p["ln_gamma"], p["ln_beta"], m2f, x2)

    out = _unflatten(out_f, Osp, sp)
    if x_skip is not None:
        out = jnp.concatenate([out, x_skip], axis=1)
    return out


# ------------------------------ plain-JAX reference ------------------------------

def _dw_ref(x, w, b, padding, dilation=1):
    C = x.shape[1]
    y = jax.lax.conv_general_dilated(
        x, w, window_strides=(1, 1, 1), padding=[(padding, padding)] * 3,
        rhs_dilation=(dilation, dilation, dilation),
        dimension_numbers=("NCDHW", "OIDHW", "NCDHW"), feature_group_count=C)
    return y + b[None, :, None, None, None]


def _bn_ref(x, g, b):
    mean = x.mean(axis=(0, 2, 3, 4), keepdims=True)
    var = ((x - mean) ** 2).mean(axis=(0, 2, 3, 4), keepdims=True)
    return ((x - mean) * jax.lax.rsqrt(var + _EPS)
            * g[None, :, None, None, None] + b[None, :, None, None, None])


def _conv1x1_ref(x, w, b):
    return jnp.einsum("ncdhw,oc->nodhw", x, w) + b[None, :, None, None, None]


def _reference_mdblock(x, p, *, patch_size=3, stride=2):
    gelu = lambda t: jax.nn.gelu(t, approximate=True)
    pad = patch_size // 2
    y = jax.lax.conv_general_dilated(
        x, p["pe_w"], window_strides=(stride,) * 3, padding=[(pad, pad)] * 3,
        dimension_numbers=("NCDHW", "OIDHW", "NCDHW"))
    y = y + p["pe_b"][None, :, None, None, None]
    y = _bn_ref(y, p["pe_gamma"], p["pe_beta"])
    xx = y
    # Block: attention branch
    h = _bn_ref(xx, p["bn1_gamma"], p["bn1_beta"])
    h_res = h
    h = gelu(_conv1x1_ref(h, p["proj1_w"], p["proj1_b"]))
    u = h
    a = _dw_ref(h, p["lka0_w"], p["lka0_b"], padding=2)
    a = _dw_ref(a, p["lkas_w"], p["lkas_b"], padding=9, dilation=3)
    a = _conv1x1_ref(a, p["lka1_w"], p["lka1_b"])
    h = _conv1x1_ref(u * a, p["proj2_w"], p["proj2_b"]) + h_res
    xx = xx + p["ls1"][None, :, None, None, None] * h
    # Block: MLP branch
    h = _bn_ref(xx, p["bn2_gamma"], p["bn2_beta"])
    h = _conv1x1_ref(h, p["fc1_w"], p["fc1_b"])
    h = _dw_ref(h, p["dw_w"], p["dw_b"], padding=1)
    h = _conv1x1_ref(gelu(h), p["fc2_w"], p["fc2_b"])
    xx = xx + p["ls2"][None, :, None, None, None] * h
    # final LayerNorm over channels
    mean = xx.mean(axis=1, keepdims=True)
    var = ((xx - mean) ** 2).mean(axis=1, keepdims=True)
    return ((xx - mean) * jax.lax.rsqrt(var + _EPS)
            * p["ln_gamma"][None, :, None, None, None]
            + p["ln_beta"][None, :, None, None, None])


# ------------------------------ parameters ------------------------------

def init_params(key, *, in_chans=4, embed_dim=32, mlp_ratio=4, patch_size=3):
    E, Hd = embed_dim, embed_dim * mlp_ratio
    ks = iter(jax.random.split(key, 32))

    def conv_w(cout, cin, ksz, groups=1):
        fan_out = (ksz * ksz * cout) // groups          # matches module _init_weights
        std = math.sqrt(2.0 / fan_out)
        return std * jax.random.normal(next(ks), (cout, cin // groups, ksz, ksz, ksz),
                                       jnp.float32)

    def vec(n, scale=0.05):
        return scale * jax.random.normal(next(ks), (n,), jnp.float32)

    return {
        "pe_w": conv_w(E, in_chans, patch_size),
        "pe_b": vec(E, 0.1),                 # used only by the reference — cancelled by
        "pe_gamma": 1.0 + vec(E, 0.1),       # training-mode BN, so the kernel drops it
        "pe_beta": vec(E, 0.1),
        "bn1_gamma": 1.0 + vec(E, 0.1), "bn1_beta": vec(E, 0.1),
        "bn2_gamma": 1.0 + vec(E, 0.1), "bn2_beta": vec(E, 0.1),
        "proj1_w": conv_w(E, E, 1).reshape(E, E), "proj1_b": vec(E),
        "lka0_w": conv_w(E, E, 5, groups=E), "lka0_b": vec(E),
        "lkas_w": conv_w(E, E, 7, groups=E), "lkas_b": vec(E),
        "lka1_w": conv_w(E, E, 1).reshape(E, E), "lka1_b": vec(E),
        "proj2_w": conv_w(E, E, 1).reshape(E, E), "proj2_b": vec(E),
        "fc1_w": conv_w(Hd, E, 1).reshape(Hd, E), "fc1_b": vec(Hd),
        "dw_w": conv_w(Hd, Hd, 3, groups=Hd), "dw_b": vec(Hd),
        "fc2_w": conv_w(E, Hd, 1).reshape(E, Hd), "fc2_b": vec(E),
        "ls1": 0.01 * jnp.ones((E,), jnp.float32),
        "ls2": 0.01 * jnp.ones((E,), jnp.float32),
        "ln_gamma": jnp.ones((E,), jnp.float32),
        "ln_beta": jnp.zeros((E,), jnp.float32),
    }


# ------------------------------ main ------------------------------

if __name__ == "__main__":
    # MDBlock(img_size=16, in_chans=4, embed_chans=32, patch_size=[3,3,3], stride=2,
    #         num_units=1, mlp_ratio=4), input (N=2, C=4, 16, 16, 16).
    N, C_in, S0, E = 2, 4, 16, 32

    key = jax.random.PRNGKey(0)
    kx, kp = jax.random.split(key)
    x = jax.random.normal(kx, (N, C_in, S0, S0, S0), dtype=jnp.float32)
    params = init_params(kp, in_chans=C_in, embed_dim=E)

    fwd = jax.jit(mdblock_forward)
    out = jax.block_until_ready(fwd(x, params))
    assert out.shape == (N, E, 8, 8, 8), out.shape

    ref = _reference_mdblock(x, params)
    err = float(jnp.max(jnp.abs(out - ref)))
    assert jnp.allclose(out, ref, atol=3e-2, rtol=3e-2), f"mismatch vs reference: {err}"

    print("KERNEL_OK")
</pallas_src>

<mosaic_0001>
module attributes {stable_mosaic.version = 11 : i64} {
  func.func @_pe_matmul_stats_kernel(%arg0: i32, %arg1: i32, %arg2: memref<32x128xbf16, #tpu.memory_space<vmem>>, %arg3: memref<1x128x512xbf16, #tpu.memory_space<vmem>>, %arg4: memref<1x32x512xf32, #tpu.memory_space<vmem>>, %arg5: memref<1x1x32x1xf32, #tpu.memory_space<vmem>>, %arg6: memref<1x1x32x1xf32, #tpu.memory_space<vmem>>) attributes {dimension_semantics = [#tpu.dimension_semantics<parallel>, #tpu.dimension_semantics<parallel>], iteration_bounds = array<i64: 2, 1>, scalar_prefetch = 0 : i64, scratch_operands = 0 : i64, tpu.core_type = #tpu.core_type<tc>, window_params = [{pipeline_mode = #tpu.pipeline_mode<synchronous>, transform_indices = @transform_0, window_bounds = array<i64: 32, 128>}, {transform_indices = @transform_1, window_bounds = array<i64: 1, 128, 512>}, {transform_indices = @transform_2, window_bounds = array<i64: 1, 32, 512>}, {transform_indices = @transform_3, window_bounds = array<i64: 1, 1, 32, 1>}, {transform_indices = @transform_4, window_bounds = array<i64: 1, 1, 32, 1>}]} {
    %c0 = arith.constant 0 : index
    %c0_0 = arith.constant 0 : index
    %0 = vector.load %arg2[%c0, %c0_0] : memref<32x128xbf16, #tpu.memory_space<vmem>>, vector<32x128xbf16>
    %c0_1 = arith.constant 0 : index
    %c0_2 = arith.constant 0 : index
    %c0_3 = arith.constant 0 : index
    %1 = vector.load %arg3[%c0_1, %c0_2, %c0_3] : memref<1x128x512xbf16, #tpu.memory_space<vmem>>, vector<1x128x512xbf16>
    %2 = vector.shape_cast %1 : vector<1x128x512xbf16> to vector<128x512xbf16>
    %cst = arith.constant dense<0.000000e+00> : vector<32x512xf32>
    %3 = tpu.matmul %0, %2, %cst {dimension_numbers = #tpu.dot_dimension_numbers<[1], [0], [0], [1], [0, 0, 1, 1], [], []>} : vector<32x128xbf16>, vector<128x512xbf16>, vector<32x512xf32> -> vector<32x512xf32>
    %c0_4 = arith.constant 0 : index
    %c0_5 = arith.constant 0 : index
    %c0_6 = arith.constant 0 : index
    %4 = vector.load %arg4[%c0_4, %c0_5, %c0_6] : memref<1x32x512xf32, #tpu.memory_space<vmem>>, vector<1x32x512xf32>
    %5 = vector.shape_cast %4 : vector<1x32x512xf32> to vector<32x512xf32>
    %6 = vector.shape_cast %3 : vector<32x512xf32> to vector<1x32x512xf32>
    tpu.vector_store %arg4[%c0_4, %c0_5, %c0_6], %6 {strides = array<i32>} : memref<1x32x512xf32, #tpu.memory_space<vmem>>, vector<1x32x512xf32>,
    %cst_7 = arith.constant dense<0.000000e+00> : vector<32xf32>
    %7 = vector.multi_reduction <add>, %3, %cst_7 [1] : vector<32x512xf32> to vector<32xf32>
    %8 = vector.shape_cast %7 : vector<32xf32> to vector<32x1xf32>
    %c0_8 = arith.constant 0 : index
    %c0_9 = arith.constant 0 : index
    %c0_10 = arith.constant 0 : index
    %c0_11 = arith.constant 0 : index
    %9 = vector.load %arg5[%c0_8, %c0_9, %c0_10, %c0_11] : memref<1x1x32x1xf32, #tpu.memory_space<vmem>>, vector<1x1x32x1xf32>
    %10 = vector.shape_cast %9 : vector<1x1x32x1xf32> to vector<32x1xf32>
    %11 = vector.shape_cast %8 : vector<32x1xf32> to vector<1x1x32x1xf32>
    tpu.vector_store %arg5[%c0_8, %c0_9, %c0_10, %c0_11], %11 {strides = array<i32>} : memref<1x1x32x1xf32, #tpu.memory_space<vmem>>, vector<1x1x32x1xf32>,
    %12 = arith.mulf %3, %3 : vector<32x512xf32>
    %cst_12 = arith.constant dense<0.000000e+00> : vector<32xf32>
    %13 = vector.multi_reduction <add>, %12, %cst_12 [1] : vector<32x512xf32> to vector<32xf32>
    %14 = vector.shape_cast %13 : vector<32xf32> to vector<32x1xf32>
    %c0_13 = arith.constant 0 : index
    %c0_14 = arith.constant 0 : index
    %c0_15 = arith.constant 0 : index
    %c0_16 = arith.constant 0 : index
    %15 = vector.load %arg6[%c0_13, %c0_14, %c0_15, %c0_16] : memref<1x1x32x1xf32, #tpu.memory_space<vmem>>, vector<1x1x32x1xf32>
    %16 = vector.shape_cast %15 : vector<1x1x32x1xf32> to vector<32x1xf32>
    %17 = vector.shape_cast %14 : vector<32x1xf32> to vector<1x1x32x1xf32>
    tpu.vector_store %arg6[%c0_13, %c0_14, %c0_15, %c0_16], %17 {strides = array<i32>} : memref<1x1x32x1xf32, #tpu.memory_space<vmem>>, vector<1x1x32x1xf32>,
    return
  }
  func.func @transform_0(%arg0: i32, %arg1: i32) -> (i32, i32) {
    %c0_i32 = arith.constant 0 : i32
    %c0_i32_0 = arith.constant 0 : i32
    %c0_i32_1 = arith.constant 0 : i32
    return %c0_i32, %c0_i32_0 : i32, i32
  }
  func.func @transform_1(%arg0: i32, %arg1: i32) -> (i32, i32, i32) {
    %c0_i32 = arith.constant 0 : i32
    %c0_i32_0 = arith.constant 0 : i32
    return %arg0, %c0_i32, %arg1 : i32, i32, i32
  }
  func.func @transform_2(%arg0: i32, %arg1: i32) -> (i32, i32, i32) {
    %c0_i32 = arith.constant 0 : i32
    %c0_i32_0 = arith.constant 0 : i32
    return %arg0, %c0_i32, %arg1 : i32, i32, i32
  }
  func.func @transform_3(%arg0: i32, %arg1: i32) -> (i32, i32, i32, i32) {
    %c0_i32 = arith.constant 0 : i32
    %c0_i32_0 = arith.constant 0 : i32
    %c0_i32_1 = arith.constant 0 : i32
    return %arg0, %arg1, %c0_i32, %c0_i32_0 : i32, i32, i32, i32
  }
  func.func @transform_4(%arg0: i32, %arg1: i32) -> (i32, i32, i32, i32) {
    %c0_i32 = arith.constant 0 : i32
    %c0_i32_0 = arith.constant 0 : i32
    %c0_i32_1 = arith.constant 0 : i32
    return %arg0, %arg1, %c0_i32, %c0_i32_0 : i32, i32, i32, i32
  }
}

module attributes {stable_mosaic.version = 11 : i64} {
  func.func @_matmul_affine_kernel(%arg0: i32, %arg1: i32, %arg2: memref<32x32xbf16, #tpu.memory_space<vmem>>, %arg3: memref<32x1xf32, #tpu.memory_space<vmem>>, %arg4: memref<1x32x512xf32, #tpu.memory_space<vmem>>, %arg5: memref<1x32x512xbf16, #tpu.memory_space<vmem>>) attributes {dimension_semantics = [#tpu.dimension_semantics<parallel>, #tpu.dimension_semantics<parallel>], iteration_bounds = array<i64: 2, 1>, scalar_prefetch = 0 : i64, scratch_operands = 0 : i64, tpu.core_type = #tpu.core_type<tc>, window_params = [{pipeline_mode = #tpu.pipeline_mode<synchronous>, transform_indices = @transform_0, window_bounds = array<i64: 32, 32>}, {pipeline_mode = #tpu.pipeline_mode<synchronous>, transform_indices = @transform_1, window_bounds = array<i64: 32, 1>}, {transform_indices = @transform_2, window_bounds = array<i64: 1, 32, 512>}, {transform_indices = @transform_3, window_bounds = array<i64: 1, 32, 512>}]} {
    %c0 = arith.constant 0 : index
    %c0_0 = arith.constant 0 : index
    %c0_1 = arith.constant 0 : index
    %0 = vector.load %arg4[%c0, %c0_0, %c0_1] : memref<1x32x512xf32, #tpu.memory_space<vmem>>, vector<1x32x512xf32>
    %1 = vector.shape_cast %0 : vector<1x32x512xf32> to vector<32x512xf32>
    %2 = arith.truncf %1 : vector<32x512xf32> to vector<32x512xbf16>
    %c0_2 = arith.constant 0 : index
    %c0_3 = arith.constant 0 : index
    %3 = vector.load %arg2[%c0_2, %c0_3] : memref<32x32xbf16, #tpu.memory_space<vmem>>, vector<32x32xbf16>
    %cst = arith.constant dense<0.000000e+00> : vector<32x512xf32>
    %4 = tpu.matmul %3, %2, %cst {dimension_numbers = #tpu.dot_dimension_numbers<[1], [0], [0], [1], [0, 0, 1, 1], [], []>} : vector<32x32xbf16>, vector<32x512xbf16>, vector<32x512xf32> -> vector<32x512xf32>
    %c0_4 = arith.constant 0 : index
    %c0_5 = arith.constant 0 : index
    %5 = vector.load %arg3[%c0_4, %c0_5] : memref<32x1xf32, #tpu.memory_space<vmem>>, vector<32x1xf32>
    %6 = vector.broadcast %5 : vector<32x1xf32> to vector<32x512xf32>
    %7 = arith.addf %4, %6 : vector<32x512xf32>
    %8 = arith.mulf %7, %7 : vector<32x512xf32>
    %9 = arith.mulf %7, %8 : vector<32x512xf32>
    %cst_6 = arith.constant 4.471500e-02 : f32
    %10 = vector.broadcast %cst_6 : f32 to vector<32x512xf32>
    %11 = arith.mulf %10, %9 : vector<32x512xf32>
    %12 = arith.addf %7, %11 : vector<32x512xf32>
    %cst_7 = arith.constant 0.797884583 : f32
    %13 = vector.broadcast %cst_7 : f32 to vector<32x512xf32>
    %14 = arith.mulf %13, %12 : vector<32x512xf32>
    %15 = math.tanh %14 : vector<32x512xf32>
    %cst_8 = arith.constant 1.000000e+00 : f32
    %16 = vector.broadcast %cst_8 : f32 to vector<32x512xf32>
    %17 = arith.addf %16, %15 : vector<32x512xf32>
    %cst_9 = arith.constant 5.000000e-01 : f32
    %18 = vector.broadcast %cst_9 : f32 to vector<32x512xf32>
    %19 = arith.mulf %18, %17 : vector<32x512xf32>
    %20 = arith.mulf %7, %19 : vector<32x512xf32>
    %21 = arith.truncf %20 : vector<32x512xf32> to vector<32x512xbf16>
    %c0_10 = arith.constant 0 : index
    %c0_11 = arith.constant 0 : index
    %c0_12 = arith.constant 0 : index
    %22 = vector.load %arg5[%c0_10, %c0_11, %c0_12] : memref<1x32x512xbf16, #tpu.memory_space<vmem>>, vector<1x32x512xbf16>
    %23 = vector.shape_cast %22 : vector<1x32x512xbf16> to vector<32x512xbf16>
    %24 = vector.shape_cast %21 : vector<32x512xbf16> to vector<1x32x512xbf16>
    tpu.vector_store %arg5[%c0_10, %c0_11, %c0_12], %24 {strides = array<i32>} : memref<1x32x512xbf16, #tpu.memory_space<vmem>>, vector<1x32x512xbf16>,
    return
  }
  func.func @transform_0(%arg0: i32, %arg1: i32) -> (i32, i32) {
    %c0_i32 = arith.constant 0 : i32
    %c0_i32_0 = arith.constant 0 : i32
    %c0_i32_1 = arith.constant 0 : i32
    return %c0_i32, %c0_i32_0 : i32, i32
  }
  func.func @transform_1(%arg0: i32, %arg1: i32) -> (i32, i32) {
    %c0_i32 = arith.constant 0 : i32
    %c0_i32_0 = arith.constant 0 : i32
    %c0_i32_1 = arith.constant 0 : i32
    return %c0_i32, %c0_i32_0 : i32, i32
  }
  func.func @transform_2(%arg0: i32, %arg1: i32) -> (i32, i32, i32) {
    %c0_i32 = arith.constant 0 : i32
    %c0_i32_0 = arith.constant 0 : i32
    return %arg0, %c0_i32, %arg1 : i32, i32, i32
  }
  func.func @transform_3(%arg0: i32, %arg1: i32) -> (i32, i32, i32) {
    %c0_i32 = arith.constant 0 : i32
    %c0_i32_0 = arith.constant 0 : i32
    return %arg0, %c0_i32, %arg1 : i32, i32, i32
  }
}

module attributes {stable_mosaic.version = 11 : i64} {
  func.func @_attn_tail_kernel(%arg0: i32, %arg1: i32, %arg2: memref<32x32xbf16, #tpu.memory_space<vmem>>, %arg3: memref<32x1xf32, #tpu.memory_space<vmem>>, %arg4: memref<32x32xbf16, #tpu.memory_space<vmem>>, %arg5: memref<32x1xf32, #tpu.memory_space<vmem>>, %arg6: memref<32x1xf32, #tpu.memory_space<vmem>>, %arg7: memref<1x32x512xbf16, #tpu.memory_space<vmem>>, %arg8: memref<1x32x512xf32, #tpu.memory_space<vmem>>, %arg9: memref<1x32x512xf32, #tpu.memory_space<vmem>>, %arg10: memref<1x32x512xf32, #tpu.memory_space<vmem>>, %arg11: memref<1x1x32x1xf32, #tpu.memory_space<vmem>>, %arg12: memref<1x1x32x1xf32, #tpu.memory_space<vmem>>) attributes {dimension_semantics = [#tpu.dimension_semantics<parallel>, #tpu.dimension_semantics<parallel>], iteration_bounds = array<i64: 2, 1>, scalar_prefetch = 0 : i64, scratch_operands = 0 : i64, tpu.core_type = #tpu.core_type<tc>, window_params = [{pipeline_mode = #tpu.pipeline_mode<synchronous>, transform_indices = @transform_0, window_bounds = array<i64: 32, 32>}, {pipeline_mode = #tpu.pipeline_mode<synchronous>, transform_indices = @transform_1, window_bounds = array<i64: 32, 1>}, {pipeline_mode = #tpu.pipeline_mode<synchronous>, transform_indices = @transform_2, window_bounds = array<i64: 32, 32>}, {pipeline_mode = #tpu.pipeline_mode<synchronous>, transform_indices = @transform_3, window_bounds = array<i64: 32, 1>}, {pipeline_mode = #tpu.pipeline_mode<synchronous>, transform_indices = @transform_4, window_bounds = array<i64: 32, 1>}, {transform_indices = @transform_5, window_bounds = array<i64: 1, 32, 512>}, {transform_indices = @transform_6, window_bounds = array<i64: 1, 32, 512>}, {transform_indices = @transform_7, window_bounds = array<i64: 1, 32, 512>}, {transform_indices = @transform_8, window_bounds = array<i64: 1, 32, 512>}, {transform_indices = @transform_9, window_bounds = array<i64: 1, 1, 32, 1>}, {transform_indices = @transform_10, window_bounds = array<i64: 1, 1, 32, 1>}]} {
    %c0 = arith.constant 0 : index
    %c0_0 = arith.constant 0 : index
    %0 = vector.load %arg2[%c0, %c0_0] : memref<32x32xbf16, #tpu.memory_space<vmem>>, vector<32x32xbf16>
    %c0_1 = arith.constant 0 : index
    %c0_2 = arith.constant 0 : index
    %c0_3 = arith.constant 0 : index
    %1 = vector.load %arg8[%c0_1, %c0_2, %c0_3] : memref<1x32x512xf32, #tpu.memory_space<vmem>>, vector<1x32x512xf32>
    %2 = vector.shape_cast %1 : vector<1x32x512xf32> to vector<32x512xf32>
    %3 = arith.truncf %2 : vector<32x512xf32> to vector<32x512xbf16>
    %cst = arith.constant dense<0.000000e+00> : vector<32x512xf32>
    %4 = tpu.matmul %0, %3, %cst {dimension_numbers = #tpu.dot_dimension_numbers<[1], [0], [0], [1], [0, 0, 1, 1], [], []>} : vector<32x32xbf16>, vector<32x512xbf16>, vector<32x512xf32> -> vector<32x512xf32>
    %c0_4 = arith.constant 0 : index
    %c0_5 = arith.constant 0 : index
    %5 = vector.load %arg3[%c0_4, %c0_5] : memref<32x1xf32, #tpu.memory_space<vmem>>, vector<32x1xf32>
    %6 = vector.broadcast %5 : vector<32x1xf32> to vector<32x512xf32>
    %7 = arith.addf %4, %6 : vector<32x512xf32>
    %c0_6 = arith.constant 0 : index
    %c0_7 = arith.constant 0 : index
    %c0_8 = arith.constant 0 : index
    %8 = vector.load %arg7[%c0_6, %c0_7, %c0_8] : memref<1x32x512xbf16, #tpu.memory_space<vmem>>, vector<1x32x512xbf16>
    %9 = vector.shape_cast %8 : vector<1x32x512xbf16> to vector<32x512xbf16>
    %10 = arith.extf %9 : vector<32x512xbf16> to vector<32x512xf32>
    %11 = arith.mulf %10, %7 : vector<32x512xf32>
    %12 = arith.truncf %11 : vector<32x512xf32> to vector<32x512xbf16>
    %c0_9 = arith.constant 0 : index
    %c0_10 = arith.constant 0 : index
    %13 = vector.load %arg4[%c0_9, %c0_10] : memref<32x32xbf16, #tpu.memory_space<vmem>>, vector<32x32xbf16>
    %cst_11 = arith.constant dense<0.000000e+00> : vector<32x512xf32>
    %14 = tpu.matmul %13, %12, %cst_11 {dimension_numbers = #tpu.dot_dimension_numbers<[1], [0], [0], [1], [0, 0, 1, 1], [], []>} : vector<32x32xbf16>, vector<32x512xbf16>, vector<32x512xf32> -> vector<32x512xf32>
    %c0_12 = arith.constant 0 : index
    %c0_13 = arith.constant 0 : index
    %15 = vector.load %arg5[%c0_12, %c0_13] : memref<32x1xf32, #tpu.memory_space<vmem>>, vector<32x1xf32>
    %c0_14 = arith.constant 0 : index
    %c0_15 = arith.constant 0 : index
    %c0_16 = arith.constant 0 : index
    %16 = vector.load %arg9[%c0_14, %c0_15, %c0_16] : memref<1x32x512xf32, #tpu.memory_space<vmem>>, vector<1x32x512xf32>
    %17 = vector.shape_cast %16 : vector<1x32x512xf32> to vector<32x512xf32>
    %18 = vector.broadcast %15 : vector<32x1xf32> to vector<32x512xf32>
    %19 = arith.mulf %18, %17 : vector<32x512xf32>
    %c0_17 = arith.constant 0 : index
    %c0_18 = arith.constant 0 : index
    %20 = vector.load %arg6[%c0_17, %c0_18] : memref<32x1xf32, #tpu.memory_space<vmem>>, vector<32x1xf32>
    %21 = vector.broadcast %20 : vector<32x1xf32> to vector<32x512xf32>
    %22 = arith.addf %19, %21 : vector<32x512xf32>
    %23 = arith.addf %22, %14 : vector<32x512xf32>
    %c0_19 = arith.constant 0 : index
    %c0_20 = arith.constant 0 : index
    %c0_21 = arith.constant 0 : index
    %24 = vector.load %arg10[%c0_19, %c0_20, %c0_21] : memref<1x32x512xf32, #tpu.memory_space<vmem>>, vector<1x32x512xf32>
    %25 = vector.shape_cast %24 : vector<1x32x512xf32> to vector<32x512xf32>
    %26 = vector.shape_cast %23 : vector<32x512xf32> to vector<1x32x512xf32>
    tpu.vector_store %arg10[%c0_19, %c0_20, %c0_21], %26 {strides = array<i32>} : memref<1x32x512xf32, #tpu.memory_space<vmem>>, vector<1x32x512xf32>,
    %cst_22 = arith.constant dense<0.000000e+00> : vector<32xf32>
    %27 = vector.multi_reduction <add>, %23, %cst_22 [1] : vector<32x512xf32> to vector<32xf32>
    %28 = vector.shape_cast %27 : vector<32xf32> to vector<32x1xf32>
    %c0_23 = arith.constant 0 : index
    %c0_24 = arith.constant 0 : index
    %c0_25 = arith.constant 0 : index
    %c0_26 = arith.constant 0 : index
    %29 = vector.load %arg11[%c0_23, %c0_24, %c0_25, %c0_26] : memref<1x1x32x1xf32, #tpu.memory_space<vmem>>, vector<1x1x32x1xf32>
    %30 = vector.shape_cast %29 : vector<1x1x32x1xf32> to vector<32x1xf32>
    %31 = vector.shape_cast %28 : vector<32x1xf32> to vector<1x1x32x1xf32>
    tpu.vector_store %arg11[%c0_23, %c0_24, %c0_25, %c0_26], %31 {strides = array<i32>} : memref<1x1x32x1xf32, #tpu.memory_space<vmem>>, vector<1x1x32x1xf32>,
    %32 = arith.mulf %23, %23 : vector<32x512xf32>
    %cst_27 = arith.constant dense<0.000000e+00> : vector<32xf32>
    %33 = vector.multi_reduction <add>, %32, %cst_27 [1] : vector<32x512xf32> to vector<32xf32>
    %34 = vector.shape_cast %33 : vector<32xf32> to vector<32x1xf32>
    %c0_28 = arith.constant 0 : index
    %c0_29 = arith.constant 0 : index
    %c0_30 = arith.constant 0 : index
    %c0_31 = arith.constant 0 : index
    %35 = vector.load %arg12[%c0_28, %c0_29, %c0_30, %c0_31] : memref<1x1x32x1xf32, #tpu.memory_space<vmem>>, vector<1x1x32x1xf32>
    %36 = vector.shape_cast %35 : vector<1x1x32x1xf32> to vector<32x1xf32>
    %37 = vector.shape_cast %34 : vector<32x1xf32> to vector<1x1x32x1xf32>
    tpu.vector_store %arg12[%c0_28, %c0_29, %c0_30, %c0_31], %37 {strides = array<i32>} : memref<1x1x32x1xf32, #tpu.memory_space<vmem>>, vector<1x1x32x1xf32>,
    return
  }
  func.func @transform_0(%arg0: i32, %arg1: i32) -> (i32, i32) {
    %c0_i32 = arith.constant 0 : i32
    %c0_i32_0 = arith.constant 0 : i32
    %c0_i32_1 = arith.constant 0 : i32
    return %c0_i32, %c0_i32_0 : i32, i32
  }
  func.func @transform_1(%arg0: i32, %arg1: i32) -> (i32, i32) {
    %c0_i32 = arith.constant 0 : i32
    %c0_i32_0 = arith.constant 0 : i32
    %c0_i32_1 = arith.constant 0 : i32
    return %c0_i32, %c0_i32_0 : i32, i32
  }
  func.func @transform_2(%arg0: i32, %arg1: i32) -> (i32, i32) {
    %c0_i32 = arith.constant 0 : i32
    %c0_i32_0 = arith.constant 0 : i32
    %c0_i32_1 = arith.constant 0 : i32
    return %c0_i32, %c0_i32_0 : i32, i32
  }
  func.func @transform_3(%arg0: i32, %arg1: i32) -> (i32, i32) {
    %c0_i32 = arith.constant 0 : i32
    %c0_i32_0 = arith.constant 0 : i32
    %c0_i32_1 = arith.constant 0 : i32
    return %c0_i32, %c0_i32_0 : i32, i32
  }
  func.func @transform_4(%arg0: i32, %arg1: i32) -> (i32, i32) {
    %c0_i32 = arith.constant 0 : i32
    %c0_i32_0 = arith.constant 0 : i32
    %c0_i32_1 = arith.constant 0 : i32
    return %c0_i32, %c0_i32_0 : i32, i32
  }
  func.func @transform_5(%arg0: i32, %arg1: i32) -> (i32, i32, i32) {
    %c0_i32 = arith.constant 0 : i32
    %c0_i32_0 = arith.constant 0 : i32
    return %arg0, %c0_i32, %arg1 : i32, i32, i32
  }
  func.func @transform_6(%arg0: i32, %arg1: i32) -> (i32, i32, i32) {
    %c0_i32 = arith.constant 0 : i32
    %c0_i32_0 = arith.constant 0 : i32
    return %arg0, %c0_i32, %arg1 : i32, i32, i32
  }
  func.func @transform_7(%arg0: i32, %arg1: i32) -> (i32, i32, i32) {
    %c0_i32 = arith.constant 0 : i32
    %c0_i32_0 = arith.constant 0 : i32
    return %arg0, %c0_i32, %arg1 : i32, i32, i32
  }
  func.func @transform_8(%arg0: i32, %arg1: i32) -> (i32, i32, i32) {
    %c0_i32 = arith.constant 0 : i32
    %c0_i32_0 = arith.constant 0 : i32
    return %arg0, %c0_i32, %arg1 : i32, i32, i32
  }
  func.func @transform_9(%arg0: i32, %arg1: i32) -> (i32, i32, i32, i32) {
    %c0_i32 = arith.constant 0 : i32
    %c0_i32_0 = arith.constant 0 : i32
    %c0_i32_1 = arith.constant 0 : i32
    return %arg0, %arg1, %c0_i32, %c0_i32_0 : i32, i32, i32, i32
  }
  func.func @transform_10(%arg0: i32, %arg1: i32) -> (i32, i32, i32, i32) {
    %c0_i32 = arith.constant 0 : i32
    %c0_i32_0 = arith.constant 0 : i32
    %c0_i32_1 = arith.constant 0 : i32
    return %arg0, %arg1, %c0_i32, %c0_i32_0 : i32, i32, i32, i32
  }
}

module attributes {stable_mosaic.version = 11 : i64} {
  func.func @_matmul_affine_kernel(%arg0: i32, %arg1: i32, %arg2: memref<128x32xbf16, #tpu.memory_space<vmem>>, %arg3: memref<128x1xf32, #tpu.memory_space<vmem>>, %arg4: memref<1x32x512xf32, #tpu.memory_space<vmem>>, %arg5: memref<1x128x512xbf16, #tpu.memory_space<vmem>>) attributes {dimension_semantics = [#tpu.dimension_semantics<parallel>, #tpu.dimension_semantics<parallel>], iteration_bounds = array<i64: 2, 1>, scalar_prefetch = 0 : i64, scratch_operands = 0 : i64, tpu.core_type = #tpu.core_type<tc>, window_params = [{pipeline_mode = #tpu.pipeline_mode<synchronous>, transform_indices = @transform_0, window_bounds = array<i64: 128, 32>}, {pipeline_mode = #tpu.pipeline_mode<synchronous>, transform_indices = @transform_1, window_bounds = array<i64: 128, 1>}, {transform_indices = @transform_2, window_bounds = array<i64: 1, 32, 512>}, {transform_indices = @transform_3, window_bounds = array<i64: 1, 128, 512>}]} {
    %c0 = arith.constant 0 : index
    %c0_0 = arith.constant 0 : index
    %c0_1 = arith.constant 0 : index
    %0 = vector.load %arg4[%c0, %c0_0, %c0_1] : memref<1x32x512xf32, #tpu.memory_space<vmem>>, vector<1x32x512xf32>
    %1 = vector.shape_cast %0 : vector<1x32x512xf32> to vector<32x512xf32>
    %2 = arith.truncf %1 : vector<32x512xf32> to vector<32x512xbf16>
    %c0_2 = arith.constant 0 : index
    %c0_3 = arith.constant 0 : index
    %3 = vector.load %arg2[%c0_2, %c0_3] : memref<128x32xbf16, #tpu.memory_space<vmem>>, vector<128x32xbf16>
    %cst = arith.constant dense<0.000000e+00> : vector<128x512xf32>
    %4 = tpu.matmul %3, %2, %cst {dimension_numbers = #tpu.dot_dimension_numbers<[1], [0], [0], [1], [0, 0, 1, 1], [], []>} : vector<128x32xbf16>, vector<32x512xbf16>, vector<128x512xf32> -> vector<128x512xf32>
    %c0_4 = arith.constant 0 : index
    %c0_5 = arith.constant 0 : index
    %5 = vector.load %arg3[%c0_4, %c0_5] : memref<128x1xf32, #tpu.memory_space<vmem>>, vector<128x1xf32>
    %6 = vector.broadcast %5 : vector<128x1xf32> to vector<128x512xf32>
    %7 = arith.addf %4, %6 : vector<128x512xf32>
    %8 = arith.truncf %7 : vector<128x512xf32> to vector<128x512xbf16>
    %c0_6 = arith.constant 0 : index
    %c0_7 = arith.constant 0 : index
    %c0_8 = arith.constant 0 : index
    %9 = vector.load %arg5[%c0_6, %c0_7, %c0_8] : memref<1x128x512xbf16, #tpu.memory_space<vmem>>, vector<1x128x512xbf16>
    %10 = vector.shape_cast %9 : vector<1x128x512xbf16> to vector<128x512xbf16>
    %11 = vector.shape_cast %8 : vector<128x512xbf16> to vector<1x128x512xbf16>
    tpu.vector_store %arg5[%c0_6, %c0_7, %c0_8], %11 {strides = array<i32>} : memref<1x128x512xbf16, #tpu.memory_space<vmem>>, vector<1x128x512xbf16>,
    return
  }
  func.func @transform_0(%arg0: i32, %arg1: i32) -> (i32, i32) {
    %c0_i32 = arith.constant 0 : i32
    %c0_i32_0 = arith.constant 0 : i32
    %c0_i32_1 = arith.constant 0 : i32
    return %c0_i32, %c0_i32_0 : i32, i32
  }
  func.func @transform_1(%arg0: i32, %arg1: i32) -> (i32, i32) {
    %c0_i32 = arith.constant 0 : i32
    %c0_i32_0 = arith.constant 0 : i32
    %c0_i32_1 = arith.constant 0 : i32
    return %c0_i32, %c0_i32_0 : i32, i32
  }
  func.func @transform_2(%arg0: i32, %arg1: i32) -> (i32, i32, i32) {
    %c0_i32 = arith.constant 0 : i32
    %c0_i32_0 = arith.constant 0 : i32
    return %arg0, %c0_i32, %arg1 : i32, i32, i32
  }
  func.func @transform_3(%arg0: i32, %arg1: i32) -> (i32, i32, i32) {
    %c0_i32 = arith.constant 0 : i32
    %c0_i32_0 = arith.constant 0 : i32
    return %arg0, %c0_i32, %arg1 : i32, i32, i32
  }
}

module attributes {stable_mosaic.version = 11 : i64} {
  func.func @_mlp_tail_kernel(%arg0: i32, %arg1: i32, %arg2: memref<32x128xbf16, #tpu.memory_space<vmem>>, %arg3: memref<32x1xf32, #tpu.memory_space<vmem>>, %arg4: memref<32x1xf32, #tpu.memory_space<vmem>>, %arg5: memref<32x1xf32, #tpu.memory_space<vmem>>, %arg6: memref<1x128x512xf32, #tpu.memory_space<vmem>>, %arg7: memref<1x32x512xf32, #tpu.memory_space<vmem>>, %arg8: memref<1x32x512xf32, #tpu.memory_space<vmem>>) attributes {dimension_semantics = [#tpu.dimension_semantics<parallel>, #tpu.dimension_semantics<parallel>], iteration_bounds = array<i64: 2, 1>, scalar_prefetch = 0 : i64, scratch_operands = 0 : i64, tpu.core_type = #tpu.core_type<tc>, window_params = [{pipeline_mode = #tpu.pipeline_mode<synchronous>, transform_indices = @transform_0, window_bounds = array<i64: 32, 128>}, {pipeline_mode = #tpu.pipeline_mode<synchronous>, transform_indices = @transform_1, window_bounds = array<i64: 32, 1>}, {pipeline_mode = #tpu.pipeline_mode<synchronous>, transform_indices = @transform_2, window_bounds = array<i64: 32, 1>}, {pipeline_mode = #tpu.pipeline_mode<synchronous>, transform_indices = @transform_3, window_bounds = array<i64: 32, 1>}, {transform_indices = @transform_4, window_bounds = array<i64: 1, 128, 512>}, {transform_indices = @transform_5, window_bounds = array<i64: 1, 32, 512>}, {transform_indices = @transform_6, window_bounds = array<i64: 1, 32, 512>}]} {
    %c0 = arith.constant 0 : index
    %c0_0 = arith.constant 0 : index
    %c0_1 = arith.constant 0 : index
    %0 = vector.load %arg6[%c0, %c0_0, %c0_1] : memref<1x128x512xf32, #tpu.memory_space<vmem>>, vector<1x128x512xf32>
    %1 = vector.shape_cast %0 : vector<1x128x512xf32> to vector<128x512xf32>
    %2 = arith.mulf %1, %1 : vector<128x512xf32>
    %3 = arith.mulf %1, %2 : vector<128x512xf32>
    %cst = arith.constant 4.471500e-02 : f32
    %4 = vector.broadcast %cst : f32 to vector<128x512xf32>
    %5 = arith.mulf %4, %3 : vector<128x512xf32>
    %6 = arith.addf %1, %5 : vector<128x512xf32>
    %cst_2 = arith.constant 0.797884583 : f32
    %7 = vector.broadcast %cst_2 : f32 to vector<128x512xf32>
    %8 = arith.mulf %7, %6 : vector<128x512xf32>
    %9 = math.tanh %8 : vector<128x512xf32>
    %cst_3 = arith.constant 1.000000e+00 : f32
    %10 = vector.broadcast %cst_3 : f32 to vector<128x512xf32>
    %11 = arith.addf %10, %9 : vector<128x512xf32>
    %cst_4 = arith.constant 5.000000e-01 : f32
    %12 = vector.broadcast %cst_4 : f32 to vector<128x512xf32>
    %13 = arith.mulf %12, %11 : vector<128x512xf32>
    %14 = arith.mulf %1, %13 : vector<128x512xf32>
    %15 = arith.truncf %14 : vector<128x512xf32> to vector<128x512xbf16>
    %c0_5 = arith.constant 0 : index
    %c0_6 = arith.constant 0 : index
    %16 = vector.load %arg2[%c0_5, %c0_6] : memref<32x128xbf16, #tpu.memory_space<vmem>>, vector<32x128xbf16>
    %cst_7 = arith.constant dense<0.000000e+00> : vector<32x512xf32>
    %17 = tpu.matmul %16, %15, %cst_7 {dimension_numbers = #tpu.dot_dimension_numbers<[1], [0], [0], [1], [0, 0, 1, 1], [], []>} : vector<32x128xbf16>, vector<128x512xbf16>, vector<32x512xf32> -> vector<32x512xf32>
    %c0_8 = arith.constant 0 : index
    %c0_9 = arith.constant 0 : index
    %18 = vector.load %arg3[%c0_8, %c0_9] : memref<32x1xf32, #tpu.memory_space<vmem>>, vector<32x1xf32>
    %19 = vector.broadcast %18 : vector<32x1xf32> to vector<32x512xf32>
    %20 = arith.addf %17, %19 : vector<32x512xf32>
    %c0_10 = arith.constant 0 : index
    %c0_11 = arith.constant 0 : index
    %c0_12 = arith.constant 0 : index
    %21 = vector.load %arg7[%c0_10, %c0_11, %c0_12] : memref<1x32x512xf32, #tpu.memory_space<vmem>>, vector<1x32x512xf32>
    %22 = vector.shape_cast %21 : vector<1x32x512xf32> to vector<32x512xf32>
    %23 = arith.addf %22, %20 : vector<32x512xf32>
    %cst_13 = arith.constant dense<0.000000e+00> : vector<512xf32>
    %24 = vector.multi_reduction <add>, %23, %cst_13 [0] : vector<32x512xf32> to vector<512xf32>
    %25 = vector.shape_cast %24 : vector<512xf32> to vector<1x512xf32>
    %cst_14 = arith.constant 3.200000e+01 : f32
    %26 = vector.broadcast %cst_14 : f32 to vector<1x512xf32>
    %27 = arith.divf %25, %26 : vector<1x512xf32>
    %28 = vector.broadcast %27 : vector<1x512xf32> to vector<32x512xf32>
    %29 = arith.subf %23, %28 : vector<32x512xf32>
    %30 = vector.broadcast %27 : vector<1x512xf32> to vector<32x512xf32>
    %31 = arith.subf %23, %30 : vector<32x512xf32>
    %32 = arith.mulf %29, %31 : vector<32x512xf32>
    %cst_15 = arith.constant dense<0.000000e+00> : vector<512xf32>
    %33 = vector.multi_reduction <add>, %32, %cst_15 [0] : vector<32x512xf32> to vector<512xf32>
    %34 = vector.shape_cast %33 : vector<512xf32> to vector<1x512xf32>
    %cst_16 = arith.constant 3.200000e+01 : f32
    %35 = vector.broadcast %cst_16 : f32 to vector<1x512xf32>
    %36 = arith.divf %34, %35 : vector<1x512xf32>
    %37 = vector.broadcast %27 : vector<1x512xf32> to vector<32x512xf32>
    %38 = arith.subf %23, %37 : vector<32x512xf32>
    %cst_17 = arith.constant 9.99999974E-6 : f32
    %39 = vector.broadcast %cst_17 : f32 to vector<1x512xf32>
    %40 = arith.addf %36, %39 : vector<1x512xf32>
    %41 = math.rsqrt %40 : vector<1x512xf32>
    %42 = vector.broadcast %41 : vector<1x512xf32> to vector<32x512xf32>
    %43 = arith.mulf %38, %42 : vector<32x512xf32>
    %c0_18 = arith.constant 0 : index
    %c0_19 = arith.constant 0 : index
    %44 = vector.load %arg4[%c0_18, %c0_19] : memref<32x1xf32, #tpu.memory_space<vmem>>, vector<32x1xf32>
    %45 = vector.broadcast %44 : vector<32x1xf32> to vector<32x512xf32>
    %46 = arith.mulf %43, %45 : vector<32x512xf32>
    %c0_20 = arith.constant 0 : index
    %c0_21 = arith.constant 0 : index
    %47 = vector.load %arg5[%c0_20, %c0_21] : memref<32x1xf32, #tpu.memory_space<vmem>>, vector<32x1xf32>
    %48 = vector.broadcast %47 : vector<32x1xf32> to vector<32x512xf32>
    %49 = arith.addf %46, %48 : vector<32x512xf32>
    %c0_22 = arith.constant 0 : index
    %c0_23 = arith.constant 0 : index
    %c0_24 = arith.constant 0 : index
    %50 = vector.load %arg8[%c0_22, %c0_23, %c0_24] : memref<1x32x512xf32, #tpu.memory_space<vmem>>, vector<1x32x512xf32>
    %51 = vector.shape_cast %50 : vector<1x32x512xf32> to vector<32x512xf32>
    %52 = vector.shape_cast %49 : vector<32x512xf32> to vector<1x32x512xf32>
    tpu.vector_store %arg8[%c0_22, %c0_23, %c0_24], %52 {strides = array<i32>} : memref<1x32x512xf32, #tpu.memory_space<vmem>>, vector<1x32x512xf32>,
    return
  }
  func.func @transform_0(%arg0: i32, %arg1: i32) -> (i32, i32) {
    %c0_i32 = arith.constant 0 : i32
    %c0_i32_0 = arith.constant 0 : i32
    %c0_i32_1 = arith.constant 0 : i32
    return %c0_i32, %c0_i32_0 : i32, i32
  }
  func.func @transform_1(%arg0: i32, %arg1: i32) -> (i32, i32) {
    %c0_i32 = arith.constant 0 : i32
    %c0_i32_0 = arith.constant 0 : i32
    %c0_i32_1 = arith.constant 0 : i32
    return %c0_i32, %c0_i32_0 : i32, i32
  }
  func.func @transform_2(%arg0: i32, %arg1: i32) -> (i32, i32) {
    %c0_i32 = arith.constant 0 : i32
    %c0_i32_0 = arith.constant 0 : i32
    %c0_i32_1 = arith.constant 0 : i32
    return %c0_i32, %c0_i32_0 : i32, i32
  }
  func.func @transform_3(%arg0: i32, %arg1: i32) -> (i32, i32) {
    %c0_i32 = arith.constant 0 : i32
    %c0_i32_0 = arith.constant 0 : i32
    %c0_i32_1 = arith.constant 0 : i32
    return %c0_i32, %c0_i32_0 : i32, i32
  }
  func.func @transform_4(%arg0: i32, %arg1: i32) -> (i32, i32, i32) {
    %c0_i32 = arith.constant 0 : i32
    %c0_i32_0 = arith.constant 0 : i32
    return %arg0, %c0_i32, %arg1 : i32, i32, i32
  }
  func.func @transform_5(%arg0: i32, %arg1: i32) -> (i32, i32, i32) {
    %c0_i32 = arith.constant 0 : i32
    %c0_i32_0 = arith.constant 0 : i32
    return %arg0, %c0_i32, %arg1 : i32, i32, i32
  }
  func.func @transform_6(%arg0: i32, %arg1: i32) -> (i32, i32, i32) {
    %c0_i32 = arith.constant 0 : i32
    %c0_i32_0 = arith.constant 0 : i32
    return %arg0, %c0_i32, %arg1 : i32, i32, i32
  }
}

</mosaic_0001>

<llo_original>
// kernel: mdblock_forward.5
$region0: #{mdblock_forward.5}
  #allocation0 [shape = 'u32[]', space=smem, size = 0x4, offset = 0x4, fixed_abs, tag = 'smem constant byte address 0x4 - core index']
  #allocation1 [shape = 'u32[72,128]{1,0:T(1,128)}', space=vmem, size = 0x9000, scoped, tag = 'internal scratch']
  %s0 = inlined_call_operand.vmem [shape: bf16[32,128], index: 0, kind: input, shape index: {}]
  %s1 = inlined_call_operand.vmem [shape: bf16[2,128,512], index: 1, kind: input, shape index: {}]
  %s2 = inlined_call_operand.vmem [shape: f32[2,32,512], index: 2, kind: output, shape index: {0}]
  %s3 = inlined_call_operand.vmem [shape: f32[2,1,32,1], index: 3, kind: output, shape index: {1}]
  %s4 = inlined_call_operand.vmem [shape: f32[2,1,32,1], index: 4, kind: output, shape index: {2}]
  %5 = xla_tuple %s2, %s3, %s4
  %s6 = sld [smem:[#allocation0]]
  $region57: #{mdblock_forward.5} parent=0
    _
  %s8 = ssub.s32 1, %s6
  %s9 = scalar_select 0, %s8, %s6
  loop: start=0, step=1, limit=4
  $region2: #{mdblock_forward.5} parent=0 // loop_pre_header
    _
  $region3: #{mdblock_forward.5} parent=0 // loop_header
    %s11 = sphi 0, %s15
    %p12 = scmp.ge.s32.totalorder %s11, 4
    %s18 = sphi 0, %s30
    %s19 = sphi 0, %s26
    %s20 = sphi 0, %s18
    %s21 = sphi 0, %s19
    %s22 = sphi 0, %s20
    %s23 = sphi 0, %s21
    %s31 = sphi 0, %s31
    %s33 = sphi 0, %s31
    %s34 = sphi 0, %s33
    %s48 = sphi 0, %s34
    %s56 = sphi 0, %s58
    %s59 = sphi 0, %s56
    %s60 = sphi 0, %s59
    %s76 = sphi 0, %s60
    %s84 = sphi 0, %s86
    %s87 = sphi 0, %s84
    %s88 = sphi 0, %s87
    %s104 = sphi 0, %s88
    %s112 = sphi 0, %s114
    %s115 = sphi 0, %s112
    %s116 = sphi 0, %s115
    %s132 = sphi 0, %s116
    %s140 = sphi 0, %s142
    %s143 = sphi 0, %s140
    %s144 = sphi 0, %s143
    %s160 = sphi 0, %s144
  $region4: #{mdblock_forward.5} parent=0 // loop_header_branch
    %14 = sbr.rel (%p12) target = $region8
  $region5: #{mdblock_forward.5} parent=0 // loop_body
    %s16 = ssub.s32 %s11, 1
    %s17 = ssub.s32 %s11, 2
    %s24 = sadd.s32 1, %s19
    %p25 = scmp.ge.s32.totalorder %s24, 1
    %s26 = scalar_select %p25, 0, %s24
    %s27 = sadd.s32 1, %s18
    %s28 = scalar_select %p25, %s27, %s18
    %p29 = scmp.ge.s32.totalorder %s28, 2
    %s30 = scalar_select %p29, 0, %s28
    %s32 = sadd.s32 %s31, 1
    %p35 = scmp.eq.s32.totalorder %s11, 1
    %p36 = scmp.ne.s32.totalorder %s31, %s33
    %p37 = scmp.eq.s32.totalorder %s11, 0
    %p38 = por %p36, %p37
    %p39 = scmp.ne.s32.totalorder %s31, %s33
    %p40 = scmp.eq.s32.totalorder %s16, 1
    %p41 = por %p39, %p40
    %p42 = scmp.ne.s32.totalorder %s33, %s34
    %p43 = scmp.eq.s32.totalorder %s16, 0
    %p44 = por %p42, %p43
    %p45 = scmp.ne.s32.totalorder %s33, %s34
    %p46 = scmp.eq.s32.totalorder %s17, 1
    %p47 = por %p45, %p46
    %p49 = scmp.ne.s32.totalorder %s34, %s48
    %p50 = scmp.eq.s32.totalorder %s17, 0
    %p51 = por %p49, %p50
    %s52 = ssub.s32 %s18, %s30
    %s53 = ssub.s32 %s19, %s26
    %s54 = sor.u32 %s52, %s53
    %p55 = scmp.eq.s32.totalorder %s54, 0
    %s57 = sadd.s32 %s56, 1
    %s58 = scalar_select %p55, %s56, %s57
    %p61 = pneg %p55
    %p62 = scmp.eq.s32.totalorder %s11, 1
    %p63 = por %p61, %p62
    %p64 = scmp.ne.s32.totalorder %s56, %s59
    %p65 = scmp.eq.s32.totalorder %s11, 0
    %p66 = por %p64, %p65
    %p67 = scmp.ne.s32.totalorder %s56, %s59
    %p68 = scmp.eq.s32.totalorder %s16, 1
    %p69 = por %p67, %p68
    %p70 = scmp.ne.s32.totalorder %s59, %s60
    %p71 = scmp.eq.s32.totalorder %s16, 0
    %p72 = por %p70, %p71
    %p73 = scmp.ne.s32.totalorder %s59, %s60
    %p74 = scmp.eq.s32.totalorder %s17, 1
    %p75 = por %p73, %p74
    %p77 = scmp.ne.s32.totalorder %s60, %s76
    %p78 = scmp.eq.s32.totalorder %s17, 0
    %p79 = por %p77, %p78
    %s80 = ssub.s32 %s18, %s30
    %s81 = ssub.s32 %s19, %s26
    %s82 = sor.u32 %s80, %s81
    %p83 = scmp.eq.s32.totalorder %s82, 0
    %s85 = sadd.s32 %s84, 1
    %s86 = scalar_select %p83, %s84, %s85
    %p89 = pneg %p83
    %p90 = scmp.eq.s32.totalorder %s11, 1
    %p91 = por %p89, %p90
    %p92 = scmp.ne.s32.totalorder %s84, %s87
    %p93 = scmp.eq.s32.totalorder %s11, 0
    %p94 = por %p92, %p93
    %p95 = scmp.ne.s32.totalorder %s84, %s87
    %p96 = scmp.eq.s32.totalorder %s16, 1
    %p97 = por %p95, %p96
    %p98 = scmp.ne.s32.totalorder %s87, %s88
    %p99 = scmp.eq.s32.totalorder %s16, 0
    %p100 = por %p98, %p99
    %p101 = scmp.ne.s32.totalorder %s87, %s88
    %p102 = scmp.eq.s32.totalorder %s17, 1
    %p103 = por %p101, %p102
    %p105 = scmp.ne.s32.totalorder %s88, %s104
    %p106 = scmp.eq.s32.totalorder %s17, 0
    %p107 = por %p105, %p106
    %s108 = ssub.s32 %s18, %s30
    %s109 = ssub.s32 %s19, %s26
    %s110 = sor.u32 %s108, %s109
    %p111 = scmp.eq.s32.totalorder %s110, 0
    %s113 = sadd.s32 %s112, 1
    %s114 = scalar_select %p111, %s112, %s113
    %p117 = pneg %p111
    %p118 = scmp.eq.s32.totalorder %s11, 1
    %p119 = por %p117, %p118
    %p120 = scmp.ne.s32.totalorder %s112, %s115
    %p121 = scmp.eq.s32.totalorder %s11, 0
    %p122 = por %p120, %p121
    %p123 = scmp.ne.s32.totalorder %s112, %s115
    %p124 = scmp.eq.s32.totalorder %s16, 1
    %p125 = por %p123, %p124
    %p126 = scmp.ne.s32.totalorder %s115, %s116
    %p127 = scmp.eq.s32.totalorder %s16, 0
    %p128 = por %p126, %p127
    %p129 = scmp.ne.s32.totalorder %s115, %s116
    %p130 = scmp.eq.s32.totalorder %s17, 1
    %p131 = por %p129, %p130
    %p133 = scmp.ne.s32.totalorder %s116, %s132
    %p134 = scmp.eq.s32.totalorder %s17, 0
    %p135 = por %p133, %p134
    %s136 = ssub.s32 %s18, %s30
    %s137 = ssub.s32 %s19, %s26
    %s138 = sor.u32 %s136, %s137
    %p139 = scmp.eq.s32.totalorder %s138, 0
    %s141 = sadd.s32 %s140, 1
    %s142 = scalar_select %p139, %s140, %s141
    %p145 = pneg %p139
    %p146 = scmp.eq.s32.totalorder %s11, 1
    %p147 = por %p145, %p146
    %p148 = scmp.ne.s32.totalorder %s140, %s143
    %p149 = scmp.eq.s32.totalorder %s11, 0
    %p150 = por %p148, %p149
    %p151 = scmp.ne.s32.totalorder %s140, %s143
    %p152 = scmp.eq.s32.totalorder %s16, 1
    %p153 = por %p151, %p152
    %p154 = scmp.ne.s32.totalorder %s143, %s144
    %p155 = scmp.eq.s32.totalorder %s16, 0
    %p156 = por %p154, %p155
    %p157 = scmp.ne.s32.totalorder %s143, %s144
    %p158 = scmp.eq.s32.totalorder %s17, 1
    %p159 = por %p157, %p158
    %p161 = scmp.ne.s32.totalorder %s144, %s160
    %p162 = scmp.eq.s32.totalorder %s17, 0
    %p163 = por %p161, %p162
    %p164 = scmp.le.s32.totalorder 1, %s11
    %p165 = scmp.lt.s32.totalorder %s11, 3
    %p166 = pnand %p164, %p165
    %p167 = pneg %p166
    // Predicated region
    $region9: #{mdblock_forward.5} parent=5 // pred_check
      _
    $region10: #{mdblock_forward.5} parent=5 // pred_check_branch
      %169 = sbr.rel (%p166) target = $region12
    $region11: #{mdblock_forward.5} parent=5 // pred_region
      %s170 = ssub.s32 %s11, 1
      // Predicated region
      $region13: #{mdblock_forward.5} parent=11 // pred_check
        %p171 = pneg %p44
      $region14: #{mdblock_forward.5} parent=11 // pred_check_branch
        %173 = sbr.rel (%p171) target = $region16
      $region15: #{mdblock_forward.5} parent=11 // pred_region
        _
      $region16: #{mdblock_forward.5} parent=11 // pred_fallthru
        _
    $region12: #{mdblock_forward.5} parent=5 // pred_fallthru
      _
    %p174 = scmp.lt.s32.totalorder %s11, 2
    // Predicated region
    $region17: #{mdblock_forward.5} parent=5 // pred_check
      %p175 = pneg %p174
    $region18: #{mdblock_forward.5} parent=5 // pred_check_branch
      %177 = sbr.rel (%p175) target = $region20
    $region19: #{mdblock_forward.5} parent=5 // pred_region
      // Predicated region
      $region21: #{mdblock_forward.5} parent=19 // pred_check
        %p178 = pneg %p66
      $region22: #{mdblock_forward.5} parent=19 // pred_check_branch
        %180 = sbr.rel (%p178) target = $region24
      $region23: #{mdblock_forward.5} parent=19 // pred_region
        %s181 = smul.u32 4, %s19
        %p182 = scmp.lt.s32.totalorder %s18, 1
        %s183 = scalar_select %p182, %s18, 1
        %p184 = scmp.lt.s32.totalorder %s181, 3
        %s185 = scalar_select %p184, %s181, 3
        %s186 = smul.addr %s183, 64
        %s187 = sadd.s32 %s185, %s186
        %s188 = smul.addr %s187, 4
        %s189 = scalar_lea.vmem %s1, %s188
        %s190 = smul.u32 4, %s19
      $region24: #{mdblock_forward.5} parent=19 // pred_fallthru
        _
    $region20: #{mdblock_forward.5} parent=5 // pred_fallthru
      _
    %p191 = scmp.le.s32.totalorder 1, %s11
    %p192 = scmp.lt.s32.totalorder %s11, 3
    %p193 = pnand %p191, %p192
    %p194 = pneg %p193
    // Predicated region
    $region25: #{mdblock_forward.5} parent=5 // pred_check
      _
    $region26: #{mdblock_forward.5} parent=5 // pred_check_branch
      %196 = sbr.rel (%p193) target = $region28
    $region27: #{mdblock_forward.5} parent=5 // pred_region
      %s197 = ssub.s32 %s11, 1
      %p198 = pneg %p44
      %p199 = pneg %p41
      %s200 = smul.u32 4, %s21
      %p201 = scmp.lt.s32.totalorder %s20, 1
      %s202 = scalar_select %p201, %s20, 1
      %p203 = scmp.lt.s32.totalorder %s200, 3
      %s204 = scalar_select %p203, %s200, 3
      %s205 = smul.addr %s202, 64
      %s206 = sadd.s32 %s204, %s205
      %s207 = smul.addr %s206, 4
      %s208 = scalar_lea.vmem %s1, %s207
      %p209 = pneg %p72
      %p210 = pneg %p69
      %p211 = pneg %p100
      %p212 = pneg %p97
      %s213 = smul.u32 4, %s21
      %p214 = scmp.lt.s32.totalorder %s20, 1
      %s215 = scalar_select %p214, %s20, 1
      %p216 = scmp.lt.s32.totalorder %s213, 3
      %s217 = scalar_select %p216, %s213, 3
      %s218 = smul.addr %s215, 16
      %s219 = sadd.s32 %s217, %s218
      %s220 = smul.addr %s219, 8
      %s221 = scalar_lea.vmem %s2, %s220
      %p222 = pneg %p128
      %p223 = pneg %p125
      %p224 = scmp.lt.s32.totalorder %s20, 1
      %s225 = scalar_select %p224, %s20, 1
      %p226 = scmp.lt.s32.totalorder %s21, 0
      %s227 = scalar_select %p226, %s21, 0
      %s228 = smul.addr %s227, 4
      %s229 = smul.addr %s225, 4
      %s230 = sadd.s32 %s228, %s229
      %s231 = smul.addr %s230, 8
      %s232 = scalar_lea.vmem %s3, %s231
      %p233 = pneg %p156
      %p234 = pneg %p153
      %p235 = scmp.lt.s32.totalorder %s20, 1
      %s236 = scalar_select %p235, %s20, 1
      %p237 = scmp.lt.s32.totalorder %s21, 0
      %s238 = scalar_select %p237, %s21, 0
      %s239 = smul.addr %s238, 4
      %s240 = smul.addr %s236, 4
      %s241 = sadd.s32 %s239, %s240
      %s242 = smul.addr %s241, 8
      %s243 = scalar_lea.vmem %s4, %s242
      %s244 = smul.u32 4, %s21
      %p245 = scmp.lt.s32.totalorder %s20, 1
      %s246 = scalar_select %p245, %s20, 1
      %p247 = scmp.lt.s32.totalorder %s244, 3
      %s248 = scalar_select %p247, %s244, 3
      %s249 = smul.addr %s246, 64
      %s250 = sadd.s32 %s248, %s249
      %s251 = smul.addr %s250, 4
      %s252 = scalar_lea.vmem %s1, %s251
      %s253 = smul.u32 4, %s21
      %s254 = smul.u32 4, %s21
      %p255 = scmp.lt.s32.totalorder %s20, 1
      %s256 = scalar_select %p255, %s20, 1
      %p257 = scmp.lt.s32.totalorder %s254, 3
      %s258 = scalar_select %p257, %s254, 3
      %s259 = smul.addr %s256, 16
      %s260 = sadd.s32 %s258, %s259
      %s261 = smul.addr %s260, 8
      %s262 = scalar_lea.vmem %s2, %s261
      %s263 = smul.u32 4, %s21
      %p264 = scmp.lt.s32.totalorder %s20, 1
      %s265 = scalar_select %p264, %s20, 1
      %p266 = scmp.lt.s32.totalorder %s21, 0
      %s267 = scalar_select %p266, %s21, 0
      %s268 = smul.addr %s267, 4
      %s269 = smul.addr %s265, 4
      %s270 = sadd.s32 %s268, %s269
      %s271 = smul.addr %s270, 8
      %s272 = scalar_lea.vmem %s3, %s271
      %p273 = scmp.lt.s32.totalorder %s20, 1
      %s274 = scalar_select %p273, %s20, 1
      %p275 = scmp.lt.s32.totalorder %s21, 0
      %s276 = scalar_select %p275, %s21, 0
      %s277 = smul.addr %s276, 4
      %s278 = smul.addr %s274, 4
      %s279 = sadd.s32 %s277, %s278
      %s280 = smul.addr %s279, 8
      %s281 = scalar_lea.vmem %s4, %s280
      %v282 = vld [vmem:[%s0] sm:$0xf]
      %v283 = vld [vmem:[%s0 + $0x4] sm:$0xf]
      %v284 = vld [vmem:[%s0 + $0x8] sm:$0xf]
      %v285 = vld [vmem:[%s0 + $0xc] sm:$0xf]
      %v286 = vld [vmem:[%s252] sm:$0xff]
      %v287 = vld [vmem:[%s252 + $0x8] sm:$0xff]
      %v288 = vld [vmem:[%s252 + $0x10] sm:$0xff]
      %v289 = vld [vmem:[%s252 + $0x18] sm:$0xff]
      %v290 = vld [vmem:[%s252 + $0x20] sm:$0xff]
      %v291 = vld [vmem:[%s252 + $0x28] sm:$0xff]
      %v292 = vld [vmem:[%s252 + $0x30] sm:$0xff]
      %v293 = vld [vmem:[%s252 + $0x38] sm:$0xff]
      %v294 = vld [vmem:[%s252 + $0x40] sm:$0xff]
      %v295 = vld [vmem:[%s252 + $0x48] sm:$0xff]
      %v296 = vld [vmem:[%s252 + $0x50] sm:$0xff]
      %v297 = vld [vmem:[%s252 + $0x58] sm:$0xff]
      %v298 = vld [vmem:[%s252 + $0x60] sm:$0xff]
      %v299 = vld [vmem:[%s252 + $0x68] sm:$0xff]
      %v300 = vld [vmem:[%s252 + $0x70] sm:$0xff]
      %v301 = vld [vmem:[%s252 + $0x78] sm:$0xff]
      %v302 = vld [vmem:[%s252 + $0x80] sm:$0xff]
      %v303 = vld [vmem:[%s252 + $0x88] sm:$0xff]
      %v304 = vld [vmem:[%s252 + $0x90] sm:$0xff]
      %v305 = vld [vmem:[%s252 + $0x98] sm:$0xff]
      %v306 = vld [vmem:[%s252 + $0xa0] sm:$0xff]
      %v307 = vld [vmem:[%s252 + $0xa8] sm:$0xff]
      %v308 = vld [vmem:[%s252 + $0xb0] sm:$0xff]
      %v309 = vld [vmem:[%s252 + $0xb8] sm:$0xff]
      %v310 = vld [vmem:[%s252 + $0xc0] sm:$0xff]
      %v311 = vld [vmem:[%s252 + $0xc8] sm:$0xff]
      %v312 = vld [vmem:[%s252 + $0xd0] sm:$0xff]
      %v313 = vld [vmem:[%s252 + $0xd8] sm:$0xff]
      %v314 = vld [vmem:[%s252 + $0xe0] sm:$0xff]
      %v315 = vld [vmem:[%s252 + $0xe8] sm:$0xff]
      %v316 = vld [vmem:[%s252 + $0xf0] sm:$0xff]
      %v317 = vld [vmem:[%s252 + $0xf8] sm:$0xff]
      %v322 = vunpack.c.l.b16 %v282
      %v323 = vunpack.c.l.b16 %v283
      %v324 = vunpack.c.l.b16 %v284
      %v325 = vunpack.c.l.b16 %v285
      %v326 = vpack.c.b16 %v323, %v322
      %v327 = vpack.c.b16 %v325, %v324
      %v362 = vunpack.c.l.b16 %v286
      %v363 = vunpack.c.h.b16 %v286
      %v364 = vunpack.c.l.b16 %v287
      %v365 = vunpack.c.h.b16 %v287
      %v366 = vunpack.c.l.b16 %v288
      %v367 = vunpack.c.h.b16 %v288
      %v368 = vunpack.c.l.b16 %v289
      %v369 = vunpack.c.h.b16 %v289
      %v370 = vunpack.c.l.b16 %v290
      %v371 = vunpack.c.h.b16 %v290
      %v372 = vunpack.c.l.b16 %v291
      %v373 = vunpack.c.h.b16 %v291
      %v374 = vunpack.c.l.b16 %v292
      %v375 = vunpack.c.h.b16 %v292
      %v376 = vunpack.c.l.b16 %v293
      %v377 = vunpack.c.h.b16 %v293
      %v378 = vunpack.c.l.b16 %v294
      %v379 = vunpack.c.h.b16 %v294
      %v380 = vunpack.c.l.b16 %v295
      %v381 = vunpack.c.h.b16 %v295
      %v382 = vunpack.c.l.b16 %v296
      %v383 = vunpack.c.h.b16 %v296
      %v384 = vunpack.c.l.b16 %v297
      %v385 = vunpack.c.h.b16 %v297
      %v386 = vunpack.c.l.b16 %v298
      %v387 = vunpack.c.h.b16 %v298
      %v388 = vunpack.c.l.b16 %v299
      %v389 = vunpack.c.h.b16 %v299
      %v390 = vunpack.c.l.b16 %v300
      %v391 = vunpack.c.h.b16 %v300
      %v392 = vunpack.c.l.b16 %v301
      %v393 = vunpack.c.h.b16 %v301
      %v394 = vunpack.c.l.b16 %v302
      %v395 = vunpack.c.h.b16 %v302
      %v396 = vunpack.c.l.b16 %v303
      %v397 = vunpack.c.h.b16 %v303
      %v398 = vunpack.c.l.b16 %v304
      %v399 = vunpack.c.h.b16 %v304
      %v400 = vunpack.c.l.b16 %v305
      %v401 = vunpack.c.h.b16 %v305
      %v402 = vunpack.c.l.b16 %v306
      %v403 = vunpack.c.h.b16 %v306
      %v404 = vunpack.c.l.b16 %v307
      %v405 = vunpack.c.h.b16 %v307
      %v406 = vunpack.c.l.b16 %v308
      %v407 = vunpack.c.h.b16 %v308
      %v408 = vunpack.c.l.b16 %v309
      %v409 = vunpack.c.h.b16 %v309
      %v410 = vunpack.c.l.b16 %v310
      %v411 = vunpack.c.h.b16 %v310
      %v412 = vunpack.c.l.b16 %v311
      %v413 = vunpack.c.h.b16 %v311
      %v414 = vunpack.c.l.b16 %v312
      %v415 = vunpack.c.h.b16 %v312
      %v416 = vunpack.c.l.b16 %v313
      %v417 = vunpack.c.h.b16 %v313
      %v418 = vunpack.c.l.b16 %v314
      %v419 = vunpack.c.h.b16 %v314
      %v420 = vunpack.c.l.b16 %v315
      %v421 = vunpack.c.h.b16 %v315
      %v422 = vunpack.c.l.b16 %v316
      %v423 = vunpack.c.h.b16 %v316
      %v424 = vunpack.c.l.b16 %v317
      %v425 = vunpack.c.h.b16 %v317
      %v426 = vpack.c.b16 %v366, %v362
      %v427 = vpack.c.b16 %v367, %v363
      %v428 = vpack.c.b16 %v368, %v364
      %v429 = vpack.c.b16 %v369, %v365
      %v430 = vpack.c.b16 %v374, %v370
      %v431 = vpack.c.b16 %v375, %v371
      %v432 = vpack.c.b16 %v376, %v372
      %v433 = vpack.c.b16 %v377, %v373
      %v434 = vpack.c.b16 %v382, %v378
      %v435 = vpack.c.b16 %v383, %v379
      %v436 = vpack.c.b16 %v384, %v380
      %v437 = vpack.c.b16 %v385, %v381
      %v438 = vpack.c.b16 %v390, %v386
      %v439 = vpack.c.b16 %v391, %v387
      %v440 = vpack.c.b16 %v392, %v388
      %v441 = vpack.c.b16 %v393, %v389
      %v442 = vpack.c.b16 %v398, %v394
      %v443 = vpack.c.b16 %v399, %v395
      %v444 = vpack.c.b16 %v400, %v396
      %v445 = vpack.c.b16 %v401, %v397
      %v446 = vpack.c.b16 %v406, %v402
      %v447 = vpack.c.b16 %v407, %v403
      %v448 = vpack.c.b16 %v408, %v404
      %v449 = vpack.c.b16 %v409, %v405
      %v450 = vpack.c.b16 %v414, %v410
      %v451 = vpack.c.b16 %v415, %v411
      %v452 = vpack.c.b16 %v416, %v412
      %v453 = vpack.c.b16 %v417, %v413
      %v454 = vpack.c.b16 %v422, %v418
      %v455 = vpack.c.b16 %v423, %v419
      %v456 = vpack.c.b16 %v424, %v420
      %v457 = vpack.c.b16 %v425, %v421
      %490 = vmatpush.bf16.msra.mxu0 %v454
      %491 = vmatpush.bf16.msra.mxu0 %v450
      %492 = vmatpush.bf16.msra.mxu0 %v446
      %493 = vmatpush.bf16.msra.mxu0 %v442
      %494 = vmatpush.bf16.msra.mxu0 %v438
      %495 = vmatpush.bf16.msra.mxu0 %v434
      %496 = vmatpush.bf16.msra.mxu0 %v430
      %497 = vmatpush.bf16.msra.mxu0 %v426
      %498 = vmatmul.bf16.gmra.mxu0 %v326
      %v499 = vpop.f32.mrf.mxu0
      %v500 = vadd.f32 0.0, %v499
      %v501 = vpop.f32.mrf.mxu0
      %v502 = vadd.f32 0.0, %v501
      %503 = vmatmul.bf16.gmra.mxu0 %v327
      %v504 = vpop.f32.mrf.mxu0
      %v505 = vadd.f32 0.0, %v504
      %v506 = vpop.f32.mrf.mxu0
      %v507 = vadd.f32 0.0, %v506
      %508 = vdwg.mxu0
      %509 = vmatpush.bf16.msra.mxu0 %v455
      %510 = vmatpush.bf16.msra.mxu0 %v451
      %511 = vmatpush.bf16.msra.mxu0 %v447
      %512 = vmatpush.bf16.msra.mxu0 %v443
      %513 = vmatpush.bf16.msra.mxu0 %v439
      %514 = vmatpush.bf16.msra.mxu0 %v435
      %515 = vmatpush.bf16.msra.mxu0 %v431
      %516 = vmatpush.bf16.msra.mxu0 %v427
      %517 = vmatmul.bf16.gmra.mxu0 %v326
      %v518 = vpop.f32.mrf.mxu0
      %v519 = vadd.f32 0.0, %v518
      %v520 = vpop.f32.mrf.mxu0
      %v521 = vadd.f32 0.0, %v520
      %522 = vmatmul.bf16.gmra.mxu0 %v327
      %v523 = vpop.f32.mrf.mxu0
      %v524 = vadd.f32 0.0, %v523
      %v525 = vpop.f32.mrf.mxu0
      %v526 = vadd.f32 0.0, %v525
      %527 = vdwg.mxu0
      %528 = vmatpush.bf16.msra.mxu0 %v456
      %529 = vmatpush.bf16.msra.mxu0 %v452
      %530 = vmatpush.bf16.msra.mxu0 %v448
      %531 = vmatpush.bf16.msra.mxu0 %v444
      %532 = vmatpush.bf16.msra.mxu0 %v440
      %533 = vmatpush.bf16.msra.mxu0 %v436
      %534 = vmatpush.bf16.msra.mxu0 %v432
      %535 = vmatpush.bf16.msra.mxu0 %v428
      %536 = vmatmul.bf16.gmra.mxu0 %v326
      %v537 = vpop.f32.mrf.mxu0
      %v538 = vadd.f32 0.0, %v537
      %v539 = vpop.f32.mrf.mxu0
      %v540 = vadd.f32 0.0, %v539
      %541 = vmatmul.bf16.gmra.mxu0 %v327
      %v542 = vpop.f32.mrf.mxu0
      %v543 = vadd.f32 0.0, %v542
      %v544 = vpop.f32.mrf.mxu0
      %v545 = vadd.f32 0.0, %v544
      %546 = vdwg.mxu0
      %547 = vmatpush.bf16.msra.mxu0 %v457
      %548 = vmatpush.bf16.msra.mxu0 %v453
      %549 = vmatpush.bf16.msra.mxu0 %v449
      %550 = vmatpush.bf16.msra.mxu0 %v445
      %551 = vmatpush.bf16.msra.mxu0 %v441
      %552 = vmatpush.bf16.msra.mxu0 %v437
      %553 = vmatpush.bf16.msra.mxu0 %v433
      %554 = vmatpush.bf16.msra.mxu0 %v429
      %555 = vmatmul.bf16.gmra.mxu0 %v326
      %v556 = vpop.f32.mrf.mxu0
      %v557 = vadd.f32 0.0, %v556
      %v558 = vpop.f32.mrf.mxu0
      %v559 = vadd.f32 0.0, %v558
      %560 = vmatmul.bf16.gmra.mxu0 %v327
      %v561 = vpop.f32.mrf.mxu0
      %v562 = vadd.f32 0.0, %v561
      %v563 = vpop.f32.mrf.mxu0
      %v564 = vadd.f32 0.0, %v563
      %565 = vdwg.mxu0
      %566 = vst [vmem:[%s262] sm:$0xff] %v500
      %567 = vst [vmem:[%s262 + $0x8] sm:$0xff] %v519
      %568 = vst [vmem:[%s262 + $0x10] sm:$0xff] %v538
      %569 = vst [vmem:[%s262 + $0x18] sm:$0xff] %v557
      %570 = vst [vmem:[%s262 + $0x20] sm:$0xff] %v502
      %571 = vst [vmem:[%s262 + $0x28] sm:$0xff] %v521
      %572 = vst [vmem:[%s262 + $0x30] sm:$0xff] %v540
      %573 = vst [vmem:[%s262 + $0x38] sm:$0xff] %v559
      %574 = vst [vmem:[%s262 + $0x40] sm:$0xff] %v505
      %575 = vst [vmem:[%s262 + $0x48] sm:$0xff] %v524
      %576 = vst [vmem:[%s262 + $0x50] sm:$0xff] %v543
      %577 = vst [vmem:[%s262 + $0x58] sm:$0xff] %v562
      %578 = vst [vmem:[%s262 + $0x60] sm:$0xff] %v507
      %579 = vst [vmem:[%s262 + $0x68] sm:$0xff] %v526
      %580 = vst [vmem:[%s262 + $0x70] sm:$0xff] %v545
      %581 = vst [vmem:[%s262 + $0x78] sm:$0xff] %v564
      %v582 = vadd.f32 %v500, %v519
      %v583 = vadd.f32 %v582, %v538
      %v584 = vadd.f32 %v583, %v557
      %585 = vadd.xlane.f32.xlu0 %v584
      %v586 = vpop.xlane.xlu0 %585
      %v587 = vadd.f32 %v502, %v521
      %v588 = vadd.f32 %v587, %v540
      %v589 = vadd.f32 %v588, %v559
      %590 = vadd.xlane.f32.xlu0 %v589
      %v591 = vpop.xlane.xlu0 %590
      %v592 = vadd.f32 %v505, %v524
      %v593 = vadd.f32 %v592, %v543
      %v594 = vadd.f32 %v593, %v562
      %595 = vadd.xlane.f32.xlu0 %v594
      %v596 = vpop.xlane.xlu0 %595
      %v597 = vadd.f32 %v507, %v526
      %v598 = vadd.f32 %v597, %v545
      %v599 = vadd.f32 %v598, %v564
      %600 = vadd.xlane.f32.xlu0 %v599
      %v601 = vpop.xlane.xlu0 %600
      %vm602 = vcmask 7168
      %603 = vst.msk [vmem:[%s272] sm:$0xff] %vm602, %v586
      %604 = vst.msk [vmem:[%s272 + $0x8] sm:$0xff] %vm602, %v591
      %605 = vst.msk [vmem:[%s272 + $0x10] sm:$0xff] %vm602, %v596
      %606 = vst.msk [vmem:[%s272 + $0x18] sm:$0xff] %vm602, %v601
      %v607 = vmul.f32 %v500, %v500
      %v608 = vmul.f32 %v519, %v519
      %v609 = vmul.f32 %v538, %v538
      %v610 = vmul.f32 %v557, %v557
      %v611 = vmul.f32 %v502, %v502
      %v612 = vmul.f32 %v521, %v521
      %v613 = vmul.f32 %v540, %v540
      %v614 = vmul.f32 %v559, %v559
      %v615 = vmul.f32 %v505, %v505
      %v616 = vmul.f32 %v524, %v524
      %v617 = vmul.f32 %v543, %v543
      %v618 = vmul.f32 %v562, %v562
      %v619 = vmul.f32 %v507, %v507
      %v620 = vmul.f32 %v526, %v526
      %v621 = vmul.f32 %v545, %v545
      %v622 = vmul.f32 %v564, %v564
      %v623 = vadd.f32 %v607, %v608
      %v624 = vadd.f32 %v623, %v609
      %v625 = vadd.f32 %v624, %v610
      %626 = vadd.xlane.f32.xlu0 %v625
      %v627 = vpop.xlane.xlu0 %626
      %v628 = vadd.f32 %v611, %v612
      %v629 = vadd.f32 %v628, %v613
      %v630 = vadd.f32 %v629, %v614
      %631 = vadd.xlane.f32.xlu0 %v630
      %v632 = vpop.xlane.xlu0 %631
      %v633 = vadd.f32 %v615, %v616
      %v634 = vadd.f32 %v633, %v617
      %v635 = vadd.f32 %v634, %v618
      %636 = vadd.xlane.f32.xlu0 %v635
      %v637 = vpop.xlane.xlu0 %636
      %v638 = vadd.f32 %v619, %v620
      %v639 = vadd.f32 %v638, %v621
      %v640 = vadd.f32 %v639, %v622
      %641 = vadd.xlane.f32.xlu0 %v640
      %v642 = vpop.xlane.xlu0 %641
      %643 = vst.msk [vmem:[%s281] sm:$0xff] %vm602, %v627
      %644 = vst.msk [vmem:[%s281 + $0x8] sm:$0xff] %vm602, %v632
      %645 = vst.msk [vmem:[%s281 + $0x10] sm:$0xff] %vm602, %v637
      %646 = vst.msk [vmem:[%s281 + $0x18] sm:$0xff] %vm602, %v642
      %s647 = smul.u32 4, %s21
      %p648 = scmp.lt.s32.totalorder %s20, 1
      %s649 = scalar_select %p648, %s20, 1
      %p650 = scmp.lt.s32.totalorder %s647, 3
      %s651 = scalar_select %p650, %s647, 3
      %s652 = smul.addr %s649, 16
      %s653 = sadd.s32 %s651, %s652
      %s654 = smul.addr %s653, 8
      %s655 = scalar_lea.vmem %s2, %s654
      %p656 = scmp.lt.s32.totalorder %s20, 1
      %s657 = scalar_select %p656, %s20, 1
      %p658 = scmp.lt.s32.totalorder %s21, 0
      %s659 = scalar_select %p658, %s21, 0
      %s660 = smul.addr %s659, 4
      %s661 = smul.addr %s657, 4
      %s662 = sadd.s32 %s660, %s661
      %s663 = smul.addr %s662, 8
      %s664 = scalar_lea.vmem %s3, %s663
      %p665 = scmp.lt.s32.totalorder %s20, 1
      %s666 = scalar_select %p665, %s20, 1
      %p667 = scmp.lt.s32.totalorder %s21, 0
      %s668 = scalar_select %p667, %s21, 0
      %s669 = smul.addr %s668, 4
      %s670 = smul.addr %s666, 4
      %s671 = sadd.s32 %s669, %s670
      %s672 = smul.addr %s671, 8
      %s673 = scalar_lea.vmem %s4, %s672
      // Predicated region
      $region29: #{mdblock_forward.5} parent=27 // pred_check
        %p674 = pneg %p97
      $region30: #{mdblock_forward.5} parent=27 // pred_check_branch
        %676 = sbr.rel (%p674) target = $region32
      $region31: #{mdblock_forward.5} parent=27 // pred_region
        %s677 = smul.u32 4, %s21
      $region32: #{mdblock_forward.5} parent=27 // pred_fallthru
        _
      // Predicated region
      $region33: #{mdblock_forward.5} parent=27 // pred_check
        %p678 = pneg %p125
      $region34: #{mdblock_forward.5} parent=27 // pred_check_branch
        %680 = sbr.rel (%p678) target = $region36
      $region35: #{mdblock_forward.5} parent=27 // pred_region
        _
      $region36: #{mdblock_forward.5} parent=27 // pred_fallthru
        _
      // Predicated region
      $region37: #{mdblock_forward.5} parent=27 // pred_check
        %p681 = pneg %p153
      $region38: #{mdblock_forward.5} parent=27 // pred_check_branch
        %683 = sbr.rel (%p681) target = $region40
      $region39: #{mdblock_forward.5} parent=27 // pred_region
        _
      $region40: #{mdblock_forward.5} parent=27 // pred_fallthru
        _
    $region28: #{mdblock_forward.5} parent=5 // pred_fallthru
      _
    %p684 = scmp.le.s32.totalorder 2, %s11
    // Predicated region
    $region41: #{mdblock_forward.5} parent=5 // pred_check
      %p685 = pneg %p684
    $region42: #{mdblock_forward.5} parent=5 // pred_check_branch
      %687 = sbr.rel (%p685) target = $region44
    $region43: #{mdblock_forward.5} parent=5 // pred_region
      %s688 = ssub.s32 %s11, 2
      // Predicated region
      $region45: #{mdblock_forward.5} parent=43 // pred_check
        %p689 = pneg %p103
      $region46: #{mdblock_forward.5} parent=43 // pred_check_branch
        %691 = sbr.rel (%p689) target = $region48
      $region47: #{mdblock_forward.5} parent=43 // pred_region
        %s692 = smul.u32 4, %s23
        %p693 = scmp.lt.s32.totalorder %s22, 1
        %s694 = scalar_select %p693, %s22, 1
        %p695 = scmp.lt.s32.totalorder %s692, 3
        %s696 = scalar_select %p695, %s692, 3
        %s697 = smul.addr %s694, 16
        %s698 = sadd.s32 %s696, %s697
        %s699 = smul.addr %s698, 8
        %s700 = scalar_lea.vmem %s2, %s699
      $region48: #{mdblock_forward.5} parent=43 // pred_fallthru
        _
      // Predicated region
      $region49: #{mdblock_forward.5} parent=43 // pred_check
        %p701 = pneg %p131
      $region50: #{mdblock_forward.5} parent=43 // pred_check_branch
        %703 = sbr.rel (%p701) target = $region52
      $region51: #{mdblock_forward.5} parent=43 // pred_region
        %p704 = scmp.lt.s32.totalorder %s22, 1
        %s705 = scalar_select %p704, %s22, 1
        %p706 = scmp.lt.s32.totalorder %s23, 0
        %s707 = scalar_select %p706, %s23, 0
        %s708 = smul.addr %s707, 4
        %s709 = smul.addr %s705, 4
        %s710 = sadd.s32 %s708, %s709
        %s711 = smul.addr %s710, 8
        %s712 = scalar_lea.vmem %s3, %s711
      $region52: #{mdblock_forward.5} parent=43 // pred_fallthru
        _
      // Predicated region
      $region53: #{mdblock_forward.5} parent=43 // pred_check
        %p713 = pneg %p159
      $region54: #{mdblock_forward.5} parent=43 // pred_check_branch
        %715 = sbr.rel (%p713) target = $region56
      $region55: #{mdblock_forward.5} parent=43 // pred_region
        %p716 = scmp.lt.s32.totalorder %s22, 1
        %s717 = scalar_select %p716, %s22, 1
        %p718 = scmp.lt.s32.totalorder %s23, 0
        %s719 = scalar_select %p718, %s23, 0
        %s720 = smul.addr %s719, 4
        %s721 = smul.addr %s717, 4
        %s722 = sadd.s32 %s720, %s721
        %s723 = smul.addr %s722, 8
        %s724 = scalar_lea.vmem %s4, %s723
      $region56: #{mdblock_forward.5} parent=43 // pred_fallthru
        _
    $region44: #{mdblock_forward.5} parent=5 // pred_fallthru
      _
  $region6: #{mdblock_forward.5} parent=0 // loop_footer
    %s15 = sadd.s32 1, %s11
  $region7: #{mdblock_forward.5} parent=0 // loop_footer_branch
    %10 = sbr.rel target = $region3
  $region8: #{mdblock_forward.5} parent=0 // loop_exit
    _

// kernel: mdblock_forward.6
$region0: #{mdblock_forward.6}
  #allocation0 [shape = 'u32[]', space=smem, size = 0x4, offset = 0x4, fixed_abs, tag = 'smem constant byte address 0x4 - core index']
  #allocation1 [shape = 'u32[72,128]{1,0:T(1,128)}', space=vmem, size = 0x9000, scoped, tag = 'internal scratch']
  %s0 = inlined_call_operand.vmem [shape: bf16[32,32], index: 0, kind: input, shape index: {}]
  %s1 = inlined_call_operand.vmem [shape: f32[32,1], index: 1, kind: input, shape index: {}]
  %s2 = inlined_call_operand.vmem [shape: f32[2,32,512], index: 2, kind: input, shape index: {}]
  %s3 = inlined_call_operand.vmem [shape: bf16[2,32,512], index: 3, kind: output, shape index: {}]
  %s4 = sld [smem:[#allocation0]]
  $region45: #{mdblock_forward.6} parent=0
    _
  %s6 = ssub.s32 1, %s4
  %s7 = scalar_select 0, %s6, %s4
  loop: start=0, step=1, limit=4
  $region2: #{mdblock_forward.6} parent=0 // loop_pre_header
    _
  $region3: #{mdblock_forward.6} parent=0 // loop_header
    %s9 = sphi 0, %s13
    %p10 = scmp.ge.s32.totalorder %s9, 4
    %s16 = sphi 0, %s28
    %s17 = sphi 0, %s24
    %s18 = sphi 0, %s16
    %s19 = sphi 0, %s17
    %s20 = sphi 0, %s18
    %s21 = sphi 0, %s19
    %s29 = sphi 0, %s29
    %s31 = sphi 0, %s29
    %s32 = sphi 0, %s31
    %s46 = sphi 0, %s32
    %s50 = sphi 0, %s50
    %s52 = sphi 0, %s50
    %s53 = sphi 0, %s52
    %s67 = sphi 0, %s53
    %s75 = sphi 0, %s77
    %s78 = sphi 0, %s75
    %s79 = sphi 0, %s78
    %s95 = sphi 0, %s79
    %s103 = sphi 0, %s105
    %s106 = sphi 0, %s103
    %s107 = sphi 0, %s106
    %s123 = sphi 0, %s107
  $region4: #{mdblock_forward.6} parent=0 // loop_header_branch
    %12 = sbr.rel (%p10) target = $region8
  $region5: #{mdblock_forward.6} parent=0 // loop_body
    %s14 = ssub.s32 %s9, 1
    %s15 = ssub.s32 %s9, 2
    %s22 = sadd.s32 1, %s17
    %p23 = scmp.ge.s32.totalorder %s22, 1
    %s24 = scalar_select %p23, 0, %s22
    %s25 = sadd.s32 1, %s16
    %s26 = scalar_select %p23, %s25, %s16
    %p27 = scmp.ge.s32.totalorder %s26, 2
    %s28 = scalar_select %p27, 0, %s26
    %s30 = sadd.s32 %s29, 1
    %p33 = scmp.eq.s32.totalorder %s9, 1
    %p34 = scmp.ne.s32.totalorder %s29, %s31
    %p35 = scmp.eq.s32.totalorder %s9, 0
    %p36 = por %p34, %p35
    %p37 = scmp.ne.s32.totalorder %s29, %s31
    %p38 = scmp.eq.s32.totalorder %s14, 1
    %p39 = por %p37, %p38
    %p40 = scmp.ne.s32.totalorder %s31, %s32
    %p41 = scmp.eq.s32.totalorder %s14, 0
    %p42 = por %p40, %p41
    %p43 = scmp.ne.s32.totalorder %s31, %s32
    %p44 = scmp.eq.s32.totalorder %s15, 1
    %p45 = por %p43, %p44
    %p47 = scmp.ne.s32.totalorder %s32, %s46
    %p48 = scmp.eq.s32.totalorder %s15, 0
    %p49 = por %p47, %p48
    %s51 = sadd.s32 %s50, 1
    %p54 = scmp.eq.s32.totalorder %s9, 1
    %p55 = scmp.ne.s32.totalorder %s50, %s52
    %p56 = scmp.eq.s32.totalorder %s9, 0
    %p57 = por %p55, %p56
    %p58 = scmp.ne.s32.totalorder %s50, %s52
    %p59 = scmp.eq.s32.totalorder %s14, 1
    %p60 = por %p58, %p59
    %p61 = scmp.ne.s32.totalorder %s52, %s53
    %p62 = scmp.eq.s32.totalorder %s14, 0
    %p63 = por %p61, %p62
    %p64 = scmp.ne.s32.totalorder %s52, %s53
    %p65 = scmp.eq.s32.totalorder %s15, 1
    %p66 = por %p64, %p65
    %p68 = scmp.ne.s32.totalorder %s53, %s67
    %p69 = scmp.eq.s32.totalorder %s15, 0
    %p70 = por %p68, %p69
    %s71 = ssub.s32 %s16, %s28
    %s72 = ssub.s32 %s17, %s24
    %s73 = sor.u32 %s71, %s72
    %p74 = scmp.eq.s32.totalorder %s73, 0
    %s76 = sadd.s32 %s75, 1
    %s77 = scalar_select %p74, %s75, %s76
    %p80 = pneg %p74
    %p81 = scmp.eq.s32.totalorder %s9, 1
    %p82 = por %p80, %p81
    %p83 = scmp.ne.s32.totalorder %s75, %s78
    %p84 = scmp.eq.s32.totalorder %s9, 0
    %p85 = por %p83, %p84
    %p86 = scmp.ne.s32.totalorder %s75, %s78
    %p87 = scmp.eq.s32.totalorder %s14, 1
    %p88 = por %p86, %p87
    %p89 = scmp.ne.s32.totalorder %s78, %s79
    %p90 = scmp.eq.s32.totalorder %s14, 0
    %p91 = por %p89, %p90
    %p92 = scmp.ne.s32.totalorder %s78, %s79
    %p93 = scmp.eq.s32.totalorder %s15, 1
    %p94 = por %p92, %p93
    %p96 = scmp.ne.s32.totalorder %s79, %s95
    %p97 = scmp.eq.s32.totalorder %s15, 0
    %p98 = por %p96, %p97
    %s99 = ssub.s32 %s16, %s28
    %s100 = ssub.s32 %s17, %s24
    %s101 = sor.u32 %s99, %s100
    %p102 = scmp.eq.s32.totalorder %s101, 0
    %s104 = sadd.s32 %s103, 1
    %s105 = scalar_select %p102, %s103, %s104
    %p108 = pneg %p102
    %p109 = scmp.eq.s32.totalorder %s9, 1
    %p110 = por %p108, %p109
    %p111 = scmp.ne.s32.totalorder %s103, %s106
    %p112 = scmp.eq.s32.totalorder %s9, 0
    %p113 = por %p111, %p112
    %p114 = scmp.ne.s32.totalorder %s103, %s106
    %p115 = scmp.eq.s32.totalorder %s14, 1
    %p116 = por %p114, %p115
    %p117 = scmp.ne.s32.totalorder %s106, %s107
    %p118 = scmp.eq.s32.totalorder %s14, 0
    %p119 = por %p117, %p118
    %p120 = scmp.ne.s32.totalorder %s106, %s107
    %p121 = scmp.eq.s32.totalorder %s15, 1
    %p122 = por %p120, %p121
    %p124 = scmp.ne.s32.totalorder %s107, %s123
    %p125 = scmp.eq.s32.totalorder %s15, 0
    %p126 = por %p124, %p125
    %p127 = scmp.le.s32.totalorder 1, %s9
    %p128 = scmp.lt.s32.totalorder %s9, 3
    %p129 = pnand %p127, %p128
    %p130 = pneg %p129
    // Predicated region
    $region9: #{mdblock_forward.6} parent=5 // pred_check
      _
    $region10: #{mdblock_forward.6} parent=5 // pred_check_branch
      %132 = sbr.rel (%p129) target = $region12
    $region11: #{mdblock_forward.6} parent=5 // pred_region
      %s133 = ssub.s32 %s9, 1
      // Predicated region
      $region13: #{mdblock_forward.6} parent=11 // pred_check
        %p134 = pneg %p42
      $region14: #{mdblock_forward.6} parent=11 // pred_check_branch
        %136 = sbr.rel (%p134) target = $region16
      $region15: #{mdblock_forward.6} parent=11 // pred_region
        _
      $region16: #{mdblock_forward.6} parent=11 // pred_fallthru
        _
      // Predicated region
      $region17: #{mdblock_forward.6} parent=11 // pred_check
        %p137 = pneg %p63
      $region18: #{mdblock_forward.6} parent=11 // pred_check_branch
        %139 = sbr.rel (%p137) target = $region20
      $region19: #{mdblock_forward.6} parent=11 // pred_region
        _
      $region20: #{mdblock_forward.6} parent=11 // pred_fallthru
        _
    $region12: #{mdblock_forward.6} parent=5 // pred_fallthru
      _
    %p140 = scmp.lt.s32.totalorder %s9, 2
    // Predicated region
    $region21: #{mdblock_forward.6} parent=5 // pred_check
      %p141 = pneg %p140
    $region22: #{mdblock_forward.6} parent=5 // pred_check_branch
      %143 = sbr.rel (%p141) target = $region24
    $region23: #{mdblock_forward.6} parent=5 // pred_region
      // Predicated region
      $region25: #{mdblock_forward.6} parent=23 // pred_check
        %p144 = pneg %p85
      $region26: #{mdblock_forward.6} parent=23 // pred_check_branch
        %146 = sbr.rel (%p144) target = $region28
      $region27: #{mdblock_forward.6} parent=23 // pred_region
        %s147 = smul.u32 4, %s17
        %p148 = scmp.lt.s32.totalorder %s16, 1
        %s149 = scalar_select %p148, %s16, 1
        %p150 = scmp.lt.s32.totalorder %s147, 3
        %s151 = scalar_select %p150, %s147, 3
        %s152 = smul.addr %s149, 16
        %s153 = sadd.s32 %s151, %s152
        %s154 = smul.addr %s153, 8
        %s155 = scalar_lea.vmem %s2, %s154
        %s156 = smul.u32 4, %s17
      $region28: #{mdblock_forward.6} parent=23 // pred_fallthru
        _
    $region24: #{mdblock_forward.6} parent=5 // pred_fallthru
      _
    %p157 = scmp.le.s32.totalorder 1, %s9
    %p158 = scmp.lt.s32.totalorder %s9, 3
    %p159 = pnand %p157, %p158
    %p160 = pneg %p159
    // Predicated region
    $region29: #{mdblock_forward.6} parent=5 // pred_check
      _
    $region30: #{mdblock_forward.6} parent=5 // pred_check_branch
      %162 = sbr.rel (%p159) target = $region32
    $region31: #{mdblock_forward.6} parent=5 // pred_region
      %s163 = ssub.s32 %s9, 1
      %p164 = pneg %p42
      %p165 = pneg %p39
      %p166 = pneg %p63
      %p167 = pneg %p60
      %s168 = smul.u32 4, %s19
      %p169 = scmp.lt.s32.totalorder %s18, 1
      %s170 = scalar_select %p169, %s18, 1
      %p171 = scmp.lt.s32.totalorder %s168, 3
      %s172 = scalar_select %p171, %s168, 3
      %s173 = smul.addr %s170, 16
      %s174 = sadd.s32 %s172, %s173
      %s175 = smul.addr %s174, 8
      %s176 = scalar_lea.vmem %s2, %s175
      %p177 = pneg %p91
      %p178 = pneg %p88
      %p179 = pneg %p119
      %p180 = pneg %p116
      %s181 = smul.u32 4, %s19
      %p182 = scmp.lt.s32.totalorder %s18, 1
      %s183 = scalar_select %p182, %s18, 1
      %p184 = scmp.lt.s32.totalorder %s181, 3
      %s185 = scalar_select %p184, %s181, 3
      %s186 = smul.addr %s183, 16
      %s187 = sadd.s32 %s185, %s186
      %s188 = smul.addr %s187, 4
      %s189 = scalar_lea.vmem %s3, %s188
      %s190 = smul.u32 4, %s19
      %p191 = scmp.lt.s32.totalorder %s18, 1
      %s192 = scalar_select %p191, %s18, 1
      %p193 = scmp.lt.s32.totalorder %s190, 3
      %s194 = scalar_select %p193, %s190, 3
      %s195 = smul.addr %s192, 16
      %s196 = sadd.s32 %s194, %s195
      %s197 = smul.addr %s196, 8
      %s198 = scalar_lea.vmem %s2, %s197
      %s199 = smul.u32 4, %s19
      %s200 = smul.u32 4, %s19
      %p201 = scmp.lt.s32.totalorder %s18, 1
      %s202 = scalar_select %p201, %s18, 1
      %p203 = scmp.lt.s32.totalorder %s200, 3
      %s204 = scalar_select %p203, %s200, 3
      %s205 = smul.addr %s202, 16
      %s206 = sadd.s32 %s204, %s205
      %s207 = smul.addr %s206, 4
      %s208 = scalar_lea.vmem %s3, %s207
      %s209 = smul.u32 4, %s19
      %v211 = vld [vmem:[%s198] sm:$0xff]
      %v212 = vld [vmem:[%s198 + $0x8] sm:$0xff]
      %v213 = vld [vmem:[%s198 + $0x10] sm:$0xff]
      %v214 = vld [vmem:[%s198 + $0x18] sm:$0xff]
      %v215 = vld [vmem:[%s198 + $0x20] sm:$0xff]
      %v216 = vld [vmem:[%s198 + $0x28] sm:$0xff]
      %v217 = vld [vmem:[%s198 + $0x30] sm:$0xff]
      %v218 = vld [vmem:[%s198 + $0x38] sm:$0xff]
      %v219 = vld [vmem:[%s198 + $0x40] sm:$0xff]
      %v220 = vld [vmem:[%s198 + $0x48] sm:$0xff]
      %v221 = vld [vmem:[%s198 + $0x50] sm:$0xff]
      %v222 = vld [vmem:[%s198 + $0x58] sm:$0xff]
      %v223 = vld [vmem:[%s198 + $0x60] sm:$0xff]
      %v224 = vld [vmem:[%s198 + $0x68] sm:$0xff]
      %v225 = vld [vmem:[%s198 + $0x70] sm:$0xff]
      %v226 = vld [vmem:[%s198 + $0x78] sm:$0xff]
      %v227 = vpack.c.bf16 %v215, %v211
      %v228 = vpack.c.bf16 %v216, %v212
      %v229 = vpack.c.bf16 %v217, %v213
      %v230 = vpack.c.bf16 %v218, %v214
      %v231 = vpack.c.bf16 %v223, %v219
      %v232 = vpack.c.bf16 %v224, %v220
      %v233 = vpack.c.bf16 %v225, %v221
      %v234 = vpack.c.bf16 %v226, %v222
      %v235 = vld [vmem:[%s0] sm:$0xf]
      %v236 = vld [vmem:[%s0 + $0x4] sm:$0xf]
      %v237 = vld [vmem:[%s0 + $0x8] sm:$0xf]
      %v238 = vld [vmem:[%s0 + $0xc] sm:$0xf]
      %v239 = vld [vmem:[%s1] sm:$0xff]
      %v240 = vld [vmem:[%s1 + $0x8] sm:$0xff]
      %v241 = vld [vmem:[%s1 + $0x10] sm:$0xff]
      %v242 = vld [vmem:[%s1 + $0x18] sm:$0xff]
      %244 = vset.pattern.permute.xlu0 0
      %245 = vperm.xlu0 %244, %v239
      %v246 = vpop.permute.xlu0 %245
      %249 = vset.pattern.permute.xlu0 0
      %250 = vperm.xlu0 %249, %v240
      %v251 = vpop.permute.xlu0 %250
      %254 = vset.pattern.permute.xlu0 0
      %255 = vperm.xlu0 %254, %v241
      %v256 = vpop.permute.xlu0 %255
      %259 = vset.pattern.permute.xlu0 0
      %260 = vperm.xlu0 %259, %v242
      %v261 = vpop.permute.xlu0 %260
      %v267 = vunpack.c.l.b16 %v235
      %v268 = vunpack.c.l.b16 %v236
      %v269 = vunpack.c.l.b16 %v237
      %v270 = vunpack.c.l.b16 %v238
      %v271 = vpack.c.b16 %v268, %v267
      %v272 = vpack.c.b16 %v270, %v269
      %vm273 = vcmask 261120
      %v275 = vsel %vm273, %v271, 0
      %v278 = vsel %vm273, %v272, 0
      %280 = vmatpush.bf16.msra.mxu0 0
      %281 = vmatpush.bf16.msra.mxu0 0
      %282 = vmatpush.bf16.msra.mxu0 0
      %283 = vmatpush.bf16.msra.mxu0 0
      %284 = vmatpush.bf16.msra.mxu0 0
      %285 = vmatpush.bf16.msra.mxu0 0
      %286 = vmatpush.bf16.msra.mxu0 %v231
      %287 = vmatpush.bf16.msra.mxu0 %v227
      %288 = vmatmul.bf16.gmra.mxu0 %v275
      %v289 = vpop.f32.mrf.mxu0
      %v290 = vadd.f32 %v246, %v289
      %v291 = vpop.f32.mrf.mxu0
      %v292 = vadd.f32 %v251, %v291
      %293 = vmatmul.bf16.gmra.mxu0 %v278
      %v294 = vpop.f32.mrf.mxu0
      %v295 = vadd.f32 %v256, %v294
      %v296 = vpop.f32.mrf.mxu0
      %v297 = vadd.f32 %v261, %v296
      %298 = vdwg.mxu0
      %299 = vmatpush.bf16.msra.mxu0 0
      %300 = vmatpush.bf16.msra.mxu0 0
      %301 = vmatpush.bf16.msra.mxu0 0
      %302 = vmatpush.bf16.msra.mxu0 0
      %303 = vmatpush.bf16.msra.mxu0 0
      %304 = vmatpush.bf16.msra.mxu0 0
      %305 = vmatpush.bf16.msra.mxu0 %v232
      %306 = vmatpush.bf16.msra.mxu0 %v228
      %307 = vmatmul.bf16.gmra.mxu0 %v275
      %v308 = vpop.f32.mrf.mxu0
      %v309 = vadd.f32 %v246, %v308
      %v310 = vpop.f32.mrf.mxu0
      %v311 = vadd.f32 %v251, %v310
      %312 = vmatmul.bf16.gmra.mxu0 %v278
      %v313 = vpop.f32.mrf.mxu0
      %v314 = vadd.f32 %v256, %v313
      %v315 = vpop.f32.mrf.mxu0
      %v316 = vadd.f32 %v261, %v315
      %317 = vdwg.mxu0
      %318 = vmatpush.bf16.msra.mxu0 0
      %319 = vmatpush.bf16.msra.mxu0 0
      %320 = vmatpush.bf16.msra.mxu0 0
      %321 = vmatpush.bf16.msra.mxu0 0
      %322 = vmatpush.bf16.msra.mxu0 0
      %323 = vmatpush.bf16.msra.mxu0 0
      %324 = vmatpush.bf16.msra.mxu0 %v233
      %325 = vmatpush.bf16.msra.mxu0 %v229
      %326 = vmatmul.bf16.gmra.mxu0 %v275
      %v327 = vpop.f32.mrf.mxu0
      %v328 = vadd.f32 %v246, %v327
      %v329 = vpop.f32.mrf.mxu0
      %v330 = vadd.f32 %v251, %v329
      %331 = vmatmul.bf16.gmra.mxu0 %v278
      %v332 = vpop.f32.mrf.mxu0
      %v333 = vadd.f32 %v256, %v332
      %v334 = vpop.f32.mrf.mxu0
      %v335 = vadd.f32 %v261, %v334
      %336 = vdwg.mxu0
      %337 = vmatpush.bf16.msra.mxu0 0
      %338 = vmatpush.bf16.msra.mxu0 0
      %339 = vmatpush.bf16.msra.mxu0 0
      %340 = vmatpush.bf16.msra.mxu0 0
      %341 = vmatpush.bf16.msra.mxu0 0
      %342 = vmatpush.bf16.msra.mxu0 0
      %343 = vmatpush.bf16.msra.mxu0 %v234
      %344 = vmatpush.bf16.msra.mxu0 %v230
      %345 = vmatmul.bf16.gmra.mxu0 %v275
      %v346 = vpop.f32.mrf.mxu0
      %v347 = vadd.f32 %v246, %v346
      %v348 = vpop.f32.mrf.mxu0
      %v349 = vadd.f32 %v251, %v348
      %350 = vmatmul.bf16.gmra.mxu0 %v278
      %v351 = vpop.f32.mrf.mxu0
      %v352 = vadd.f32 %v256, %v351
      %v353 = vpop.f32.mrf.mxu0
      %v354 = vadd.f32 %v261, %v353
      %355 = vdwg.mxu0
      %v356 = vmul.f32 %v290, %v290
      %v357 = vmul.f32 %v309, %v309
      %v358 = vmul.f32 %v328, %v328
      %v359 = vmul.f32 %v347, %v347
      %v360 = vmul.f32 %v292, %v292
      %v361 = vmul.f32 %v311, %v311
      %v362 = vmul.f32 %v330, %v330
      %v363 = vmul.f32 %v349, %v349
      %v364 = vmul.f32 %v295, %v295
      %v365 = vmul.f32 %v314, %v314
      %v366 = vmul.f32 %v333, %v333
      %v367 = vmul.f32 %v352, %v352
      %v368 = vmul.f32 %v297, %v297
      %v369 = vmul.f32 %v316, %v316
      %v370 = vmul.f32 %v335, %v335
      %v371 = vmul.f32 %v354, %v354
      %v372 = vmul.f32 %v290, %v356
      %v373 = vmul.f32 %v309, %v357
      %v374 = vmul.f32 %v328, %v358
      %v375 = vmul.f32 %v347, %v359
      %v376 = vmul.f32 %v292, %v360
      %v377 = vmul.f32 %v311, %v361
      %v378 = vmul.f32 %v330, %v362
      %v379 = vmul.f32 %v349, %v363
      %v380 = vmul.f32 %v295, %v364
      %v381 = vmul.f32 %v314, %v365
      %v382 = vmul.f32 %v333, %v366
      %v383 = vmul.f32 %v352, %v367
      %v384 = vmul.f32 %v297, %v368
      %v385 = vmul.f32 %v316, %v369
      %v386 = vmul.f32 %v335, %v370
      %v387 = vmul.f32 %v354, %v371
      %v388 = vmul.f32 %v372, 0.044715
      %v389 = vmul.f32 %v373, 0.044715
      %v390 = vmul.f32 %v374, 0.044715
      %v391 = vmul.f32 %v375, 0.044715
      %v392 = vmul.f32 %v376, 0.044715
      %v393 = vmul.f32 %v377, 0.044715
      %v394 = vmul.f32 %v378, 0.044715
      %v395 = vmul.f32 %v379, 0.044715
      %v396 = vmul.f32 %v380, 0.044715
      %v397 = vmul.f32 %v381, 0.044715
      %v398 = vmul.f32 %v382, 0.044715
      %v399 = vmul.f32 %v383, 0.044715
      %v400 = vmul.f32 %v384, 0.044715
      %v401 = vmul.f32 %v385, 0.044715
      %v402 = vmul.f32 %v386, 0.044715
      %v403 = vmul.f32 %v387, 0.044715
      %v404 = vadd.f32 %v290, %v388
      %v405 = vadd.f32 %v309, %v389
      %v406 = vadd.f32 %v328, %v390
      %v407 = vadd.f32 %v347, %v391
      %v408 = vadd.f32 %v292, %v392
      %v409 = vadd.f32 %v311, %v393
      %v410 = vadd.f32 %v330, %v394
      %v411 = vadd.f32 %v349, %v395
      %v412 = vadd.f32 %v295, %v396
      %v413 = vadd.f32 %v314, %v397
      %v414 = vadd.f32 %v333, %v398
      %v415 = vadd.f32 %v352, %v399
      %v416 = vadd.f32 %v297, %v400
      %v417 = vadd.f32 %v316, %v401
      %v418 = vadd.f32 %v335, %v402
      %v419 = vadd.f32 %v354, %v403
      %v420 = vmul.f32 %v404, 0.7978846
      %v421 = vmul.f32 %v405, 0.7978846
      %v422 = vmul.f32 %v406, 0.7978846
      %v423 = vmul.f32 %v407, 0.7978846
      %v424 = vmul.f32 %v408, 0.7978846
      %v425 = vmul.f32 %v409, 0.7978846
      %v426 = vmul.f32 %v410, 0.7978846
      %v427 = vmul.f32 %v411, 0.7978846
      %v428 = vmul.f32 %v412, 0.7978846
      %v429 = vmul.f32 %v413, 0.7978846
      %v430 = vmul.f32 %v414, 0.7978846
      %v431 = vmul.f32 %v415, 0.7978846
      %v432 = vmul.f32 %v416, 0.7978846
      %v433 = vmul.f32 %v417, 0.7978846
      %v434 = vmul.f32 %v418, 0.7978846
      %v435 = vmul.f32 %v419, 0.7978846
      %v436 = vtanh.pop %v420
      %v437 = vtanh.pop %v421
      %v438 = vtanh.pop %v422
      %v439 = vtanh.pop %v423
      %v440 = vtanh.pop %v424
      %v441 = vtanh.pop %v425
      %v442 = vtanh.pop %v426
      %v443 = vtanh.pop %v427
      %v444 = vtanh.pop %v428
      %v445 = vtanh.pop %v429
      %v446 = vtanh.pop %v430
      %v447 = vtanh.pop %v431
      %v448 = vtanh.pop %v432
      %v449 = vtanh.pop %v433
      %v450 = vtanh.pop %v434
      %v451 = vtanh.pop %v435
      %v452 = vadd.f32 %v436, 1.0
      %v453 = vadd.f32 %v437, 1.0
      %v454 = vadd.f32 %v438, 1.0
      %v455 = vadd.f32 %v439, 1.0
      %v456 = vadd.f32 %v440, 1.0
      %v457 = vadd.f32 %v441, 1.0
      %v458 = vadd.f32 %v442, 1.0
      %v459 = vadd.f32 %v443, 1.0
      %v460 = vadd.f32 %v444, 1.0
      %v461 = vadd.f32 %v445, 1.0
      %v462 = vadd.f32 %v446, 1.0
      %v463 = vadd.f32 %v447, 1.0
      %v464 = vadd.f32 %v448, 1.0
      %v465 = vadd.f32 %v449, 1.0
      %v466 = vadd.f32 %v450, 1.0
      %v467 = vadd.f32 %v451, 1.0
      %v468 = vmul.f32 %v452, 0.5
      %v469 = vmul.f32 %v453, 0.5
      %v470 = vmul.f32 %v454, 0.5
      %v471 = vmul.f32 %v455, 0.5
      %v472 = vmul.f32 %v456, 0.5
      %v473 = vmul.f32 %v457, 0.5
      %v474 = vmul.f32 %v458, 0.5
      %v475 = vmul.f32 %v459, 0.5
      %v476 = vmul.f32 %v460, 0.5
      %v477 = vmul.f32 %v461, 0.5
      %v478 = vmul.f32 %v462, 0.5
      %v479 = vmul.f32 %v463, 0.5
      %v480 = vmul.f32 %v464, 0.5
      %v481 = vmul.f32 %v465, 0.5
      %v482 = vmul.f32 %v466, 0.5
      %v483 = vmul.f32 %v467, 0.5
      %v484 = vmul.f32 %v290, %v468
      %v485 = vmul.f32 %v309, %v469
      %v486 = vmul.f32 %v328, %v470
      %v487 = vmul.f32 %v347, %v471
      %v488 = vmul.f32 %v292, %v472
      %v489 = vmul.f32 %v311, %v473
      %v490 = vmul.f32 %v330, %v474
      %v491 = vmul.f32 %v349, %v475
      %v492 = vmul.f32 %v295, %v476
      %v493 = vmul.f32 %v314, %v477
      %v494 = vmul.f32 %v333, %v478
      %v495 = vmul.f32 %v352, %v479
      %v496 = vmul.f32 %v297, %v480
      %v497 = vmul.f32 %v316, %v481
      %v498 = vmul.f32 %v335, %v482
      %v499 = vmul.f32 %v354, %v483
      %v500 = vpack.c.bf16 %v485, %v484
      %v501 = vpack.c.bf16 %v487, %v486
      %v502 = vpack.c.bf16 %v489, %v488
      %v503 = vpack.c.bf16 %v491, %v490
      %v504 = vpack.c.bf16 %v493, %v492
      %v505 = vpack.c.bf16 %v495, %v494
      %v506 = vpack.c.bf16 %v497, %v496
      %v507 = vpack.c.bf16 %v499, %v498
      %508 = vst [vmem:[%s208] sm:$0xff] %v500
      %509 = vst [vmem:[%s208 + $0x8] sm:$0xff] %v501
      %510 = vst [vmem:[%s208 + $0x10] sm:$0xff] %v502
      %511 = vst [vmem:[%s208 + $0x18] sm:$0xff] %v503
      %512 = vst [vmem:[%s208 + $0x20] sm:$0xff] %v504
      %513 = vst [vmem:[%s208 + $0x28] sm:$0xff] %v505
      %514 = vst [vmem:[%s208 + $0x30] sm:$0xff] %v506
      %515 = vst [vmem:[%s208 + $0x38] sm:$0xff] %v507
      %s516 = smul.u32 4, %s19
      %p517 = scmp.lt.s32.totalorder %s18, 1
      %s518 = scalar_select %p517, %s18, 1
      %p519 = scmp.lt.s32.totalorder %s516, 3
      %s520 = scalar_select %p519, %s516, 3
      %s521 = smul.addr %s518, 16
      %s522 = sadd.s32 %s520, %s521
      %s523 = smul.addr %s522, 4
      %s524 = scalar_lea.vmem %s3, %s523
      // Predicated region
      $region33: #{mdblock_forward.6} parent=31 // pred_check
        %p525 = pneg %p116
      $region34: #{mdblock_forward.6} parent=31 // pred_check_branch
        %527 = sbr.rel (%p525) target = $region36
      $region35: #{mdblock_forward.6} parent=31 // pred_region
        %s528 = smul.u32 4, %s19
      $region36: #{mdblock_forward.6} parent=31 // pred_fallthru
        _
    $region32: #{mdblock_forward.6} parent=5 // pred_fallthru
      _
    %p529 = scmp.le.s32.totalorder 2, %s9
    // Predicated region
    $region37: #{mdblock_forward.6} parent=5 // pred_check
      %p530 = pneg %p529
    $region38: #{mdblock_forward.6} parent=5 // pred_check_branch
      %532 = sbr.rel (%p530) target = $region40
    $region39: #{mdblock_forward.6} parent=5 // pred_region
      %s533 = ssub.s32 %s9, 2
      // Predicated region
      $region41: #{mdblock_forward.6} parent=39 // pred_check
        %p534 = pneg %p122
      $region42: #{mdblock_forward.6} parent=39 // pred_check_branch
        %536 = sbr.rel (%p534) target = $region44
      $region43: #{mdblock_forward.6} parent=39 // pred_region
        %s537 = smul.u32 4, %s21
        %p538 = scmp.lt.s32.totalorder %s20, 1
        %s539 = scalar_select %p538, %s20, 1
        %p540 = scmp.lt.s32.totalorder %s537, 3
        %s541 = scalar_select %p540, %s537, 3
        %s542 = smul.addr %s539, 16
        %s543 = sadd.s32 %s541, %s542
        %s544 = smul.addr %s543, 4
        %s545 = scalar_lea.vmem %s3, %s544
      $region44: #{mdblock_forward.6} parent=39 // pred_fallthru
        _
    $region40: #{mdblock_forward.6} parent=5 // pred_fallthru
      _
  $region6: #{mdblock_forward.6} parent=0 // loop_footer
    %s13 = sadd.s32 1, %s9
  $region7: #{mdblock_forward.6} parent=0 // loop_footer_branch
    %8 = sbr.rel target = $region3
  $region8: #{mdblock_forward.6} parent=0 // loop_exit
    _

// kernel: mdblock_forward.7
$region0: #{mdblock_forward.7}
  #allocation0 [shape = 'u32[]', space=smem, size = 0x4, offset = 0x4, fixed_abs, tag = 'smem constant byte address 0x4 - core index']
  #allocation1 [shape = 'u32[72,128]{1,0:T(1,128)}', space=vmem, size = 0x9000, scoped, tag = 'internal scratch']
  %s0 = inlined_call_operand.vmem [shape: bf16[32,32], index: 0, kind: input, shape index: {}]
  %s1 = inlined_call_operand.vmem [shape: f32[32,1], index: 1, kind: input, shape index: {}]
  %s2 = inlined_call_operand.vmem [shape: bf16[32,32], index: 2, kind: input, shape index: {}]
  %s3 = inlined_call_operand.vmem [shape: f32[32,1], index: 3, kind: input, shape index: {}]
  %s4 = inlined_call_operand.vmem [shape: f32[32,1], index: 4, kind: input, shape index: {}]
  %s5 = inlined_call_operand.vmem [shape: bf16[2,32,512], index: 5, kind: input, shape index: {}]
  %s6 = inlined_call_operand.vmem [shape: f32[2,32,512], index: 6, kind: input, shape index: {}]
  %s7 = inlined_call_operand.vmem [shape: f32[2,32,512], index: 7, kind: input, shape index: {}]
  %s8 = inlined_call_operand.vmem [shape: f32[2,32,512], index: 8, kind: output, shape index: {0}]
  %s9 = inlined_call_operand.vmem [shape: f32[2,1,32,1], index: 9, kind: output, shape index: {1}]
  %s10 = inlined_call_operand.vmem [shape: f32[2,1,32,1], index: 10, kind: output, shape index: {2}]
  %11 = xla_tuple %s8, %s9, %s10
  %s12 = sld [smem:[#allocation0]]
  $region81: #{mdblock_forward.7} parent=0
    _
  %s14 = ssub.s32 1, %s12
  %s15 = scalar_select 0, %s14, %s12
  loop: start=0, step=1, limit=4
  $region2: #{mdblock_forward.7} parent=0 // loop_pre_header
    _
  $region3: #{mdblock_forward.7} parent=0 // loop_header
    %s17 = sphi 0, %s21
    %p18 = scmp.ge.s32.totalorder %s17, 4
    %s24 = sphi 0, %s36
    %s25 = sphi 0, %s32
    %s26 = sphi 0, %s24
    %s27 = sphi 0, %s25
    %s28 = sphi 0, %s26
    %s29 = sphi 0, %s27
    %s37 = sphi 0, %s37
    %s39 = sphi 0, %s37
    %s40 = sphi 0, %s39
    %s54 = sphi 0, %s40
    %s58 = sphi 0, %s58
    %s60 = sphi 0, %s58
    %s61 = sphi 0, %s60
    %s75 = sphi 0, %s61
    %s79 = sphi 0, %s79
    %s81 = sphi 0, %s79
    %s82 = sphi 0, %s81
    %s96 = sphi 0, %s82
    %s100 = sphi 0, %s100
    %s102 = sphi 0, %s100
    %s103 = sphi 0, %s102
    %s117 = sphi 0, %s103
    %s121 = sphi 0, %s121
    %s123 = sphi 0, %s121
    %s124 = sphi 0, %s123
    %s138 = sphi 0, %s124
    %s146 = sphi 0, %s148
    %s149 = sphi 0, %s146
    %s150 = sphi 0, %s149
    %s166 = sphi 0, %s150
    %s174 = sphi 0, %s176
    %s177 = sphi 0, %s174
    %s178 = sphi 0, %s177
    %s194 = sphi 0, %s178
    %s202 = sphi 0, %s204
    %s205 = sphi 0, %s202
    %s206 = sphi 0, %s205
    %s222 = sphi 0, %s206
    %s230 = sphi 0, %s232
    %s233 = sphi 0, %s230
    %s234 = sphi 0, %s233
    %s250 = sphi 0, %s234
    %s258 = sphi 0, %s260
    %s261 = sphi 0, %s258
    %s262 = sphi 0, %s261
    %s278 = sphi 0, %s262
    %s286 = sphi 0, %s288
    %s289 = sphi 0, %s286
    %s290 = sphi 0, %s289
    %s306 = sphi 0, %s290
  $region4: #{mdblock_forward.7} parent=0 // loop_header_branch
    %20 = sbr.rel (%p18) target = $region8
  $region5: #{mdblock_forward.7} parent=0 // loop_body
    %s22 = ssub.s32 %s17, 1
    %s23 = ssub.s32 %s17, 2
    %s30 = sadd.s32 1, %s25
    %p31 = scmp.ge.s32.totalorder %s30, 1
    %s32 = scalar_select %p31, 0, %s30
    %s33 = sadd.s32 1, %s24
    %s34 = scalar_select %p31, %s33, %s24
    %p35 = scmp.ge.s32.totalorder %s34, 2
    %s36 = scalar_select %p35, 0, %s34
    %s38 = sadd.s32 %s37, 1
    %p41 = scmp.eq.s32.totalorder %s17, 1
    %p42 = scmp.ne.s32.totalorder %s37, %s39
    %p43 = scmp.eq.s32.totalorder %s17, 0
    %p44 = por %p42, %p43
    %p45 = scmp.ne.s32.totalorder %s37, %s39
    %p46 = scmp.eq.s32.totalorder %s22, 1
    %p47 = por %p45, %p46
    %p48 = scmp.ne.s32.totalorder %s39, %s40
    %p49 = scmp.eq.s32.totalorder %s22, 0
    %p50 = por %p48, %p49
    %p51 = scmp.ne.s32.totalorder %s39, %s40
    %p52 = scmp.eq.s32.totalorder %s23, 1
    %p53 = por %p51, %p52
    %p55 = scmp.ne.s32.totalorder %s40, %s54
    %p56 = scmp.eq.s32.totalorder %s23, 0
    %p57 = por %p55, %p56
    %s59 = sadd.s32 %s58, 1
    %p62 = scmp.eq.s32.totalorder %s17, 1
    %p63 = scmp.ne.s32.totalorder %s58, %s60
    %p64 = scmp.eq.s32.totalorder %s17, 0
    %p65 = por %p63, %p64
    %p66 = scmp.ne.s32.totalorder %s58, %s60
    %p67 = scmp.eq.s32.totalorder %s22, 1
    %p68 = por %p66, %p67
    %p69 = scmp.ne.s32.totalorder %s60, %s61
    %p70 = scmp.eq.s32.totalorder %s22, 0
    %p71 = por %p69, %p70
    %p72 = scmp.ne.s32.totalorder %s60, %s61
    %p73 = scmp.eq.s32.totalorder %s23, 1
    %p74 = por %p72, %p73
    %p76 = scmp.ne.s32.totalorder %s61, %s75
    %p77 = scmp.eq.s32.totalorder %s23, 0
    %p78 = por %p76, %p77
    %s80 = sadd.s32 %s79, 1
    %p83 = scmp.eq.s32.totalorder %s17, 1
    %p84 = scmp.ne.s32.totalorder %s79, %s81
    %p85 = scmp.eq.s32.totalorder %s17, 0
    %p86 = por %p84, %p85
    %p87 = scmp.ne.s32.totalorder %s79, %s81
    %p88 = scmp.eq.s32.totalorder %s22, 1
    %p89 = por %p87, %p88
    %p90 = scmp.ne.s32.totalorder %s81, %s82
    %p91 = scmp.eq.s32.totalorder %s22, 0
    %p92 = por %p90, %p91
    %p93 = scmp.ne.s32.totalorder %s81, %s82
    %p94 = scmp.eq.s32.totalorder %s23, 1
    %p95 = por %p93, %p94
    %p97 = scmp.ne.s32.totalorder %s82, %s96
    %p98 = scmp.eq.s32.totalorder %s23, 0
    %p99 = por %p97, %p98
    %s101 = sadd.s32 %s100, 1
    %p104 = scmp.eq.s32.totalorder %s17, 1
    %p105 = scmp.ne.s32.totalorder %s100, %s102
    %p106 = scmp.eq.s32.totalorder %s17, 0
    %p107 = por %p105, %p106
    %p108 = scmp.ne.s32.totalorder %s100, %s102
    %p109 = scmp.eq.s32.totalorder %s22, 1
    %p110 = por %p108, %p109
    %p111 = scmp.ne.s32.totalorder %s102, %s103
    %p112 = scmp.eq.s32.totalorder %s22, 0
    %p113 = por %p111, %p112
    %p114 = scmp.ne.s32.totalorder %s102, %s103
    %p115 = scmp.eq.s32.totalorder %s23, 1
    %p116 = por %p114, %p115
    %p118 = scmp.ne.s32.totalorder %s103, %s117
    %p119 = scmp.eq.s32.totalorder %s23, 0
    %p120 = por %p118, %p119
    %s122 = sadd.s32 %s121, 1
    %p125 = scmp.eq.s32.totalorder %s17, 1
    %p126 = scmp.ne.s32.totalorder %s121, %s123
    %p127 = scmp.eq.s32.totalorder %s17, 0
    %p128 = por %p126, %p127
    %p129 = scmp.ne.s32.totalorder %s121, %s123
    %p130 = scmp.eq.s32.totalorder %s22, 1
    %p131 = por %p129, %p130
    %p132 = scmp.ne.s32.totalorder %s123, %s124
    %p133 = scmp.eq.s32.totalorder %s22, 0
    %p134 = por %p132, %p133
    %p135 = scmp.ne.s32.totalorder %s123, %s124
    %p136 = scmp.eq.s32.totalorder %s23, 1
    %p137 = por %p135, %p136
    %p139 = scmp.ne.s32.totalorder %s124, %s138
    %p140 = scmp.eq.s32.totalorder %s23, 0
    %p141 = por %p139, %p140
    %s142 = ssub.s32 %s24, %s36
    %s143 = ssub.s32 %s25, %s32
    %s144 = sor.u32 %s142, %s143
    %p145 = scmp.eq.s32.totalorder %s144, 0
    %s147 = sadd.s32 %s146, 1
    %s148 = scalar_select %p145, %s146, %s147
    %p151 = pneg %p145
    %p152 = scmp.eq.s32.totalorder %s17, 1
    %p153 = por %p151, %p152
    %p154 = scmp.ne.s32.totalorder %s146, %s149
    %p155 = scmp.eq.s32.totalorder %s17, 0
    %p156 = por %p154, %p155
    %p157 = scmp.ne.s32.totalorder %s146, %s149
    %p158 = scmp.eq.s32.totalorder %s22, 1
    %p159 = por %p157, %p158
    %p160 = scmp.ne.s32.totalorder %s149, %s150
    %p161 = scmp.eq.s32.totalorder %s22, 0
    %p162 = por %p160, %p161
    %p163 = scmp.ne.s32.totalorder %s149, %s150
    %p164 = scmp.eq.s32.totalorder %s23, 1
    %p165 = por %p163, %p164
    %p167 = scmp.ne.s32.totalorder %s150, %s166
    %p168 = scmp.eq.s32.totalorder %s23, 0
    %p169 = por %p167, %p168
    %s170 = ssub.s32 %s24, %s36
    %s171 = ssub.s32 %s25, %s32
    %s172 = sor.u32 %s170, %s171
    %p173 = scmp.eq.s32.totalorder %s172, 0
    %s175 = sadd.s32 %s174, 1
    %s176 = scalar_select %p173, %s174, %s175
    %p179 = pneg %p173
    %p180 = scmp.eq.s32.totalorder %s17, 1
    %p181 = por %p179, %p180
    %p182 = scmp.ne.s32.totalorder %s174, %s177
    %p183 = scmp.eq.s32.totalorder %s17, 0
    %p184 = por %p182, %p183
    %p185 = scmp.ne.s32.totalorder %s174, %s177
    %p186 = scmp.eq.s32.totalorder %s22, 1
    %p187 = por %p185, %p186
    %p188 = scmp.ne.s32.totalorder %s177, %s178
    %p189 = scmp.eq.s32.totalorder %s22, 0
    %p190 = por %p188, %p189
    %p191 = scmp.ne.s32.totalorder %s177, %s178
    %p192 = scmp.eq.s32.totalorder %s23, 1
    %p193 = por %p191, %p192
    %p195 = scmp.ne.s32.totalorder %s178, %s194
    %p196 = scmp.eq.s32.totalorder %s23, 0
    %p197 = por %p195, %p196
    %s198 = ssub.s32 %s24, %s36
    %s199 = ssub.s32 %s25, %s32
    %s200 = sor.u32 %s198, %s199
    %p201 = scmp.eq.s32.totalorder %s200, 0
    %s203 = sadd.s32 %s202, 1
    %s204 = scalar_select %p201, %s202, %s203
    %p207 = pneg %p201
    %p208 = scmp.eq.s32.totalorder %s17, 1
    %p209 = por %p207, %p208
    %p210 = scmp.ne.s32.totalorder %s202, %s205
    %p211 = scmp.eq.s32.totalorder %s17, 0
    %p212 = por %p210, %p211
    %p213 = scmp.ne.s32.totalorder %s202, %s205
    %p214 = scmp.eq.s32.totalorder %s22, 1
    %p215 = por %p213, %p214
    %p216 = scmp.ne.s32.totalorder %s205, %s206
    %p217 = scmp.eq.s32.totalorder %s22, 0
    %p218 = por %p216, %p217
    %p219 = scmp.ne.s32.totalorder %s205, %s206
    %p220 = scmp.eq.s32.totalorder %s23, 1
    %p221 = por %p219, %p220
    %p223 = scmp.ne.s32.totalorder %s206, %s222
    %p224 = scmp.eq.s32.totalorder %s23, 0
    %p225 = por %p223, %p224
    %s226 = ssub.s32 %s24, %s36
    %s227 = ssub.s32 %s25, %s32
    %s228 = sor.u32 %s226, %s227
    %p229 = scmp.eq.s32.totalorder %s228, 0
    %s231 = sadd.s32 %s230, 1
    %s232 = scalar_select %p229, %s230, %s231
    %p235 = pneg %p229
    %p236 = scmp.eq.s32.totalorder %s17, 1
    %p237 = por %p235, %p236
    %p238 = scmp.ne.s32.totalorder %s230, %s233
    %p239 = scmp.eq.s32.totalorder %s17, 0
    %p240 = por %p238, %p239
    %p241 = scmp.ne.s32.totalorder %s230, %s233
    %p242 = scmp.eq.s32.totalorder %s22, 1
    %p243 = por %p241, %p242
    %p244 = scmp.ne.s32.totalorder %s233, %s234
    %p245 = scmp.eq.s32.totalorder %s22, 0
    %p246 = por %p244, %p245
    %p247 = scmp.ne.s32.totalorder %s233, %s234
    %p248 = scmp.eq.s32.totalorder %s23, 1
    %p249 = por %p247, %p248
    %p251 = scmp.ne.s32.totalorder %s234, %s250
    %p252 = scmp.eq.s32.totalorder %s23, 0
    %p253 = por %p251, %p252
    %s254 = ssub.s32 %s24, %s36
    %s255 = ssub.s32 %s25, %s32
    %s256 = sor.u32 %s254, %s255
    %p257 = scmp.eq.s32.totalorder %s256, 0
    %s259 = sadd.s32 %s258, 1
    %s260 = scalar_select %p257, %s258, %s259
    %p263 = pneg %p257
    %p264 = scmp.eq.s32.totalorder %s17, 1
    %p265 = por %p263, %p264
    %p266 = scmp.ne.s32.totalorder %s258, %s261
    %p267 = scmp.eq.s32.totalorder %s17, 0
    %p268 = por %p266, %p267
    %p269 = scmp.ne.s32.totalorder %s258, %s261
    %p270 = scmp.eq.s32.totalorder %s22, 1
    %p271 = por %p269, %p270
    %p272 = scmp.ne.s32.totalorder %s261, %s262
    %p273 = scmp.eq.s32.totalorder %s22, 0
    %p274 = por %p272, %p273
    %p275 = scmp.ne.s32.totalorder %s261, %s262
    %p276 = scmp.eq.s32.totalorder %s23, 1
    %p277 = por %p275, %p276
    %p279 = scmp.ne.s32.totalorder %s262, %s278
    %p280 = scmp.eq.s32.totalorder %s23, 0
    %p281 = por %p279, %p280
    %s282 = ssub.s32 %s24, %s36
    %s283 = ssub.s32 %s25, %s32
    %s284 = sor.u32 %s282, %s283
    %p285 = scmp.eq.s32.totalorder %s284, 0
    %s287 = sadd.s32 %s286, 1
    %s288 = scalar_select %p285, %s286, %s287
    %p291 = pneg %p285
    %p292 = scmp.eq.s32.totalorder %s17, 1
    %p293 = por %p291, %p292
    %p294 = scmp.ne.s32.totalorder %s286, %s289
    %p295 = scmp.eq.s32.totalorder %s17, 0
    %p296 = por %p294, %p295
    %p297 = scmp.ne.s32.totalorder %s286, %s289
    %p298 = scmp.eq.s32.totalorder %s22, 1
    %p299 = por %p297, %p298
    %p300 = scmp.ne.s32.totalorder %s289, %s290
    %p301 = scmp.eq.s32.totalorder %s22, 0
    %p302 = por %p300, %p301
    %p303 = scmp.ne.s32.totalorder %s289, %s290
    %p304 = scmp.eq.s32.totalorder %s23, 1
    %p305 = por %p303, %p304
    %p307 = scmp.ne.s32.totalorder %s290, %s306
    %p308 = scmp.eq.s32.totalorder %s23, 0
    %p309 = por %p307, %p308
    %p310 = scmp.le.s32.totalorder 1, %s17
    %p311 = scmp.lt.s32.totalorder %s17, 3
    %p312 = pnand %p310, %p311
    %p313 = pneg %p312
    // Predicated region
    $region9: #{mdblock_forward.7} parent=5 // pred_check
      _
    $region10: #{mdblock_forward.7} parent=5 // pred_check_branch
      %315 = sbr.rel (%p312) target = $region12
    $region11: #{mdblock_forward.7} parent=5 // pred_region
      %s316 = ssub.s32 %s17, 1
      // Predicated region
      $region13: #{mdblock_forward.7} parent=11 // pred_check
        %p317 = pneg %p50
      $region14: #{mdblock_forward.7} parent=11 // pred_check_branch
        %319 = sbr.rel (%p317) target = $region16
      $region15: #{mdblock_forward.7} parent=11 // pred_region
        _
      $region16: #{mdblock_forward.7} parent=11 // pred_fallthru
        _
      // Predicated region
      $region17: #{mdblock_forward.7} parent=11 // pred_check
        %p320 = pneg %p71
      $region18: #{mdblock_forward.7} parent=11 // pred_check_branch
        %322 = sbr.rel (%p320) target = $region20
      $region19: #{mdblock_forward.7} parent=11 // pred_region
        _
      $region20: #{mdblock_forward.7} parent=11 // pred_fallthru
        _
      // Predicated region
      $region21: #{mdblock_forward.7} parent=11 // pred_check
        %p323 = pneg %p92
      $region22: #{mdblock_forward.7} parent=11 // pred_check_branch
        %325 = sbr.rel (%p323) target = $region24
      $region23: #{mdblock_forward.7} parent=11 // pred_region
        _
      $region24: #{mdblock_forward.7} parent=11 // pred_fallthru
        _
      // Predicated region
      $region25: #{mdblock_forward.7} parent=11 // pred_check
        %p326 = pneg %p113
      $region26: #{mdblock_forward.7} parent=11 // pred_check_branch
        %328 = sbr.rel (%p326) target = $region28
      $region27: #{mdblock_forward.7} parent=11 // pred_region
        _
      $region28: #{mdblock_forward.7} parent=11 // pred_fallthru
        _
      // Predicated region
      $region29: #{mdblock_forward.7} parent=11 // pred_check
        %p329 = pneg %p134
      $region30: #{mdblock_forward.7} parent=11 // pred_check_branch
        %331 = sbr.rel (%p329) target = $region32
      $region31: #{mdblock_forward.7} parent=11 // pred_region
        _
      $region32: #{mdblock_forward.7} parent=11 // pred_fallthru
        _
    $region12: #{mdblock_forward.7} parent=5 // pred_fallthru
      _
    %p332 = scmp.lt.s32.totalorder %s17, 2
    // Predicated region
    $region33: #{mdblock_forward.7} parent=5 // pred_check
      %p333 = pneg %p332
    $region34: #{mdblock_forward.7} parent=5 // pred_check_branch
      %335 = sbr.rel (%p333) target = $region36
    $region35: #{mdblock_forward.7} parent=5 // pred_region
      // Predicated region
      $region37: #{mdblock_forward.7} parent=35 // pred_check
        %p336 = pneg %p156
      $region38: #{mdblock_forward.7} parent=35 // pred_check_branch
        %338 = sbr.rel (%p336) target = $region40
      $region39: #{mdblock_forward.7} parent=35 // pred_region
        %s339 = smul.u32 4, %s25
        %p340 = scmp.lt.s32.totalorder %s24, 1
        %s341 = scalar_select %p340, %s24, 1
        %p342 = scmp.lt.s32.totalorder %s339, 3
        %s343 = scalar_select %p342, %s339, 3
        %s344 = smul.addr %s341, 16
        %s345 = sadd.s32 %s343, %s344
        %s346 = smul.addr %s345, 4
        %s347 = scalar_lea.vmem %s5, %s346
        %s348 = smul.u32 4, %s25
      $region40: #{mdblock_forward.7} parent=35 // pred_fallthru
        _
      // Predicated region
      $region41: #{mdblock_forward.7} parent=35 // pred_check
        %p349 = pneg %p184
      $region42: #{mdblock_forward.7} parent=35 // pred_check_branch
        %351 = sbr.rel (%p349) target = $region44
      $region43: #{mdblock_forward.7} parent=35 // pred_region
        %s352 = smul.u32 4, %s25
        %p353 = scmp.lt.s32.totalorder %s24, 1
        %s354 = scalar_select %p353, %s24, 1
        %p355 = scmp.lt.s32.totalorder %s352, 3
        %s356 = scalar_select %p355, %s352, 3
        %s357 = smul.addr %s354, 16
        %s358 = sadd.s32 %s356, %s357
        %s359 = smul.addr %s358, 8
        %s360 = scalar_lea.vmem %s6, %s359
        %s361 = smul.u32 4, %s25
      $region44: #{mdblock_forward.7} parent=35 // pred_fallthru
        _
      // Predicated region
      $region45: #{mdblock_forward.7} parent=35 // pred_check
        %p362 = pneg %p212
      $region46: #{mdblock_forward.7} parent=35 // pred_check_branch
        %364 = sbr.rel (%p362) target = $region48
      $region47: #{mdblock_forward.7} parent=35 // pred_region
        %s365 = smul.u32 4, %s25
        %p366 = scmp.lt.s32.totalorder %s24, 1
        %s367 = scalar_select %p366, %s24, 1
        %p368 = scmp.lt.s32.totalorder %s365, 3
        %s369 = scalar_select %p368, %s365, 3
        %s370 = smul.addr %s367, 16
        %s371 = sadd.s32 %s369, %s370
        %s372 = smul.addr %s371, 8
        %s373 = scalar_lea.vmem %s7, %s372
        %s374 = smul.u32 4, %s25
      $region48: #{mdblock_forward.7} parent=35 // pred_fallthru
        _
    $region36: #{mdblock_forward.7} parent=5 // pred_fallthru
      _
    %p375 = scmp.le.s32.totalorder 1, %s17
    %p376 = scmp.lt.s32.totalorder %s17, 3
    %p377 = pnand %p375, %p376
    %p378 = pneg %p377
    // Predicated region
    $region49: #{mdblock_forward.7} parent=5 // pred_check
      _
    $region50: #{mdblock_forward.7} parent=5 // pred_check_branch
      %380 = sbr.rel (%p377) target = $region52
    $region51: #{mdblock_forward.7} parent=5 // pred_region
      %s381 = ssub.s32 %s17, 1
      %p382 = pneg %p50
      %p383 = pneg %p47
      %p384 = pneg %p71
      %p385 = pneg %p68
      %p386 = pneg %p92
      %p387 = pneg %p89
      %p388 = pneg %p113
      %p389 = pneg %p110
      %p390 = pneg %p134
      %p391 = pneg %p131
      %s392 = smul.u32 4, %s27
      %p393 = scmp.lt.s32.totalorder %s26, 1
      %s394 = scalar_select %p393, %s26, 1
      %p395 = scmp.lt.s32.totalorder %s392, 3
      %s396 = scalar_select %p395, %s392, 3
      %s397 = smul.addr %s394, 16
      %s398 = sadd.s32 %s396, %s397
      %s399 = smul.addr %s398, 4
      %s400 = scalar_lea.vmem %s5, %s399
      %p401 = pneg %p162
      %p402 = pneg %p159
      %s403 = smul.u32 4, %s27
      %p404 = scmp.lt.s32.totalorder %s26, 1
      %s405 = scalar_select %p404, %s26, 1
      %p406 = scmp.lt.s32.totalorder %s403, 3
      %s407 = scalar_select %p406, %s403, 3
      %s408 = smul.addr %s405, 16
      %s409 = sadd.s32 %s407, %s408
      %s410 = smul.addr %s409, 8
      %s411 = scalar_lea.vmem %s6, %s410
      %p412 = pneg %p190
      %p413 = pneg %p187
      %s414 = smul.u32 4, %s27
      %p415 = scmp.lt.s32.totalorder %s26, 1
      %s416 = scalar_select %p415, %s26, 1
      %p417 = scmp.lt.s32.totalorder %s414, 3
      %s418 = scalar_select %p417, %s414, 3
      %s419 = smul.addr %s416, 16
      %s420 = sadd.s32 %s418, %s419
      %s421 = smul.addr %s420, 8
      %s422 = scalar_lea.vmem %s7, %s421
      %p423 = pneg %p218
      %p424 = pneg %p215
      %p425 = pneg %p246
      %p426 = pneg %p243
      %s427 = smul.u32 4, %s27
      %p428 = scmp.lt.s32.totalorder %s26, 1
      %s429 = scalar_select %p428, %s26, 1
      %p430 = scmp.lt.s32.totalorder %s427, 3
      %s431 = scalar_select %p430, %s427, 3
      %s432 = smul.addr %s429, 16
      %s433 = sadd.s32 %s431, %s432
      %s434 = smul.addr %s433, 8
      %s435 = scalar_lea.vmem %s8, %s434
      %p436 = pneg %p274
      %p437 = pneg %p271
      %p438 = scmp.lt.s32.totalorder %s26, 1
      %s439 = scalar_select %p438, %s26, 1
      %p440 = scmp.lt.s32.totalorder %s27, 0
      %s441 = scalar_select %p440, %s27, 0
      %s442 = smul.addr %s441, 4
      %s443 = smul.addr %s439, 4
      %s444 = sadd.s32 %s442, %s443
      %s445 = smul.addr %s444, 8
      %s446 = scalar_lea.vmem %s9, %s445
      %p447 = pneg %p302
      %p448 = pneg %p299
      %p449 = scmp.lt.s32.totalorder %s26, 1
      %s450 = scalar_select %p449, %s26, 1
      %p451 = scmp.lt.s32.totalorder %s27, 0
      %s452 = scalar_select %p451, %s27, 0
      %s453 = smul.addr %s452, 4
      %s454 = smul.addr %s450, 4
      %s455 = sadd.s32 %s453, %s454
      %s456 = smul.addr %s455, 8
      %s457 = scalar_lea.vmem %s10, %s456
      %s458 = smul.u32 4, %s27
      %p459 = scmp.lt.s32.totalorder %s26, 1
      %s460 = scalar_select %p459, %s26, 1
      %p461 = scmp.lt.s32.totalorder %s458, 3
      %s462 = scalar_select %p461, %s458, 3
      %s463 = smul.addr %s460, 16
      %s464 = sadd.s32 %s462, %s463
      %s465 = smul.addr %s464, 4
      %s466 = scalar_lea.vmem %s5, %s465
      %s467 = smul.u32 4, %s27
      %s468 = smul.u32 4, %s27
      %p469 = scmp.lt.s32.totalorder %s26, 1
      %s470 = scalar_select %p469, %s26, 1
      %p471 = scmp.lt.s32.totalorder %s468, 3
      %s472 = scalar_select %p471, %s468, 3
      %s473 = smul.addr %s470, 16
      %s474 = sadd.s32 %s472, %s473
      %s475 = smul.addr %s474, 8
      %s476 = scalar_lea.vmem %s6, %s475
      %s477 = smul.u32 4, %s27
      %s478 = smul.u32 4, %s27
      %p479 = scmp.lt.s32.totalorder %s26, 1
      %s480 = scalar_select %p479, %s26, 1
      %p481 = scmp.lt.s32.totalorder %s478, 3
      %s482 = scalar_select %p481, %s478, 3
      %s483 = smul.addr %s480, 16
      %s484 = sadd.s32 %s482, %s483
      %s485 = smul.addr %s484, 8
      %s486 = scalar_lea.vmem %s7, %s485
      %s487 = smul.u32 4, %s27
      %s488 = smul.u32 4, %s27
      %p489 = scmp.lt.s32.totalorder %s26, 1
      %s490 = scalar_select %p489, %s26, 1
      %p491 = scmp.lt.s32.totalorder %s488, 3
      %s492 = scalar_select %p491, %s488, 3
      %s493 = smul.addr %s490, 16
      %s494 = sadd.s32 %s492, %s493
      %s495 = smul.addr %s494, 8
      %s496 = scalar_lea.vmem %s8, %s495
      %s497 = smul.u32 4, %s27
      %p498 = scmp.lt.s32.totalorder %s26, 1
      %s499 = scalar_select %p498, %s26, 1
      %p500 = scmp.lt.s32.totalorder %s27, 0
      %s501 = scalar_select %p500, %s27, 0
      %s502 = smul.addr %s501, 4
      %s503 = smul.addr %s499, 4
      %s504 = sadd.s32 %s502, %s503
      %s505 = smul.addr %s504, 8
      %s506 = scalar_lea.vmem %s9, %s505
      %p507 = scmp.lt.s32.totalorder %s26, 1
      %s508 = scalar_select %p507, %s26, 1
      %p509 = scmp.lt.s32.totalorder %s27, 0
      %s510 = scalar_select %p509, %s27, 0
      %s511 = smul.addr %s510, 4
      %s512 = smul.addr %s508, 4
      %s513 = sadd.s32 %s511, %s512
      %s514 = smul.addr %s513, 8
      %s515 = scalar_lea.vmem %s10, %s514
      %v517 = vld [vmem:[%s0] sm:$0xf]
      %v518 = vld [vmem:[%s0 + $0x4] sm:$0xf]
      %v519 = vld [vmem:[%s0 + $0x8] sm:$0xf]
      %v520 = vld [vmem:[%s0 + $0xc] sm:$0xf]
      %v521 = vld [vmem:[%s476] sm:$0xff]
      %v522 = vld [vmem:[%s476 + $0x8] sm:$0xff]
      %v523 = vld [vmem:[%s476 + $0x10] sm:$0xff]
      %v524 = vld [vmem:[%s476 + $0x18] sm:$0xff]
      %v525 = vld [vmem:[%s476 + $0x20] sm:$0xff]
      %v526 = vld [vmem:[%s476 + $0x28] sm:$0xff]
      %v527 = vld [vmem:[%s476 + $0x30] sm:$0xff]
      %v528 = vld [vmem:[%s476 + $0x38] sm:$0xff]
      %v529 = vld [vmem:[%s476 + $0x40] sm:$0xff]
      %v530 = vld [vmem:[%s476 + $0x48] sm:$0xff]
      %v531 = vld [vmem:[%s476 + $0x50] sm:$0xff]
      %v532 = vld [vmem:[%s476 + $0x58] sm:$0xff]
      %v533 = vld [vmem:[%s476 + $0x60] sm:$0xff]
      %v534 = vld [vmem:[%s476 + $0x68] sm:$0xff]
      %v535 = vld [vmem:[%s476 + $0x70] sm:$0xff]
      %v536 = vld [vmem:[%s476 + $0x78] sm:$0xff]
      %v537 = vpack.c.bf16 %v525, %v521
      %v538 = vpack.c.bf16 %v526, %v522
      %v539 = vpack.c.bf16 %v527, %v523
      %v540 = vpack.c.bf16 %v528, %v524
      %v541 = vpack.c.bf16 %v533, %v529
      %v542 = vpack.c.bf16 %v534, %v530
      %v543 = vpack.c.bf16 %v535, %v531
      %v544 = vpack.c.bf16 %v536, %v532
      %v545 = vld [vmem:[%s1] sm:$0xff]
      %v546 = vld [vmem:[%s1 + $0x8] sm:$0xff]
      %v547 = vld [vmem:[%s1 + $0x10] sm:$0xff]
      %v548 = vld [vmem:[%s1 + $0x18] sm:$0xff]
      %550 = vset.pattern.permute.xlu0 0
      %551 = vperm.xlu0 %550, %v545
      %v552 = vpop.permute.xlu0 %551
      %555 = vset.pattern.permute.xlu0 0
      %556 = vperm.xlu0 %555, %v546
      %v557 = vpop.permute.xlu0 %556
      %560 = vset.pattern.permute.xlu0 0
      %561 = vperm.xlu0 %560, %v547
      %v562 = vpop.permute.xlu0 %561
      %565 = vset.pattern.permute.xlu0 0
      %566 = vperm.xlu0 %565, %v548
      %v567 = vpop.permute.xlu0 %566
      %v573 = vunpack.c.l.b16 %v517
      %v574 = vunpack.c.l.b16 %v518
      %v575 = vunpack.c.l.b16 %v519
      %v576 = vunpack.c.l.b16 %v520
      %v577 = vpack.c.b16 %v574, %v573
      %v578 = vpack.c.b16 %v576, %v575
      %vm579 = vcmask 261120
      %v581 = vsel %vm579, %v577, 0
      %v584 = vsel %vm579, %v578, 0
      %586 = vmatpush.bf16.msra.mxu0 0
      %587 = vmatpush.bf16.msra.mxu0 0
      %588 = vmatpush.bf16.msra.mxu0 0
      %589 = vmatpush.bf16.msra.mxu0 0
      %590 = vmatpush.bf16.msra.mxu0 0
      %591 = vmatpush.bf16.msra.mxu0 0
      %592 = vmatpush.bf16.msra.mxu0 %v541
      %593 = vmatpush.bf16.msra.mxu0 %v537
      %594 = vmatmul.bf16.gmra.mxu0 %v581
      %v595 = vpop.f32.mrf.mxu0
      %v596 = vadd.f32 %v552, %v595
      %v597 = vpop.f32.mrf.mxu0
      %v598 = vadd.f32 %v557, %v597
      %599 = vmatmul.bf16.gmra.mxu0 %v584
      %v600 = vpop.f32.mrf.mxu0
      %v601 = vadd.f32 %v562, %v600
      %v602 = vpop.f32.mrf.mxu0
      %v603 = vadd.f32 %v567, %v602
      %604 = vdwg.mxu0
      %605 = vmatpush.bf16.msra.mxu0 0
      %606 = vmatpush.bf16.msra.mxu0 0
      %607 = vmatpush.bf16.msra.mxu0 0
      %608 = vmatpush.bf16.msra.mxu0 0
      %609 = vmatpush.bf16.msra.mxu0 0
      %610 = vmatpush.bf16.msra.mxu0 0
      %611 = vmatpush.bf16.msra.mxu0 %v542
      %612 = vmatpush.bf16.msra.mxu0 %v538
      %613 = vmatmul.bf16.gmra.mxu0 %v581
      %v614 = vpop.f32.mrf.mxu0
      %v615 = vadd.f32 %v552, %v614
      %v616 = vpop.f32.mrf.mxu0
      %v617 = vadd.f32 %v557, %v616
      %618 = vmatmul.bf16.gmra.mxu0 %v584
      %v619 = vpop.f32.mrf.mxu0
      %v620 = vadd.f32 %v562, %v619
      %v621 = vpop.f32.mrf.mxu0
      %v622 = vadd.f32 %v567, %v621
      %623 = vdwg.mxu0
      %624 = vmatpush.bf16.msra.mxu0 0
      %625 = vmatpush.bf16.msra.mxu0 0
      %626 = vmatpush.bf16.msra.mxu0 0
      %627 = vmatpush.bf16.msra.mxu0 0
      %628 = vmatpush.bf16.msra.mxu0 0
      %629 = vmatpush.bf16.msra.mxu0 0
      %630 = vmatpush.bf16.msra.mxu0 %v543
      %631 = vmatpush.bf16.msra.mxu0 %v539
      %632 = vmatmul.bf16.gmra.mxu0 %v581
      %v633 = vpop.f32.mrf.mxu0
      %v634 = vadd.f32 %v552, %v633
      %v635 = vpop.f32.mrf.mxu0
      %v636 = vadd.f32 %v557, %v635
      %637 = vmatmul.bf16.gmra.mxu0 %v584
      %v638 = vpop.f32.mrf.mxu0
      %v639 = vadd.f32 %v562, %v638
      %v640 = vpop.f32.mrf.mxu0
      %v641 = vadd.f32 %v567, %v640
      %642 = vdwg.mxu0
      %643 = vmatpush.bf16.msra.mxu0 0
      %644 = vmatpush.bf16.msra.mxu0 0
      %645 = vmatpush.bf16.msra.mxu0 0
      %646 = vmatpush.bf16.msra.mxu0 0
      %647 = vmatpush.bf16.msra.mxu0 0
      %648 = vmatpush.bf16.msra.mxu0 0
      %649 = vmatpush.bf16.msra.mxu0 %v544
      %650 = vmatpush.bf16.msra.mxu0 %v540
      %651 = vmatmul.bf16.gmra.mxu0 %v581
      %v652 = vpop.f32.mrf.mxu0
      %v653 = vadd.f32 %v552, %v652
      %v654 = vpop.f32.mrf.mxu0
      %v655 = vadd.f32 %v557, %v654
      %656 = vmatmul.bf16.gmra.mxu0 %v584
      %v657 = vpop.f32.mrf.mxu0
      %v658 = vadd.f32 %v562, %v657
      %v659 = vpop.f32.mrf.mxu0
      %v660 = vadd.f32 %v567, %v659
      %661 = vdwg.mxu0
      %v662 = vld [vmem:[%s466] sm:$0xff]
      %v663 = vld [vmem:[%s466 + $0x8] sm:$0xff]
      %v664 = vld [vmem:[%s466 + $0x10] sm:$0xff]
      %v665 = vld [vmem:[%s466 + $0x18] sm:$0xff]
      %v666 = vld [vmem:[%s466 + $0x20] sm:$0xff]
      %v667 = vld [vmem:[%s466 + $0x28] sm:$0xff]
      %v668 = vld [vmem:[%s466 + $0x30] sm:$0xff]
      %v669 = vld [vmem:[%s466 + $0x38] sm:$0xff]
      %v670 = vunpack.c.l.bf16 %v662
      %v671 = vunpack.c.h.bf16 %v662
      %v672 = vunpack.c.l.bf16 %v663
      %v673 = vunpack.c.h.bf16 %v663
      %v674 = vunpack.c.l.bf16 %v664
      %v675 = vunpack.c.h.bf16 %v664
      %v676 = vunpack.c.l.bf16 %v665
      %v677 = vunpack.c.h.bf16 %v665
      %v678 = vunpack.c.l.bf16 %v666
      %v679 = vunpack.c.h.bf16 %v666
      %v680 = vunpack.c.l.bf16 %v667
      %v681 = vunpack.c.h.bf16 %v667
      %v682 = vunpack.c.l.bf16 %v668
      %v683 = vunpack.c.h.bf16 %v668
      %v684 = vunpack.c.l.bf16 %v669
      %v685 = vunpack.c.h.bf16 %v669
      %v686 = vmul.f32 %v670, %v596
      %v687 = vmul.f32 %v671, %v615
      %v688 = vmul.f32 %v672, %v634
      %v689 = vmul.f32 %v673, %v653
      %v690 = vmul.f32 %v674, %v598
      %v691 = vmul.f32 %v675, %v617
      %v692 = vmul.f32 %v676, %v636
      %v693 = vmul.f32 %v677, %v655
      %v694 = vmul.f32 %v678, %v601
      %v695 = vmul.f32 %v679, %v620
      %v696 = vmul.f32 %v680, %v639
      %v697 = vmul.f32 %v681, %v658
      %v698 = vmul.f32 %v682, %v603
      %v699 = vmul.f32 %v683, %v622
      %v700 = vmul.f32 %v684, %v641
      %v701 = vmul.f32 %v685, %v660
      %v702 = vpack.c.bf16 %v690, %v686
      %v703 = vpack.c.bf16 %v691, %v687
      %v704 = vpack.c.bf16 %v692, %v688
      %v705 = vpack.c.bf16 %v693, %v689
      %v706 = vpack.c.bf16 %v698, %v694
      %v707 = vpack.c.bf16 %v699, %v695
      %v708 = vpack.c.bf16 %v700, %v696
      %v709 = vpack.c.bf16 %v701, %v697
      %v710 = vld [vmem:[%s2] sm:$0xf]
      %v711 = vld [vmem:[%s2 + $0x4] sm:$0xf]
      %v712 = vld [vmem:[%s2 + $0x8] sm:$0xf]
      %v713 = vld [vmem:[%s2 + $0xc] sm:$0xf]
      %v718 = vunpack.c.l.b16 %v710
      %v719 = vunpack.c.l.b16 %v711
      %v720 = vunpack.c.l.b16 %v712
      %v721 = vunpack.c.l.b16 %v713
      %v722 = vpack.c.b16 %v719, %v718
      %v723 = vpack.c.b16 %v721, %v720
      %v725 = vsel %vm579, %v722, 0
      %v728 = vsel %vm579, %v723, 0
      %730 = vmatpush.bf16.msra.mxu0 0
      %731 = vmatpush.bf16.msra.mxu0 0
      %732 = vmatpush.bf16.msra.mxu0 0
      %733 = vmatpush.bf16.msra.mxu0 0
      %734 = vmatpush.bf16.msra.mxu0 0
      %735 = vmatpush.bf16.msra.mxu0 0
      %736 = vmatpush.bf16.msra.mxu0 %v706
      %737 = vmatpush.bf16.msra.mxu0 %v702
      %738 = vmatmul.bf16.gmra.mxu0 %v725
      %v739 = vpop.f32.mrf.mxu0
      %v740 = vadd.f32 0.0, %v739
      %v741 = vpop.f32.mrf.mxu0
      %v742 = vadd.f32 0.0, %v741
      %743 = vmatmul.bf16.gmra.mxu0 %v728
      %v744 = vpop.f32.mrf.mxu0
      %v745 = vadd.f32 0.0, %v744
      %v746 = vpop.f32.mrf.mxu0
      %v747 = vadd.f32 0.0, %v746
      %748 = vdwg.mxu0
      %749 = vmatpush.bf16.msra.mxu0 0
      %750 = vmatpush.bf16.msra.mxu0 0
      %751 = vmatpush.bf16.msra.mxu0 0
      %752 = vmatpush.bf16.msra.mxu0 0
      %753 = vmatpush.bf16.msra.mxu0 0
      %754 = vmatpush.bf16.msra.mxu0 0
      %755 = vmatpush.bf16.msra.mxu0 %v707
      %756 = vmatpush.bf16.msra.mxu0 %v703
      %757 = vmatmul.bf16.gmra.mxu0 %v725
      %v758 = vpop.f32.mrf.mxu0
      %v759 = vadd.f32 0.0, %v758
      %v760 = vpop.f32.mrf.mxu0
      %v761 = vadd.f32 0.0, %v760
      %762 = vmatmul.bf16.gmra.mxu0 %v728
      %v763 = vpop.f32.mrf.mxu0
      %v764 = vadd.f32 0.0, %v763
      %v765 = vpop.f32.mrf.mxu0
      %v766 = vadd.f32 0.0, %v765
      %767 = vdwg.mxu0
      %768 = vmatpush.bf16.msra.mxu0 0
      %769 = vmatpush.bf16.msra.mxu0 0
      %770 = vmatpush.bf16.msra.mxu0 0
      %771 = vmatpush.bf16.msra.mxu0 0
      %772 = vmatpush.bf16.msra.mxu0 0
      %773 = vmatpush.bf16.msra.mxu0 0
      %774 = vmatpush.bf16.msra.mxu0 %v708
      %775 = vmatpush.bf16.msra.mxu0 %v704
      %776 = vmatmul.bf16.gmra.mxu0 %v725
      %v777 = vpop.f32.mrf.mxu0
      %v778 = vadd.f32 0.0, %v777
      %v779 = vpop.f32.mrf.mxu0
      %v780 = vadd.f32 0.0, %v779
      %781 = vmatmul.bf16.gmra.mxu0 %v728
      %v782 = vpop.f32.mrf.mxu0
      %v783 = vadd.f32 0.0, %v782
      %v784 = vpop.f32.mrf.mxu0
      %v785 = vadd.f32 0.0, %v784
      %786 = vdwg.mxu0
      %787 = vmatpush.bf16.msra.mxu0 0
      %788 = vmatpush.bf16.msra.mxu0 0
      %789 = vmatpush.bf16.msra.mxu0 0
      %790 = vmatpush.bf16.msra.mxu0 0
      %791 = vmatpush.bf16.msra.mxu0 0
      %792 = vmatpush.bf16.msra.mxu0 0
      %793 = vmatpush.bf16.msra.mxu0 %v709
      %794 = vmatpush.bf16.msra.mxu0 %v705
      %795 = vmatmul.bf16.gmra.mxu0 %v725
      %v796 = vpop.f32.mrf.mxu0
      %v797 = vadd.f32 0.0, %v796
      %v798 = vpop.f32.mrf.mxu0
      %v799 = vadd.f32 0.0, %v798
      %800 = vmatmul.bf16.gmra.mxu0 %v728
      %v801 = vpop.f32.mrf.mxu0
      %v802 = vadd.f32 0.0, %v801
      %v803 = vpop.f32.mrf.mxu0
      %v804 = vadd.f32 0.0, %v803
      %805 = vdwg.mxu0
      %v806 = vld [vmem:[%s3] sm:$0xff]
      %v807 = vld [vmem:[%s3 + $0x8] sm:$0xff]
      %v808 = vld [vmem:[%s3 + $0x10] sm:$0xff]
      %v809 = vld [vmem:[%s3 + $0x18] sm:$0xff]
      %v810 = vld [vmem:[%s486] sm:$0xff]
      %v811 = vld [vmem:[%s486 + $0x8] sm:$0xff]
      %v812 = vld [vmem:[%s486 + $0x10] sm:$0xff]
      %v813 = vld [vmem:[%s486 + $0x18] sm:$0xff]
      %v814 = vld [vmem:[%s486 + $0x20] sm:$0xff]
      %v815 = vld [vmem:[%s486 + $0x28] sm:$0xff]
      %v816 = vld [vmem:[%s486 + $0x30] sm:$0xff]
      %v817 = vld [vmem:[%s486 + $0x38] sm:$0xff]
      %v818 = vld [vmem:[%s486 + $0x40] sm:$0xff]
      %v819 = vld [vmem:[%s486 + $0x48] sm:$0xff]
      %v820 = vld [vmem:[%s486 + $0x50] sm:$0xff]
      %v821 = vld [vmem:[%s486 + $0x58] sm:$0xff]
      %v822 = vld [vmem:[%s486 + $0x60] sm:$0xff]
      %v823 = vld [vmem:[%s486 + $0x68] sm:$0xff]
      %v824 = vld [vmem:[%s486 + $0x70] sm:$0xff]
      %v825 = vld [vmem:[%s486 + $0x78] sm:$0xff]
      %827 = vset.pattern.permute.xlu0 0
      %828 = vperm.xlu0 %827, %v806
      %v829 = vpop.permute.xlu0 %828
      %832 = vset.pattern.permute.xlu0 0
      %833 = vperm.xlu0 %832, %v807
      %v834 = vpop.permute.xlu0 %833
      %837 = vset.pattern.permute.xlu0 0
      %838 = vperm.xlu0 %837, %v808
      %v839 = vpop.permute.xlu0 %838
      %842 = vset.pattern.permute.xlu0 0
      %843 = vperm.xlu0 %842, %v809
      %v844 = vpop.permute.xlu0 %843
      %v846 = vmul.f32 %v829, %v810
      %v847 = vmul.f32 %v829, %v811
      %v848 = vmul.f32 %v829, %v812
      %v849 = vmul.f32 %v829, %v813
      %v850 = vmul.f32 %v834, %v814
      %v851 = vmul.f32 %v834, %v815
      %v852 = vmul.f32 %v834, %v816
      %v853 = vmul.f32 %v834, %v817
      %v854 = vmul.f32 %v839, %v818
      %v855 = vmul.f32 %v839, %v819
      %v856 = vmul.f32 %v839, %v820
      %v857 = vmul.f32 %v839, %v821
      %v858 = vmul.f32 %v844, %v822
      %v859 = vmul.f32 %v844, %v823
      %v860 = vmul.f32 %v844, %v824
      %v861 = vmul.f32 %v844, %v825
      %v862 = vld [vmem:[%s4] sm:$0xff]
      %v863 = vld [vmem:[%s4 + $0x8] sm:$0xff]
      %v864 = vld [vmem:[%s4 + $0x10] sm:$0xff]
      %v865 = vld [vmem:[%s4 + $0x18] sm:$0xff]
      %867 = vset.pattern.permute.xlu0 0
      %868 = vperm.xlu0 %867, %v862
      %v869 = vpop.permute.xlu0 %868
      %872 = vset.pattern.permute.xlu0 0
      %873 = vperm.xlu0 %872, %v863
      %v874 = vpop.permute.xlu0 %873
      %877 = vset.pattern.permute.xlu0 0
      %878 = vperm.xlu0 %877, %v864
      %v879 = vpop.permute.xlu0 %878
      %882 = vset.pattern.permute.xlu0 0
      %883 = vperm.xlu0 %882, %v865
      %v884 = vpop.permute.xlu0 %883
      %v886 = vadd.f32 %v846, %v869
      %v887 = vadd.f32 %v847, %v869
      %v888 = vadd.f32 %v848, %v869
      %v889 = vadd.f32 %v849, %v869
      %v890 = vadd.f32 %v850, %v874
      %v891 = vadd.f32 %v851, %v874
      %v892 = vadd.f32 %v852, %v874
      %v893 = vadd.f32 %v853, %v874
      %v894 = vadd.f32 %v854, %v879
      %v895 = vadd.f32 %v855, %v879
      %v896 = vadd.f32 %v856, %v879
      %v897 = vadd.f32 %v857, %v879
      %v898 = vadd.f32 %v858, %v884
      %v899 = vadd.f32 %v859, %v884
      %v900 = vadd.f32 %v860, %v884
      %v901 = vadd.f32 %v861, %v884
      %v902 = vadd.f32 %v886, %v740
      %v903 = vadd.f32 %v887, %v759
      %v904 = vadd.f32 %v888, %v778
      %v905 = vadd.f32 %v889, %v797
      %v906 = vadd.f32 %v890, %v742
      %v907 = vadd.f32 %v891, %v761
      %v908 = vadd.f32 %v892, %v780
      %v909 = vadd.f32 %v893, %v799
      %v910 = vadd.f32 %v894, %v745
      %v911 = vadd.f32 %v895, %v764
      %v912 = vadd.f32 %v896, %v783
      %v913 = vadd.f32 %v897, %v802
      %v914 = vadd.f32 %v898, %v747
      %v915 = vadd.f32 %v899, %v766
      %v916 = vadd.f32 %v900, %v785
      %v917 = vadd.f32 %v901, %v804
      %918 = vst [vmem:[%s496] sm:$0xff] %v902
      %919 = vst [vmem:[%s496 + $0x8] sm:$0xff] %v903
      %920 = vst [vmem:[%s496 + $0x10] sm:$0xff] %v904
      %921 = vst [vmem:[%s496 + $0x18] sm:$0xff] %v905
      %922 = vst [vmem:[%s496 + $0x20] sm:$0xff] %v906
      %923 = vst [vmem:[%s496 + $0x28] sm:$0xff] %v907
      %924 = vst [vmem:[%s496 + $0x30] sm:$0xff] %v908
      %925 = vst [vmem:[%s496 + $0x38] sm:$0xff] %v909
      %926 = vst [vmem:[%s496 + $0x40] sm:$0xff] %v910
      %927 = vst [vmem:[%s496 + $0x48] sm:$0xff] %v911
      %928 = vst [vmem:[%s496 + $0x50] sm:$0xff] %v912
      %929 = vst [vmem:[%s496 + $0x58] sm:$0xff] %v913
      %930 = vst [vmem:[%s496 + $0x60] sm:$0xff] %v914
      %931 = vst [vmem:[%s496 + $0x68] sm:$0xff] %v915
      %932 = vst [vmem:[%s496 + $0x70] sm:$0xff] %v916
      %933 = vst [vmem:[%s496 + $0x78] sm:$0xff] %v917
      %v934 = vadd.f32 %v902, %v903
      %v935 = vadd.f32 %v934, %v904
      %v936 = vadd.f32 %v935, %v905
      %937 = vadd.xlane.f32.xlu0 %v936
      %v938 = vpop.xlane.xlu0 %937
      %v939 = vadd.f32 %v906, %v907
      %v940 = vadd.f32 %v939, %v908
      %v941 = vadd.f32 %v940, %v909
      %942 = vadd.xlane.f32.xlu0 %v941
      %v943 = vpop.xlane.xlu0 %942
      %v944 = vadd.f32 %v910, %v911
      %v945 = vadd.f32 %v944, %v912
      %v946 = vadd.f32 %v945, %v913
      %947 = vadd.xlane.f32.xlu0 %v946
      %v948 = vpop.xlane.xlu0 %947
      %v949 = vadd.f32 %v914, %v915
      %v950 = vadd.f32 %v949, %v916
      %v951 = vadd.f32 %v950, %v917
      %952 = vadd.xlane.f32.xlu0 %v951
      %v953 = vpop.xlane.xlu0 %952
      %vm954 = vcmask 7168
      %955 = vst.msk [vmem:[%s506] sm:$0xff] %vm954, %v938
      %956 = vst.msk [vmem:[%s506 + $0x8] sm:$0xff] %vm954, %v943
      %957 = vst.msk [vmem:[%s506 + $0x10] sm:$0xff] %vm954, %v948
      %958 = vst.msk [vmem:[%s506 + $0x18] sm:$0xff] %vm954, %v953
      %v959 = vmul.f32 %v902, %v902
      %v960 = vmul.f32 %v903, %v903
      %v961 = vmul.f32 %v904, %v904
      %v962 = vmul.f32 %v905, %v905
      %v963 = vmul.f32 %v906, %v906
      %v964 = vmul.f32 %v907, %v907
      %v965 = vmul.f32 %v908, %v908
      %v966 = vmul.f32 %v909, %v909
      %v967 = vmul.f32 %v910, %v910
      %v968 = vmul.f32 %v911, %v911
      %v969 = vmul.f32 %v912, %v912
      %v970 = vmul.f32 %v913, %v913
      %v971 = vmul.f32 %v914, %v914
      %v972 = vmul.f32 %v915, %v915
      %v973 = vmul.f32 %v916, %v916
      %v974 = vmul.f32 %v917, %v917
      %v975 = vadd.f32 %v959, %v960
      %v976 = vadd.f32 %v975, %v961
      %v977 = vadd.f32 %v976, %v962
      %978 = vadd.xlane.f32.xlu0 %v977
      %v979 = vpop.xlane.xlu0 %978
      %v980 = vadd.f32 %v963, %v964
      %v981 = vadd.f32 %v980, %v965
      %v982 = vadd.f32 %v981, %v966
      %983 = vadd.xlane.f32.xlu0 %v982
      %v984 = vpop.xlane.xlu0 %983
      %v985 = vadd.f32 %v967, %v968
      %v986 = vadd.f32 %v985, %v969
      %v987 = vadd.f32 %v986, %v970
      %988 = vadd.xlane.f32.xlu0 %v987
      %v989 = vpop.xlane.xlu0 %988
      %v990 = vadd.f32 %v971, %v972
      %v991 = vadd.f32 %v990, %v973
      %v992 = vadd.f32 %v991, %v974
      %993 = vadd.xlane.f32.xlu0 %v992
      %v994 = vpop.xlane.xlu0 %993
      %995 = vst.msk [vmem:[%s515] sm:$0xff] %vm954, %v979
      %996 = vst.msk [vmem:[%s515 + $0x8] sm:$0xff] %vm954, %v984
      %997 = vst.msk [vmem:[%s515 + $0x10] sm:$0xff] %vm954, %v989
      %998 = vst.msk [vmem:[%s515 + $0x18] sm:$0xff] %vm954, %v994
      %s999 = smul.u32 4, %s27
      %p1000 = scmp.lt.s32.totalorder %s26, 1
      %s1001 = scalar_select %p1000, %s26, 1
      %p1002 = scmp.lt.s32.totalorder %s999, 3
      %s1003 = scalar_select %p1002, %s999, 3
      %s1004 = smul.addr %s1001, 16
      %s1005 = sadd.s32 %s1003, %s1004
      %s1006 = smul.addr %s1005, 8
      %s1007 = scalar_lea.vmem %s8, %s1006
      %p1008 = scmp.lt.s32.totalorder %s26, 1
      %s1009 = scalar_select %p1008, %s26, 1
      %p1010 = scmp.lt.s32.totalorder %s27, 0
      %s1011 = scalar_select %p1010, %s27, 0
      %s1012 = smul.addr %s1011, 4
      %s1013 = smul.addr %s1009, 4
      %s1014 = sadd.s32 %s1012, %s1013
      %s1015 = smul.addr %s1014, 8
      %s1016 = scalar_lea.vmem %s9, %s1015
      %p1017 = scmp.lt.s32.totalorder %s26, 1
      %s1018 = scalar_select %p1017, %s26, 1
      %p1019 = scmp.lt.s32.totalorder %s27, 0
      %s1020 = scalar_select %p1019, %s27, 0
      %s1021 = smul.addr %s1020, 4
      %s1022 = smul.addr %s1018, 4
      %s1023 = sadd.s32 %s1021, %s1022
      %s1024 = smul.addr %s1023, 8
      %s1025 = scalar_lea.vmem %s10, %s1024
      // Predicated region
      $region53: #{mdblock_forward.7} parent=51 // pred_check
        %p1026 = pneg %p243
      $region54: #{mdblock_forward.7} parent=51 // pred_check_branch
        %1028 = sbr.rel (%p1026) target = $region56
      $region55: #{mdblock_forward.7} parent=51 // pred_region
        %s1029 = smul.u32 4, %s27
      $region56: #{mdblock_forward.7} parent=51 // pred_fallthru
        _
      // Predicated region
      $region57: #{mdblock_forward.7} parent=51 // pred_check
        %p1030 = pneg %p271
      $region58: #{mdblock_forward.7} parent=51 // pred_check_branch
        %1032 = sbr.rel (%p1030) target = $region60
      $region59: #{mdblock_forward.7} parent=51 // pred_region
        _
      $region60: #{mdblock_forward.7} parent=51 // pred_fallthru
        _
      // Predicated region
      $region61: #{mdblock_forward.7} parent=51 // pred_check
        %p1033 = pneg %p299
      $region62: #{mdblock_forward.7} parent=51 // pred_check_branch
        %1035 = sbr.rel (%p1033) target = $region64
      $region63: #{mdblock_forward.7} parent=51 // pred_region
        _
      $region64: #{mdblock_forward.7} parent=51 // pred_fallthru
        _
    $region52: #{mdblock_forward.7} parent=5 // pred_fallthru
      _
    %p1036 = scmp.le.s32.totalorder 2, %s17
    // Predicated region
    $region65: #{mdblock_forward.7} parent=5 // pred_check
      %p1037 = pneg %p1036
    $region66: #{mdblock_forward.7} parent=5 // pred_check_branch
      %1039 = sbr.rel (%p1037) target = $region68
    $region67: #{mdblock_forward.7} parent=5 // pred_region
      %s1040 = ssub.s32 %s17, 2
      // Predicated region
      $region69: #{mdblock_forward.7} parent=67 // pred_check
        %p1041 = pneg %p249
      $region70: #{mdblock_forward.7} parent=67 // pred_check_branch
        %1043 = sbr.rel (%p1041) target = $region72
      $region71: #{mdblock_forward.7} parent=67 // pred_region
        %s1044 = smul.u32 4, %s29
        %p1045 = scmp.lt.s32.totalorder %s28, 1
        %s1046 = scalar_select %p1045, %s28, 1
        %p1047 = scmp.lt.s32.totalorder %s1044, 3
        %s1048 = scalar_select %p1047, %s1044, 3
        %s1049 = smul.addr %s1046, 16
        %s1050 = sadd.s32 %s1048, %s1049
        %s1051 = smul.addr %s1050, 8
        %s1052 = scalar_lea.vmem %s8, %s1051
      $region72: #{mdblock_forward.7} parent=67 // pred_fallthru
        _
      // Predicated region
      $region73: #{mdblock_forward.7} parent=67 // pred_check
        %p1053 = pneg %p277
      $region74: #{mdblock_forward.7} parent=67 // pred_check_branch
        %1055 = sbr.rel (%p1053) target = $region76
      $region75: #{mdblock_forward.7} parent=67 // pred_region
        %p1056 = scmp.lt.s32.totalorder %s28, 1
        %s1057 = scalar_select %p1056, %s28, 1
        %p1058 = scmp.lt.s32.totalorder %s29, 0
        %s1059 = scalar_select %p1058, %s29, 0
        %s1060 = smul.addr %s1059, 4
        %s1061 = smul.addr %s1057, 4
        %s1062 = sadd.s32 %s1060, %s1061
        %s1063 = smul.addr %s1062, 8
        %s1064 = scalar_lea.vmem %s9, %s1063
      $region76: #{mdblock_forward.7} parent=67 // pred_fallthru
        _
      // Predicated region
      $region77: #{mdblock_forward.7} parent=67 // pred_check
        %p1065 = pneg %p305
      $region78: #{mdblock_forward.7} parent=67 // pred_check_branch
        %1067 = sbr.rel (%p1065) target = $region80
      $region79: #{mdblock_forward.7} parent=67 // pred_region
        %p1068 = scmp.lt.s32.totalorder %s28, 1
        %s1069 = scalar_select %p1068, %s28, 1
        %p1070 = scmp.lt.s32.totalorder %s29, 0
        %s1071 = scalar_select %p1070, %s29, 0
        %s1072 = smul.addr %s1071, 4
        %s1073 = smul.addr %s1069, 4
        %s1074 = sadd.s32 %s1072, %s1073
        %s1075 = smul.addr %s1074, 8
        %s1076 = scalar_lea.vmem %s10, %s1075
      $region80: #{mdblock_forward.7} parent=67 // pred_fallthru
        _
    $region68: #{mdblock_forward.7} parent=5 // pred_fallthru
      _
  $region6: #{mdblock_forward.7} parent=0 // loop_footer
    %s21 = sadd.s32 1, %s17
  $region7: #{mdblock_forward.7} parent=0 // loop_footer_branch
    %16 = sbr.rel target = $region3
  $region8: #{mdblock_forward.7} parent=0 // loop_exit
    _

// kernel: mdblock_forward.8
$region0: #{mdblock_forward.8}
  #allocation0 [shape = 'u32[]', space=smem, size = 0x4, offset = 0x4, fixed_abs, tag = 'smem constant byte address 0x4 - core index']
  #allocation1 [shape = 'u32[72,128]{1,0:T(1,128)}', space=vmem, size = 0x9000, scoped, tag = 'internal scratch']
  %s0 = inlined_call_operand.vmem [shape: bf16[128,32], index: 0, kind: input, shape index: {}]
  %s1 = inlined_call_operand.vmem [shape: f32[128,1], index: 1, kind: input, shape index: {}]
  %s2 = inlined_call_operand.vmem [shape: f32[2,32,512], index: 2, kind: input, shape index: {}]
  %s3 = inlined_call_operand.vmem [shape: bf16[2,128,512], index: 3, kind: output, shape index: {}]
  %s4 = sld [smem:[#allocation0]]
  $region45: #{mdblock_forward.8} parent=0
    _
  %s6 = ssub.s32 1, %s4
  %s7 = scalar_select 0, %s6, %s4
  loop: start=0, step=1, limit=4
  $region2: #{mdblock_forward.8} parent=0 // loop_pre_header
    _
  $region3: #{mdblock_forward.8} parent=0 // loop_header
    %s9 = sphi 0, %s13
    %p10 = scmp.ge.s32.totalorder %s9, 4
    %s16 = sphi 0, %s28
    %s17 = sphi 0, %s24
    %s18 = sphi 0, %s16
    %s19 = sphi 0, %s17
    %s20 = sphi 0, %s18
    %s21 = sphi 0, %s19
    %s29 = sphi 0, %s29
    %s31 = sphi 0, %s29
    %s32 = sphi 0, %s31
    %s46 = sphi 0, %s32
    %s50 = sphi 0, %s50
    %s52 = sphi 0, %s50
    %s53 = sphi 0, %s52
    %s67 = sphi 0, %s53
    %s75 = sphi 0, %s77
    %s78 = sphi 0, %s75
    %s79 = sphi 0, %s78
    %s95 = sphi 0, %s79
    %s103 = sphi 0, %s105
    %s106 = sphi 0, %s103
    %s107 = sphi 0, %s106
    %s123 = sphi 0, %s107
  $region4: #{mdblock_forward.8} parent=0 // loop_header_branch
    %12 = sbr.rel (%p10) target = $region8
  $region5: #{mdblock_forward.8} parent=0 // loop_body
    %s14 = ssub.s32 %s9, 1
    %s15 = ssub.s32 %s9, 2
    %s22 = sadd.s32 1, %s17
    %p23 = scmp.ge.s32.totalorder %s22, 1
    %s24 = scalar_select %p23, 0, %s22
    %s25 = sadd.s32 1, %s16
    %s26 = scalar_select %p23, %s25, %s16
    %p27 = scmp.ge.s32.totalorder %s26, 2
    %s28 = scalar_select %p27, 0, %s26
    %s30 = sadd.s32 %s29, 1
    %p33 = scmp.eq.s32.totalorder %s9, 1
    %p34 = scmp.ne.s32.totalorder %s29, %s31
    %p35 = scmp.eq.s32.totalorder %s9, 0
    %p36 = por %p34, %p35
    %p37 = scmp.ne.s32.totalorder %s29, %s31
    %p38 = scmp.eq.s32.totalorder %s14, 1
    %p39 = por %p37, %p38
    %p40 = scmp.ne.s32.totalorder %s31, %s32
    %p41 = scmp.eq.s32.totalorder %s14, 0
    %p42 = por %p40, %p41
    %p43 = scmp.ne.s32.totalorder %s31, %s32
    %p44 = scmp.eq.s32.totalorder %s15, 1
    %p45 = por %p43, %p44
    %p47 = scmp.ne.s32.totalorder %s32, %s46
    %p48 = scmp.eq.s32.totalorder %s15, 0
    %p49 = por %p47, %p48
    %s51 = sadd.s32 %s50, 1
    %p54 = scmp.eq.s32.totalorder %s9, 1
    %p55 = scmp.ne.s32.totalorder %s50, %s52
    %p56 = scmp.eq.s32.totalorder %s9, 0
    %p57 = por %p55, %p56
    %p58 = scmp.ne.s32.totalorder %s50, %s52
    %p59 = scmp.eq.s32.totalorder %s14, 1
    %p60 = por %p58, %p59
    %p61 = scmp.ne.s32.totalorder %s52, %s53
    %p62 = scmp.eq.s32.totalorder %s14, 0
    %p63 = por %p61, %p62
    %p64 = scmp.ne.s32.totalorder %s52, %s53
    %p65 = scmp.eq.s32.totalorder %s15, 1
    %p66 = por %p64, %p65
    %p68 = scmp.ne.s32.totalorder %s53, %s67
    %p69 = scmp.eq.s32.totalorder %s15, 0
    %p70 = por %p68, %p69
    %s71 = ssub.s32 %s16, %s28
    %s72 = ssub.s32 %s17, %s24
    %s73 = sor.u32 %s71, %s72
    %p74 = scmp.eq.s32.totalorder %s73, 0
    %s76 = sadd.s32 %s75, 1
    %s77 = scalar_select %p74, %s75, %s76
    %p80 = pneg %p74
    %p81 = scmp.eq.s32.totalorder %s9, 1
    %p82 = por %p80, %p81
    %p83 = scmp.ne.s32.totalorder %s75, %s78
    %p84 = scmp.eq.s32.totalorder %s9, 0
    %p85 = por %p83, %p84
    %p86 = scmp.ne.s32.totalorder %s75, %s78
    %p87 = scmp.eq.s32.totalorder %s14, 1
    %p88 = por %p86, %p87
    %p89 = scmp.ne.s32.totalorder %s78, %s79
    %p90 = scmp.eq.s32.totalorder %s14, 0
    %p91 = por %p89, %p90
    %p92 = scmp.ne.s32.totalorder %s78, %s79
    %p93 = scmp.eq.s32.totalorder %s15, 1
    %p94 = por %p92, %p93
    %p96 = scmp.ne.s32.totalorder %s79, %s95
    %p97 = scmp.eq.s32.totalorder %s15, 0
    %p98 = por %p96, %p97
    %s99 = ssub.s32 %s16, %s28
    %s100 = ssub.s32 %s17, %s24
    %s101 = sor.u32 %s99, %s100
    %p102 = scmp.eq.s32.totalorder %s101, 0
    %s104 = sadd.s32 %s103, 1
    %s105 = scalar_select %p102, %s103, %s104
    %p108 = pneg %p102
    %p109 = scmp.eq.s32.totalorder %s9, 1
    %p110 = por %p108, %p109
    %p111 = scmp.ne.s32.totalorder %s103, %s106
    %p112 = scmp.eq.s32.totalorder %s9, 0
    %p113 = por %p111, %p112
    %p114 = scmp.ne.s32.totalorder %s103, %s106
    %p115 = scmp.eq.s32.totalorder %s14, 1
    %p116 = por %p114, %p115
    %p117 = scmp.ne.s32.totalorder %s106, %s107
    %p118 = scmp.eq.s32.totalorder %s14, 0
    %p119 = por %p117, %p118
    %p120 = scmp.ne.s32.totalorder %s106, %s107
    %p121 = scmp.eq.s32.totalorder %s15, 1
    %p122 = por %p120, %p121
    %p124 = scmp.ne.s32.totalorder %s107, %s123
    %p125 = scmp.eq.s32.totalorder %s15, 0
    %p126 = por %p124, %p125
    %p127 = scmp.le.s32.totalorder 1, %s9
    %p128 = scmp.lt.s32.totalorder %s9, 3
    %p129 = pnand %p127, %p128
    %p130 = pneg %p129
    // Predicated region
    $region9: #{mdblock_forward.8} parent=5 // pred_check
      _
    $region10: #{mdblock_forward.8} parent=5 // pred_check_branch
      %132 = sbr.rel (%p129) target = $region12
    $region11: #{mdblock_forward.8} parent=5 // pred_region
      %s133 = ssub.s32 %s9, 1
      // Predicated region
      $region13: #{mdblock_forward.8} parent=11 // pred_check
        %p134 = pneg %p42
      $region14: #{mdblock_forward.8} parent=11 // pred_check_branch
        %136 = sbr.rel (%p134) target = $region16
      $region15: #{mdblock_forward.8} parent=11 // pred_region
        _
      $region16: #{mdblock_forward.8} parent=11 // pred_fallthru
        _
      // Predicated region
      $region17: #{mdblock_forward.8} parent=11 // pred_check
        %p137 = pneg %p63
      $region18: #{mdblock_forward.8} parent=11 // pred_check_branch
        %139 = sbr.rel (%p137) target = $region20
      $region19: #{mdblock_forward.8} parent=11 // pred_region
        _
      $region20: #{mdblock_forward.8} parent=11 // pred_fallthru
        _
    $region12: #{mdblock_forward.8} parent=5 // pred_fallthru
      _
    %p140 = scmp.lt.s32.totalorder %s9, 2
    // Predicated region
    $region21: #{mdblock_forward.8} parent=5 // pred_check
      %p141 = pneg %p140
    $region22: #{mdblock_forward.8} parent=5 // pred_check_branch
      %143 = sbr.rel (%p141) target = $region24
    $region23: #{mdblock_forward.8} parent=5 // pred_region
      // Predicated region
      $region25: #{mdblock_forward.8} parent=23 // pred_check
        %p144 = pneg %p85
      $region26: #{mdblock_forward.8} parent=23 // pred_check_branch
        %146 = sbr.rel (%p144) target = $region28
      $region27: #{mdblock_forward.8} parent=23 // pred_region
        %s147 = smul.u32 4, %s17
        %p148 = scmp.lt.s32.totalorder %s16, 1
        %s149 = scalar_select %p148, %s16, 1
        %p150 = scmp.lt.s32.totalorder %s147, 3
        %s151 = scalar_select %p150, %s147, 3
        %s152 = smul.addr %s149, 16
        %s153 = sadd.s32 %s151, %s152
        %s154 = smul.addr %s153, 8
        %s155 = scalar_lea.vmem %s2, %s154
        %s156 = smul.u32 4, %s17
      $region28: #{mdblock_forward.8} parent=23 // pred_fallthru
        _
    $region24: #{mdblock_forward.8} parent=5 // pred_fallthru
      _
    %p157 = scmp.le.s32.totalorder 1, %s9
    %p158 = scmp.lt.s32.totalorder %s9, 3
    %p159 = pnand %p157, %p158
    %p160 = pneg %p159
    // Predicated region
    $region29: #{mdblock_forward.8} parent=5 // pred_check
      _
    $region30: #{mdblock_forward.8} parent=5 // pred_check_branch
      %162 = sbr.rel (%p159) target = $region32
    $region31: #{mdblock_forward.8} parent=5 // pred_region
      %s163 = ssub.s32 %s9, 1
      %p164 = pneg %p42
      %p165 = pneg %p39
      %p166 = pneg %p63
      %p167 = pneg %p60
      %s168 = smul.u32 4, %s19
      %p169 = scmp.lt.s32.totalorder %s18, 1
      %s170 = scalar_select %p169, %s18, 1
      %p171 = scmp.lt.s32.totalorder %s168, 3
      %s172 = scalar_select %p171, %s168, 3
      %s173 = smul.addr %s170, 16
      %s174 = sadd.s32 %s172, %s173
      %s175 = smul.addr %s174, 8
      %s176 = scalar_lea.vmem %s2, %s175
      %p177 = pneg %p91
      %p178 = pneg %p88
      %p179 = pneg %p119
      %p180 = pneg %p116
      %s181 = smul.u32 4, %s19
      %p182 = scmp.lt.s32.totalorder %s18, 1
      %s183 = scalar_select %p182, %s18, 1
      %p184 = scmp.lt.s32.totalorder %s181, 3
      %s185 = scalar_select %p184, %s181, 3
      %s186 = smul.addr %s183, 64
      %s187 = sadd.s32 %s185, %s186
      %s188 = smul.addr %s187, 4
      %s189 = scalar_lea.vmem %s3, %s188
      %s190 = smul.u32 4, %s19
      %p191 = scmp.lt.s32.totalorder %s18, 1
      %s192 = scalar_select %p191, %s18, 1
      %p193 = scmp.lt.s32.totalorder %s190, 3
      %s194 = scalar_select %p193, %s190, 3
      %s195 = smul.addr %s192, 16
      %s196 = sadd.s32 %s194, %s195
      %s197 = smul.addr %s196, 8
      %s198 = scalar_lea.vmem %s2, %s197
      %s199 = smul.u32 4, %s19
      %s200 = smul.u32 4, %s19
      %p201 = scmp.lt.s32.totalorder %s18, 1
      %s202 = scalar_select %p201, %s18, 1
      %p203 = scmp.lt.s32.totalorder %s200, 3
      %s204 = scalar_select %p203, %s200, 3
      %s205 = smul.addr %s202, 64
      %s206 = sadd.s32 %s204, %s205
      %s207 = smul.addr %s206, 4
      %s208 = scalar_lea.vmem %s3, %s207
      %s209 = smul.u32 4, %s19
      %v211 = vld [vmem:[%s198] sm:$0xff]
      %v212 = vld [vmem:[%s198 + $0x8] sm:$0xff]
      %v213 = vld [vmem:[%s198 + $0x10] sm:$0xff]
      %v214 = vld [vmem:[%s198 + $0x18] sm:$0xff]
      %v215 = vld [vmem:[%s198 + $0x20] sm:$0xff]
      %v216 = vld [vmem:[%s198 + $0x28] sm:$0xff]
      %v217 = vld [vmem:[%s198 + $0x30] sm:$0xff]
      %v218 = vld [vmem:[%s198 + $0x38] sm:$0xff]
      %v219 = vld [vmem:[%s198 + $0x40] sm:$0xff]
      %v220 = vld [vmem:[%s198 + $0x48] sm:$0xff]
      %v221 = vld [vmem:[%s198 + $0x50] sm:$0xff]
      %v222 = vld [vmem:[%s198 + $0x58] sm:$0xff]
      %v223 = vld [vmem:[%s198 + $0x60] sm:$0xff]
      %v224 = vld [vmem:[%s198 + $0x68] sm:$0xff]
      %v225 = vld [vmem:[%s198 + $0x70] sm:$0xff]
      %v226 = vld [vmem:[%s198 + $0x78] sm:$0xff]
      %v227 = vpack.c.bf16 %v215, %v211
      %v228 = vpack.c.bf16 %v216, %v212
      %v229 = vpack.c.bf16 %v217, %v213
      %v230 = vpack.c.bf16 %v218, %v214
      %v231 = vpack.c.bf16 %v223, %v219
      %v232 = vpack.c.bf16 %v224, %v220
      %v233 = vpack.c.bf16 %v225, %v221
      %v234 = vpack.c.bf16 %v226, %v222
      %v235 = vld [vmem:[%s0] sm:$0xf]
      %v236 = vld [vmem:[%s0 + $0x4] sm:$0xf]
      %v237 = vld [vmem:[%s0 + $0x8] sm:$0xf]
      %v238 = vld [vmem:[%s0 + $0xc] sm:$0xf]
      %v239 = vld [vmem:[%s0 + $0x10] sm:$0xf]
      %v240 = vld [vmem:[%s0 + $0x14] sm:$0xf]
      %v241 = vld [vmem:[%s0 + $0x18] sm:$0xf]
      %v242 = vld [vmem:[%s0 + $0x1c] sm:$0xf]
      %v243 = vld [vmem:[%s0 + $0x20] sm:$0xf]
      %v244 = vld [vmem:[%s0 + $0x24] sm:$0xf]
      %v245 = vld [vmem:[%s0 + $0x28] sm:$0xf]
      %v246 = vld [vmem:[%s0 + $0x2c] sm:$0xf]
      %v247 = vld [vmem:[%s0 + $0x30] sm:$0xf]
      %v248 = vld [vmem:[%s0 + $0x34] sm:$0xf]
      %v249 = vld [vmem:[%s0 + $0x38] sm:$0xf]
      %v250 = vld [vmem:[%s0 + $0x3c] sm:$0xf]
      %v251 = vld [vmem:[%s1] sm:$0xff]
      %v252 = vld [vmem:[%s1 + $0x8] sm:$0xff]
      %v253 = vld [vmem:[%s1 + $0x10] sm:$0xff]
      %v254 = vld [vmem:[%s1 + $0x18] sm:$0xff]
      %v255 = vld [vmem:[%s1 + $0x20] sm:$0xff]
      %v256 = vld [vmem:[%s1 + $0x28] sm:$0xff]
      %v257 = vld [vmem:[%s1 + $0x30] sm:$0xff]
      %v258 = vld [vmem:[%s1 + $0x38] sm:$0xff]
      %v259 = vld [vmem:[%s1 + $0x40] sm:$0xff]
      %v260 = vld [vmem:[%s1 + $0x48] sm:$0xff]
      %v261 = vld [vmem:[%s1 + $0x50] sm:$0xff]
      %v262 = vld [vmem:[%s1 + $0x58] sm:$0xff]
      %v263 = vld [vmem:[%s1 + $0x60] sm:$0xff]
      %v264 = vld [vmem:[%s1 + $0x68] sm:$0xff]
      %v265 = vld [vmem:[%s1 + $0x70] sm:$0xff]
      %v266 = vld [vmem:[%s1 + $0x78] sm:$0xff]
      %268 = vset.pattern.permute.xlu0 0
      %269 = vperm.xlu0 %268, %v251
      %v270 = vpop.permute.xlu0 %269
      %273 = vset.pattern.permute.xlu0 0
      %274 = vperm.xlu0 %273, %v252
      %v275 = vpop.permute.xlu0 %274
      %278 = vset.pattern.permute.xlu0 0
      %279 = vperm.xlu0 %278, %v253
      %v280 = vpop.permute.xlu0 %279
      %283 = vset.pattern.permute.xlu0 0
      %284 = vperm.xlu0 %283, %v254
      %v285 = vpop.permute.xlu0 %284
      %288 = vset.pattern.permute.xlu0 0
      %289 = vperm.xlu0 %288, %v255
      %v290 = vpop.permute.xlu0 %289
      %293 = vset.pattern.permute.xlu0 0
      %294 = vperm.xlu0 %293, %v256
      %v295 = vpop.permute.xlu0 %294
      %298 = vset.pattern.permute.xlu0 0
      %299 = vperm.xlu0 %298, %v257
      %v300 = vpop.permute.xlu0 %299
      %303 = vset.pattern.permute.xlu0 0
      %304 = vperm.xlu0 %303, %v258
      %v305 = vpop.permute.xlu0 %304
      %308 = vset.pattern.permute.xlu0 0
      %309 = vperm.xlu0 %308, %v259
      %v310 = vpop.permute.xlu0 %309
      %313 = vset.pattern.permute.xlu0 0
      %314 = vperm.xlu0 %313, %v260
      %v315 = vpop.permute.xlu0 %314
      %318 = vset.pattern.permute.xlu0 0
      %319 = vperm.xlu0 %318, %v261
      %v320 = vpop.permute.xlu0 %319
      %323 = vset.pattern.permute.xlu0 0
      %324 = vperm.xlu0 %323, %v262
      %v325 = vpop.permute.xlu0 %324
      %328 = vset.pattern.permute.xlu0 0
      %329 = vperm.xlu0 %328, %v263
      %v330 = vpop.permute.xlu0 %329
      %333 = vset.pattern.permute.xlu0 0
      %334 = vperm.xlu0 %333, %v264
      %v335 = vpop.permute.xlu0 %334
      %338 = vset.pattern.permute.xlu0 0
      %339 = vperm.xlu0 %338, %v265
      %v340 = vpop.permute.xlu0 %339
      %343 = vset.pattern.permute.xlu0 0
      %344 = vperm.xlu0 %343, %v266
      %v345 = vpop.permute.xlu0 %344
      %v363 = vunpack.c.l.b16 %v235
      %v364 = vunpack.c.l.b16 %v236
      %v365 = vunpack.c.l.b16 %v237
      %v366 = vunpack.c.l.b16 %v238
      %v367 = vunpack.c.l.b16 %v239
      %v368 = vunpack.c.l.b16 %v240
      %v369 = vunpack.c.l.b16 %v241
      %v370 = vunpack.c.l.b16 %v242
      %v371 = vunpack.c.l.b16 %v243
      %v372 = vunpack.c.l.b16 %v244
      %v373 = vunpack.c.l.b16 %v245
      %v374 = vunpack.c.l.b16 %v246
      %v375 = vunpack.c.l.b16 %v247
      %v376 = vunpack.c.l.b16 %v248
      %v377 = vunpack.c.l.b16 %v249
      %v378 = vunpack.c.l.b16 %v250
      %v379 = vpack.c.b16 %v364, %v363
      %v380 = vpack.c.b16 %v366, %v365
      %v381 = vpack.c.b16 %v368, %v367
      %v382 = vpack.c.b16 %v370, %v369
      %v383 = vpack.c.b16 %v372, %v371
      %v384 = vpack.c.b16 %v374, %v373
      %v385 = vpack.c.b16 %v376, %v375
      %v386 = vpack.c.b16 %v378, %v377
      %vm387 = vcmask 261120
      %v389 = vsel %vm387, %v379, 0
      %v392 = vsel %vm387, %v380, 0
      %v395 = vsel %vm387, %v381, 0
      %v398 = vsel %vm387, %v382, 0
      %v401 = vsel %vm387, %v383, 0
      %v404 = vsel %vm387, %v384, 0
      %v407 = vsel %vm387, %v385, 0
      %v410 = vsel %vm387, %v386, 0
      %412 = vmatpush.bf16.msra.mxu0 0
      %413 = vmatpush.bf16.msra.mxu0 0
      %414 = vmatpush.bf16.msra.mxu0 0
      %415 = vmatpush.bf16.msra.mxu0 0
      %416 = vmatpush.bf16.msra.mxu0 0
      %417 = vmatpush.bf16.msra.mxu0 0
      %418 = vmatpush.bf16.msra.mxu0 %v231
      %419 = vmatpush.bf16.msra.mxu0 %v227
      %420 = vmatmul.bf16.gmra.mxu0 %v389
      %v421 = vpop.f32.mrf.mxu0
      %v422 = vadd.f32 %v270, %v421
      %v423 = vpop.f32.mrf.mxu0
      %v424 = vadd.f32 %v275, %v423
      %425 = vmatmul.bf16.gmra.mxu0 %v392
      %v426 = vpop.f32.mrf.mxu0
      %v427 = vadd.f32 %v280, %v426
      %v428 = vpop.f32.mrf.mxu0
      %v429 = vadd.f32 %v285, %v428
      %430 = vmatmul.bf16.gmra.mxu0 %v395
      %v431 = vpop.f32.mrf.mxu0
      %v432 = vadd.f32 %v290, %v431
      %v433 = vpop.f32.mrf.mxu0
      %v434 = vadd.f32 %v295, %v433
      %435 = vmatmul.bf16.gmra.mxu0 %v398
      %v436 = vpop.f32.mrf.mxu0
      %v437 = vadd.f32 %v300, %v436
      %v438 = vpop.f32.mrf.mxu0
      %v439 = vadd.f32 %v305, %v438
      %440 = vmatmul.bf16.gmra.mxu0 %v401
      %v441 = vpop.f32.mrf.mxu0
      %v442 = vadd.f32 %v310, %v441
      %v443 = vpop.f32.mrf.mxu0
      %v444 = vadd.f32 %v315, %v443
      %445 = vmatmul.bf16.gmra.mxu0 %v404
      %v446 = vpop.f32.mrf.mxu0
      %v447 = vadd.f32 %v320, %v446
      %v448 = vpop.f32.mrf.mxu0
      %v449 = vadd.f32 %v325, %v448
      %450 = vmatmul.bf16.gmra.mxu0 %v407
      %v451 = vpop.f32.mrf.mxu0
      %v452 = vadd.f32 %v330, %v451
      %v453 = vpop.f32.mrf.mxu0
      %v454 = vadd.f32 %v335, %v453
      %455 = vmatmul.bf16.gmra.mxu0 %v410
      %v456 = vpop.f32.mrf.mxu0
      %v457 = vadd.f32 %v340, %v456
      %v458 = vpop.f32.mrf.mxu0
      %v459 = vadd.f32 %v345, %v458
      %460 = vdwg.mxu0
      %461 = vmatpush.bf16.msra.mxu0 0
      %462 = vmatpush.bf16.msra.mxu0 0
      %463 = vmatpush.bf16.msra.mxu0 0
      %464 = vmatpush.bf16.msra.mxu0 0
      %465 = vmatpush.bf16.msra.mxu0 0
      %466 = vmatpush.bf16.msra.mxu0 0
      %467 = vmatpush.bf16.msra.mxu0 %v232
      %468 = vmatpush.bf16.msra.mxu0 %v228
      %469 = vmatmul.bf16.gmra.mxu0 %v389
      %v470 = vpop.f32.mrf.mxu0
      %v471 = vadd.f32 %v270, %v470
      %v472 = vpop.f32.mrf.mxu0
      %v473 = vadd.f32 %v275, %v472
      %474 = vmatmul.bf16.gmra.mxu0 %v392
      %v475 = vpop.f32.mrf.mxu0
      %v476 = vadd.f32 %v280, %v475
      %v477 = vpop.f32.mrf.mxu0
      %v478 = vadd.f32 %v285, %v477
      %479 = vmatmul.bf16.gmra.mxu0 %v395
      %v480 = vpop.f32.mrf.mxu0
      %v481 = vadd.f32 %v290, %v480
      %v482 = vpop.f32.mrf.mxu0
      %v483 = vadd.f32 %v295, %v482
      %484 = vmatmul.bf16.gmra.mxu0 %v398
      %v485 = vpop.f32.mrf.mxu0
      %v486 = vadd.f32 %v300, %v485
      %v487 = vpop.f32.mrf.mxu0
      %v488 = vadd.f32 %v305, %v487
      %489 = vmatmul.bf16.gmra.mxu0 %v401
      %v490 = vpop.f32.mrf.mxu0
      %v491 = vadd.f32 %v310, %v490
      %v492 = vpop.f32.mrf.mxu0
      %v493 = vadd.f32 %v315, %v492
      %494 = vmatmul.bf16.gmra.mxu0 %v404
      %v495 = vpop.f32.mrf.mxu0
      %v496 = vadd.f32 %v320, %v495
      %v497 = vpop.f32.mrf.mxu0
      %v498 = vadd.f32 %v325, %v497
      %499 = vmatmul.bf16.gmra.mxu0 %v407
      %v500 = vpop.f32.mrf.mxu0
      %v501 = vadd.f32 %v330, %v500
      %v502 = vpop.f32.mrf.mxu0
      %v503 = vadd.f32 %v335, %v502
      %504 = vmatmul.bf16.gmra.mxu0 %v410
      %v505 = vpop.f32.mrf.mxu0
      %v506 = vadd.f32 %v340, %v505
      %v507 = vpop.f32.mrf.mxu0
      %v508 = vadd.f32 %v345, %v507
      %509 = vdwg.mxu0
      %510 = vmatpush.bf16.msra.mxu0 0
      %511 = vmatpush.bf16.msra.mxu0 0
      %512 = vmatpush.bf16.msra.mxu0 0
      %513 = vmatpush.bf16.msra.mxu0 0
      %514 = vmatpush.bf16.msra.mxu0 0
      %515 = vmatpush.bf16.msra.mxu0 0
      %516 = vmatpush.bf16.msra.mxu0 %v233
      %517 = vmatpush.bf16.msra.mxu0 %v229
      %518 = vmatmul.bf16.gmra.mxu0 %v389
      %v519 = vpop.f32.mrf.mxu0
      %v520 = vadd.f32 %v270, %v519
      %v521 = vpop.f32.mrf.mxu0
      %v522 = vadd.f32 %v275, %v521
      %523 = vmatmul.bf16.gmra.mxu0 %v392
      %v524 = vpop.f32.mrf.mxu0
      %v525 = vadd.f32 %v280, %v524
      %v526 = vpop.f32.mrf.mxu0
      %v527 = vadd.f32 %v285, %v526
      %528 = vmatmul.bf16.gmra.mxu0 %v395
      %v529 = vpop.f32.mrf.mxu0
      %v530 = vadd.f32 %v290, %v529
      %v531 = vpop.f32.mrf.mxu0
      %v532 = vadd.f32 %v295, %v531
      %533 = vmatmul.bf16.gmra.mxu0 %v398
      %v534 = vpop.f32.mrf.mxu0
      %v535 = vadd.f32 %v300, %v534
      %v536 = vpop.f32.mrf.mxu0
      %v537 = vadd.f32 %v305, %v536
      %538 = vmatmul.bf16.gmra.mxu0 %v401
      %v539 = vpop.f32.mrf.mxu0
      %v540 = vadd.f32 %v310, %v539
      %v541 = vpop.f32.mrf.mxu0
      %v542 = vadd.f32 %v315, %v541
      %543 = vmatmul.bf16.gmra.mxu0 %v404
      %v544 = vpop.f32.mrf.mxu0
      %v545 = vadd.f32 %v320, %v544
      %v546 = vpop.f32.mrf.mxu0
      %v547 = vadd.f32 %v325, %v546
      %548 = vmatmul.bf16.gmra.mxu0 %v407
      %v549 = vpop.f32.mrf.mxu0
      %v550 = vadd.f32 %v330, %v549
      %v551 = vpop.f32.mrf.mxu0
      %v552 = vadd.f32 %v335, %v551
      %553 = vmatmul.bf16.gmra.mxu0 %v410
      %v554 = vpop.f32.mrf.mxu0
      %v555 = vadd.f32 %v340, %v554
      %v556 = vpop.f32.mrf.mxu0
      %v557 = vadd.f32 %v345, %v556
      %558 = vdwg.mxu0
      %559 = vmatpush.bf16.msra.mxu0 0
      %560 = vmatpush.bf16.msra.mxu0 0
      %561 = vmatpush.bf16.msra.mxu0 0
      %562 = vmatpush.bf16.msra.mxu0 0
      %563 = vmatpush.bf16.msra.mxu0 0
      %564 = vmatpush.bf16.msra.mxu0 0
      %565 = vmatpush.bf16.msra.mxu0 %v234
      %566 = vmatpush.bf16.msra.mxu0 %v230
      %567 = vmatmul.bf16.gmra.mxu0 %v389
      %v568 = vpop.f32.mrf.mxu0
      %v569 = vadd.f32 %v270, %v568
      %v570 = vpop.f32.mrf.mxu0
      %v571 = vadd.f32 %v275, %v570
      %572 = vmatmul.bf16.gmra.mxu0 %v392
      %v573 = vpop.f32.mrf.mxu0
      %v574 = vadd.f32 %v280, %v573
      %v575 = vpop.f32.mrf.mxu0
      %v576 = vadd.f32 %v285, %v575
      %577 = vmatmul.bf16.gmra.mxu0 %v395
      %v578 = vpop.f32.mrf.mxu0
      %v579 = vadd.f32 %v290, %v578
      %v580 = vpop.f32.mrf.mxu0
      %v581 = vadd.f32 %v295, %v580
      %582 = vmatmul.bf16.gmra.mxu0 %v398
      %v583 = vpop.f32.mrf.mxu0
      %v584 = vadd.f32 %v300, %v583
      %v585 = vpop.f32.mrf.mxu0
      %v586 = vadd.f32 %v305, %v585
      %587 = vmatmul.bf16.gmra.mxu0 %v401
      %v588 = vpop.f32.mrf.mxu0
      %v589 = vadd.f32 %v310, %v588
      %v590 = vpop.f32.mrf.mxu0
      %v591 = vadd.f32 %v315, %v590
      %592 = vmatmul.bf16.gmra.mxu0 %v404
      %v593 = vpop.f32.mrf.mxu0
      %v594 = vadd.f32 %v320, %v593
      %v595 = vpop.f32.mrf.mxu0
      %v596 = vadd.f32 %v325, %v595
      %597 = vmatmul.bf16.gmra.mxu0 %v407
      %v598 = vpop.f32.mrf.mxu0
      %v599 = vadd.f32 %v330, %v598
      %v600 = vpop.f32.mrf.mxu0
      %v601 = vadd.f32 %v335, %v600
      %602 = vmatmul.bf16.gmra.mxu0 %v410
      %v603 = vpop.f32.mrf.mxu0
      %v604 = vadd.f32 %v340, %v603
      %v605 = vpop.f32.mrf.mxu0
      %v606 = vadd.f32 %v345, %v605
      %607 = vdwg.mxu0
      %v608 = vpack.c.bf16 %v471, %v422
      %v609 = vpack.c.bf16 %v569, %v520
      %v610 = vpack.c.bf16 %v473, %v424
      %v611 = vpack.c.bf16 %v571, %v522
      %v612 = vpack.c.bf16 %v476, %v427
      %v613 = vpack.c.bf16 %v574, %v525
      %v614 = vpack.c.bf16 %v478, %v429
      %v615 = vpack.c.bf16 %v576, %v527
      %v616 = vpack.c.bf16 %v481, %v432
      %v617 = vpack.c.bf16 %v579, %v530
      %v618 = vpack.c.bf16 %v483, %v434
      %v619 = vpack.c.bf16 %v581, %v532
      %v620 = vpack.c.bf16 %v486, %v437
      %v621 = vpack.c.bf16 %v584, %v535
      %v622 = vpack.c.bf16 %v488, %v439
      %v623 = vpack.c.bf16 %v586, %v537
      %v624 = vpack.c.bf16 %v491, %v442
      %v625 = vpack.c.bf16 %v589, %v540
      %v626 = vpack.c.bf16 %v493, %v444
      %v627 = vpack.c.bf16 %v591, %v542
      %v628 = vpack.c.bf16 %v496, %v447
      %v629 = vpack.c.bf16 %v594, %v545
      %v630 = vpack.c.bf16 %v498, %v449
      %v631 = vpack.c.bf16 %v596, %v547
      %v632 = vpack.c.bf16 %v501, %v452
      %v633 = vpack.c.bf16 %v599, %v550
      %v634 = vpack.c.bf16 %v503, %v454
      %v635 = vpack.c.bf16 %v601, %v552
      %v636 = vpack.c.bf16 %v506, %v457
      %v637 = vpack.c.bf16 %v604, %v555
      %v638 = vpack.c.bf16 %v508, %v459
      %v639 = vpack.c.bf16 %v606, %v557
      %640 = vst [vmem:[%s208] sm:$0xff] %v608
      %641 = vst [vmem:[%s208 + $0x8] sm:$0xff] %v609
      %642 = vst [vmem:[%s208 + $0x10] sm:$0xff] %v610
      %643 = vst [vmem:[%s208 + $0x18] sm:$0xff] %v611
      %644 = vst [vmem:[%s208 + $0x20] sm:$0xff] %v612
      %645 = vst [vmem:[%s208 + $0x28] sm:$0xff] %v613
      %646 = vst [vmem:[%s208 + $0x30] sm:$0xff] %v614
      %647 = vst [vmem:[%s208 + $0x38] sm:$0xff] %v615
      %648 = vst [vmem:[%s208 + $0x40] sm:$0xff] %v616
      %649 = vst [vmem:[%s208 + $0x48] sm:$0xff] %v617
      %650 = vst [vmem:[%s208 + $0x50] sm:$0xff] %v618
      %651 = vst [vmem:[%s208 + $0x58] sm:$0xff] %v619
      %652 = vst [vmem:[%s208 + $0x60] sm:$0xff] %v620
      %653 = vst [vmem:[%s208 + $0x68] sm:$0xff] %v621
      %654 = vst [vmem:[%s208 + $0x70] sm:$0xff] %v622
      %655 = vst [vmem:[%s208 + $0x78] sm:$0xff] %v623
      %656 = vst [vmem:[%s208 + $0x80] sm:$0xff] %v624
      %657 = vst [vmem:[%s208 + $0x88] sm:$0xff] %v625
      %658 = vst [vmem:[%s208 + $0x90] sm:$0xff] %v626
      %659 = vst [vmem:[%s208 + $0x98] sm:$0xff] %v627
      %660 = vst [vmem:[%s208 + $0xa0] sm:$0xff] %v628
      %661 = vst [vmem:[%s208 + $0xa8] sm:$0xff] %v629
      %662 = vst [vmem:[%s208 + $0xb0] sm:$0xff] %v630
      %663 = vst [vmem:[%s208 + $0xb8] sm:$0xff] %v631
      %664 = vst [vmem:[%s208 + $0xc0] sm:$0xff] %v632
      %665 = vst [vmem:[%s208 + $0xc8] sm:$0xff] %v633
      %666 = vst [vmem:[%s208 + $0xd0] sm:$0xff] %v634
      %667 = vst [vmem:[%s208 + $0xd8] sm:$0xff] %v635
      %668 = vst [vmem:[%s208 + $0xe0] sm:$0xff] %v636
      %669 = vst [vmem:[%s208 + $0xe8] sm:$0xff] %v637
      %670 = vst [vmem:[%s208 + $0xf0] sm:$0xff] %v638
      %671 = vst [vmem:[%s208 + $0xf8] sm:$0xff] %v639
      %s672 = smul.u32 4, %s19
      %p673 = scmp.lt.s32.totalorder %s18, 1
      %s674 = scalar_select %p673, %s18, 1
      %p675 = scmp.lt.s32.totalorder %s672, 3
      %s676 = scalar_select %p675, %s672, 3
      %s677 = smul.addr %s674, 64
      %s678 = sadd.s32 %s676, %s677
      %s679 = smul.addr %s678, 4
      %s680 = scalar_lea.vmem %s3, %s679
      // Predicated region
      $region33: #{mdblock_forward.8} parent=31 // pred_check
        %p681 = pneg %p116
      $region34: #{mdblock_forward.8} parent=31 // pred_check_branch
        %683 = sbr.rel (%p681) target = $region36
      $region35: #{mdblock_forward.8} parent=31 // pred_region
        %s684 = smul.u32 4, %s19
      $region36: #{mdblock_forward.8} parent=31 // pred_fallthru
        _
    $region32: #{mdblock_forward.8} parent=5 // pred_fallthru
      _
    %p685 = scmp.le.s32.totalorder 2, %s9
    // Predicated region
    $region37: #{mdblock_forward.8} parent=5 // pred_check
      %p686 = pneg %p685
    $region38: #{mdblock_forward.8} parent=5 // pred_check_branch
      %688 = sbr.rel (%p686) target = $region40
    $region39: #{mdblock_forward.8} parent=5 // pred_region
      %s689 = ssub.s32 %s9, 2
      // Predicated region
      $region41: #{mdblock_forward.8} parent=39 // pred_check
        %p690 = pneg %p122
      $region42: #{mdblock_forward.8} parent=39 // pred_check_branch
        %692 = sbr.rel (%p690) target = $region44
      $region43: #{mdblock_forward.8} parent=39 // pred_region
        %s693 = smul.u32 4, %s21
        %p694 = scmp.lt.s32.totalorder %s20, 1
        %s695 = scalar_select %p694, %s20, 1
        %p696 = scmp.lt.s32.totalorder %s693, 3
        %s697 = scalar_select %p696, %s693, 3
        %s698 = smul.addr %s695, 64
        %s699 = sadd.s32 %s697, %s698
        %s700 = smul.addr %s699, 4
        %s701 = scalar_lea.vmem %s3, %s700
      $region44: #{mdblock_forward.8} parent=39 // pred_fallthru
        _
    $region40: #{mdblock_forward.8} parent=5 // pred_fallthru
      _
  $region6: #{mdblock_forward.8} parent=0 // loop_footer
    %s13 = sadd.s32 1, %s9
  $region7: #{mdblock_forward.8} parent=0 // loop_footer_branch
    %8 = sbr.rel target = $region3
  $region8: #{mdblock_forward.8} parent=0 // loop_exit
    _

// kernel: mdblock_forward.9
$region0: #{mdblock_forward.9}
  #allocation0 [shape = 'u32[]', space=smem, size = 0x4, offset = 0x4, fixed_abs, tag = 'smem constant byte address 0x4 - core index']
  #allocation1 [shape = 'u32[72,128]{1,0:T(1,128)}', space=vmem, size = 0x9000, scoped, tag = 'internal scratch']
  %s0 = inlined_call_operand.vmem [shape: bf16[32,128], index: 0, kind: input, shape index: {}]
  %s1 = inlined_call_operand.vmem [shape: f32[32,1], index: 1, kind: input, shape index: {}]
  %s2 = inlined_call_operand.vmem [shape: f32[32,1], index: 2, kind: input, shape index: {}]
  %s3 = inlined_call_operand.vmem [shape: f32[32,1], index: 3, kind: input, shape index: {}]
  %s4 = inlined_call_operand.vmem [shape: f32[2,128,512], index: 4, kind: input, shape index: {}]
  %s5 = inlined_call_operand.vmem [shape: f32[2,32,512], index: 5, kind: input, shape index: {}]
  %s6 = inlined_call_operand.vmem [shape: f32[2,32,512], index: 6, kind: output, shape index: {}]
  %s7 = sld [smem:[#allocation0]]
  $region57: #{mdblock_forward.9} parent=0
    _
  %s9 = ssub.s32 1, %s7
  %s10 = scalar_select 0, %s9, %s7
  loop: start=0, step=1, limit=4
  $region2: #{mdblock_forward.9} parent=0 // loop_pre_header
    _
  $region3: #{mdblock_forward.9} parent=0 // loop_header
    %s12 = sphi 0, %s16
    %p13 = scmp.ge.s32.totalorder %s12, 4
    %s19 = sphi 0, %s31
    %s20 = sphi 0, %s27
    %s21 = sphi 0, %s19
    %s22 = sphi 0, %s20
    %s23 = sphi 0, %s21
    %s24 = sphi 0, %s22
    %s32 = sphi 0, %s32
    %s34 = sphi 0, %s32
    %s35 = sphi 0, %s34
    %s49 = sphi 0, %s35
    %s53 = sphi 0, %s53
    %s55 = sphi 0, %s53
    %s56 = sphi 0, %s55
    %s70 = sphi 0, %s56
    %s74 = sphi 0, %s74
    %s76 = sphi 0, %s74
    %s77 = sphi 0, %s76
    %s91 = sphi 0, %s77
    %s95 = sphi 0, %s95
    %s97 = sphi 0, %s95
    %s98 = sphi 0, %s97
    %s112 = sphi 0, %s98
    %s120 = sphi 0, %s122
    %s123 = sphi 0, %s120
    %s124 = sphi 0, %s123
    %s140 = sphi 0, %s124
    %s148 = sphi 0, %s150
    %s151 = sphi 0, %s148
    %s152 = sphi 0, %s151
    %s168 = sphi 0, %s152
    %s176 = sphi 0, %s178
    %s179 = sphi 0, %s176
    %s180 = sphi 0, %s179
    %s196 = sphi 0, %s180
  $region4: #{mdblock_forward.9} parent=0 // loop_header_branch
    %15 = sbr.rel (%p13) target = $region8
  $region5: #{mdblock_forward.9} parent=0 // loop_body
    %s17 = ssub.s32 %s12, 1
    %s18 = ssub.s32 %s12, 2
    %s25 = sadd.s32 1, %s20
    %p26 = scmp.ge.s32.totalorder %s25, 1
    %s27 = scalar_select %p26, 0, %s25
    %s28 = sadd.s32 1, %s19
    %s29 = scalar_select %p26, %s28, %s19
    %p30 = scmp.ge.s32.totalorder %s29, 2
    %s31 = scalar_select %p30, 0, %s29
    %s33 = sadd.s32 %s32, 1
    %p36 = scmp.eq.s32.totalorder %s12, 1
    %p37 = scmp.ne.s32.totalorder %s32, %s34
    %p38 = scmp.eq.s32.totalorder %s12, 0
    %p39 = por %p37, %p38
    %p40 = scmp.ne.s32.totalorder %s32, %s34
    %p41 = scmp.eq.s32.totalorder %s17, 1
    %p42 = por %p40, %p41
    %p43 = scmp.ne.s32.totalorder %s34, %s35
    %p44 = scmp.eq.s32.totalorder %s17, 0
    %p45 = por %p43, %p44
    %p46 = scmp.ne.s32.totalorder %s34, %s35
    %p47 = scmp.eq.s32.totalorder %s18, 1
    %p48 = por %p46, %p47
    %p50 = scmp.ne.s32.totalorder %s35, %s49
    %p51 = scmp.eq.s32.totalorder %s18, 0
    %p52 = por %p50, %p51
    %s54 = sadd.s32 %s53, 1
    %p57 = scmp.eq.s32.totalorder %s12, 1
    %p58 = scmp.ne.s32.totalorder %s53, %s55
    %p59 = scmp.eq.s32.totalorder %s12, 0
    %p60 = por %p58, %p59
    %p61 = scmp.ne.s32.totalorder %s53, %s55
    %p62 = scmp.eq.s32.totalorder %s17, 1
    %p63 = por %p61, %p62
    %p64 = scmp.ne.s32.totalorder %s55, %s56
    %p65 = scmp.eq.s32.totalorder %s17, 0
    %p66 = por %p64, %p65
    %p67 = scmp.ne.s32.totalorder %s55, %s56
    %p68 = scmp.eq.s32.totalorder %s18, 1
    %p69 = por %p67, %p68
    %p71 = scmp.ne.s32.totalorder %s56, %s70
    %p72 = scmp.eq.s32.totalorder %s18, 0
    %p73 = por %p71, %p72
    %s75 = sadd.s32 %s74, 1
    %p78 = scmp.eq.s32.totalorder %s12, 1
    %p79 = scmp.ne.s32.totalorder %s74, %s76
    %p80 = scmp.eq.s32.totalorder %s12, 0
    %p81 = por %p79, %p80
    %p82 = scmp.ne.s32.totalorder %s74, %s76
    %p83 = scmp.eq.s32.totalorder %s17, 1
    %p84 = por %p82, %p83
    %p85 = scmp.ne.s32.totalorder %s76, %s77
    %p86 = scmp.eq.s32.totalorder %s17, 0
    %p87 = por %p85, %p86
    %p88 = scmp.ne.s32.totalorder %s76, %s77
    %p89 = scmp.eq.s32.totalorder %s18, 1
    %p90 = por %p88, %p89
    %p92 = scmp.ne.s32.totalorder %s77, %s91
    %p93 = scmp.eq.s32.totalorder %s18, 0
    %p94 = por %p92, %p93
    %s96 = sadd.s32 %s95, 1
    %p99 = scmp.eq.s32.totalorder %s12, 1
    %p100 = scmp.ne.s32.totalorder %s95, %s97
    %p101 = scmp.eq.s32.totalorder %s12, 0
    %p102 = por %p100, %p101
    %p103 = scmp.ne.s32.totalorder %s95, %s97
    %p104 = scmp.eq.s32.totalorder %s17, 1
    %p105 = por %p103, %p104
    %p106 = scmp.ne.s32.totalorder %s97, %s98
    %p107 = scmp.eq.s32.totalorder %s17, 0
    %p108 = por %p106, %p107
    %p109 = scmp.ne.s32.totalorder %s97, %s98
    %p110 = scmp.eq.s32.totalorder %s18, 1
    %p111 = por %p109, %p110
    %p113 = scmp.ne.s32.totalorder %s98, %s112
    %p114 = scmp.eq.s32.totalorder %s18, 0
    %p115 = por %p113, %p114
    %s116 = ssub.s32 %s19, %s31
    %s117 = ssub.s32 %s20, %s27
    %s118 = sor.u32 %s116, %s117
    %p119 = scmp.eq.s32.totalorder %s118, 0
    %s121 = sadd.s32 %s120, 1
    %s122 = scalar_select %p119, %s120, %s121
    %p125 = pneg %p119
    %p126 = scmp.eq.s32.totalorder %s12, 1
    %p127 = por %p125, %p126
    %p128 = scmp.ne.s32.totalorder %s120, %s123
    %p129 = scmp.eq.s32.totalorder %s12, 0
    %p130 = por %p128, %p129
    %p131 = scmp.ne.s32.totalorder %s120, %s123
    %p132 = scmp.eq.s32.totalorder %s17, 1
    %p133 = por %p131, %p132
    %p134 = scmp.ne.s32.totalorder %s123, %s124
    %p135 = scmp.eq.s32.totalorder %s17, 0
    %p136 = por %p134, %p135
    %p137 = scmp.ne.s32.totalorder %s123, %s124
    %p138 = scmp.eq.s32.totalorder %s18, 1
    %p139 = por %p137, %p138
    %p141 = scmp.ne.s32.totalorder %s124, %s140
    %p142 = scmp.eq.s32.totalorder %s18, 0
    %p143 = por %p141, %p142
    %s144 = ssub.s32 %s19, %s31
    %s145 = ssub.s32 %s20, %s27
    %s146 = sor.u32 %s144, %s145
    %p147 = scmp.eq.s32.totalorder %s146, 0
    %s149 = sadd.s32 %s148, 1
    %s150 = scalar_select %p147, %s148, %s149
    %p153 = pneg %p147
    %p154 = scmp.eq.s32.totalorder %s12, 1
    %p155 = por %p153, %p154
    %p156 = scmp.ne.s32.totalorder %s148, %s151
    %p157 = scmp.eq.s32.totalorder %s12, 0
    %p158 = por %p156, %p157
    %p159 = scmp.ne.s32.totalorder %s148, %s151
    %p160 = scmp.eq.s32.totalorder %s17, 1
    %p161 = por %p159, %p160
    %p162 = scmp.ne.s32.totalorder %s151, %s152
    %p163 = scmp.eq.s32.totalorder %s17, 0
    %p164 = por %p162, %p163
    %p165 = scmp.ne.s32.totalorder %s151, %s152
    %p166 = scmp.eq.s32.totalorder %s18, 1
    %p167 = por %p165, %p166
    %p169 = scmp.ne.s32.totalorder %s152, %s168
    %p170 = scmp.eq.s32.totalorder %s18, 0
    %p171 = por %p169, %p170
    %s172 = ssub.s32 %s19, %s31
    %s173 = ssub.s32 %s20, %s27
    %s174 = sor.u32 %s172, %s173
    %p175 = scmp.eq.s32.totalorder %s174, 0
    %s177 = sadd.s32 %s176, 1
    %s178 = scalar_select %p175, %s176, %s177
    %p181 = pneg %p175
    %p182 = scmp.eq.s32.totalorder %s12, 1
    %p183 = por %p181, %p182
    %p184 = scmp.ne.s32.totalorder %s176, %s179
    %p185 = scmp.eq.s32.totalorder %s12, 0
    %p186 = por %p184, %p185
    %p187 = scmp.ne.s32.totalorder %s176, %s179
    %p188 = scmp.eq.s32.totalorder %s17, 1
    %p189 = por %p187, %p188
    %p190 = scmp.ne.s32.totalorder %s179, %s180
    %p191 = scmp.eq.s32.totalorder %s17, 0
    %p192 = por %p190, %p191
    %p193 = scmp.ne.s32.totalorder %s179, %s180
    %p194 = scmp.eq.s32.totalorder %s18, 1
    %p195 = por %p193, %p194
    %p197 = scmp.ne.s32.totalorder %s180, %s196
    %p198 = scmp.eq.s32.totalorder %s18, 0
    %p199 = por %p197, %p198
    %p200 = scmp.le.s32.totalorder 1, %s12
    %p201 = scmp.lt.s32.totalorder %s12, 3
    %p202 = pnand %p200, %p201
    %p203 = pneg %p202
    // Predicated region
    $region9: #{mdblock_forward.9} parent=5 // pred_check
      _
    $region10: #{mdblock_forward.9} parent=5 // pred_check_branch
      %205 = sbr.rel (%p202) target = $region12
    $region11: #{mdblock_forward.9} parent=5 // pred_region
      %s206 = ssub.s32 %s12, 1
      // Predicated region
      $region13: #{mdblock_forward.9} parent=11 // pred_check
        %p207 = pneg %p45
      $region14: #{mdblock_forward.9} parent=11 // pred_check_branch
        %209 = sbr.rel (%p207) target = $region16
      $region15: #{mdblock_forward.9} parent=11 // pred_region
        _
      $region16: #{mdblock_forward.9} parent=11 // pred_fallthru
        _
      // Predicated region
      $region17: #{mdblock_forward.9} parent=11 // pred_check
        %p210 = pneg %p66
      $region18: #{mdblock_forward.9} parent=11 // pred_check_branch
        %212 = sbr.rel (%p210) target = $region20
      $region19: #{mdblock_forward.9} parent=11 // pred_region
        _
      $region20: #{mdblock_forward.9} parent=11 // pred_fallthru
        _
      // Predicated region
      $region21: #{mdblock_forward.9} parent=11 // pred_check
        %p213 = pneg %p87
      $region22: #{mdblock_forward.9} parent=11 // pred_check_branch
        %215 = sbr.rel (%p213) target = $region24
      $region23: #{mdblock_forward.9} parent=11 // pred_region
        _
      $region24: #{mdblock_forward.9} parent=11 // pred_fallthru
        _
      // Predicated region
      $region25: #{mdblock_forward.9} parent=11 // pred_check
        %p216 = pneg %p108
      $region26: #{mdblock_forward.9} parent=11 // pred_check_branch
        %218 = sbr.rel (%p216) target = $region28
      $region27: #{mdblock_forward.9} parent=11 // pred_region
        _
      $region28: #{mdblock_forward.9} parent=11 // pred_fallthru
        _
    $region12: #{mdblock_forward.9} parent=5 // pred_fallthru
      _
    %p219 = scmp.lt.s32.totalorder %s12, 2
    // Predicated region
    $region29: #{mdblock_forward.9} parent=5 // pred_check
      %p220 = pneg %p219
    $region30: #{mdblock_forward.9} parent=5 // pred_check_branch
      %222 = sbr.rel (%p220) target = $region32
    $region31: #{mdblock_forward.9} parent=5 // pred_region
      // Predicated region
      $region33: #{mdblock_forward.9} parent=31 // pred_check
        %p223 = pneg %p130
      $region34: #{mdblock_forward.9} parent=31 // pred_check_branch
        %225 = sbr.rel (%p223) target = $region36
      $region35: #{mdblock_forward.9} parent=31 // pred_region
        %s226 = smul.u32 4, %s20
        %p227 = scmp.lt.s32.totalorder %s19, 1
        %s228 = scalar_select %p227, %s19, 1
        %p229 = scmp.lt.s32.totalorder %s226, 3
        %s230 = scalar_select %p229, %s226, 3
        %s231 = smul.addr %s228, 64
        %s232 = sadd.s32 %s230, %s231
        %s233 = smul.addr %s232, 8
        %s234 = scalar_lea.vmem %s4, %s233
        %s235 = smul.u32 4, %s20
      $region36: #{mdblock_forward.9} parent=31 // pred_fallthru
        _
      // Predicated region
      $region37: #{mdblock_forward.9} parent=31 // pred_check
        %p236 = pneg %p158
      $region38: #{mdblock_forward.9} parent=31 // pred_check_branch
        %238 = sbr.rel (%p236) target = $region40
      $region39: #{mdblock_forward.9} parent=31 // pred_region
        %s239 = smul.u32 4, %s20
        %p240 = scmp.lt.s32.totalorder %s19, 1
        %s241 = scalar_select %p240, %s19, 1
        %p242 = scmp.lt.s32.totalorder %s239, 3
        %s243 = scalar_select %p242, %s239, 3
        %s244 = smul.addr %s241, 16
        %s245 = sadd.s32 %s243, %s244
        %s246 = smul.addr %s245, 8
        %s247 = scalar_lea.vmem %s5, %s246
        %s248 = smul.u32 4, %s20
      $region40: #{mdblock_forward.9} parent=31 // pred_fallthru
        _
    $region32: #{mdblock_forward.9} parent=5 // pred_fallthru
      _
    %p249 = scmp.le.s32.totalorder 1, %s12
    %p250 = scmp.lt.s32.totalorder %s12, 3
    %p251 = pnand %p249, %p250
    %p252 = pneg %p251
    // Predicated region
    $region41: #{mdblock_forward.9} parent=5 // pred_check
      _
    $region42: #{mdblock_forward.9} parent=5 // pred_check_branch
      %254 = sbr.rel (%p251) target = $region44
    $region43: #{mdblock_forward.9} parent=5 // pred_region
      %s255 = ssub.s32 %s12, 1
      %p256 = pneg %p45
      %p257 = pneg %p42
      %p258 = pneg %p66
      %p259 = pneg %p63
      %p260 = pneg %p87
      %p261 = pneg %p84
      %p262 = pneg %p108
      %p263 = pneg %p105
      %s264 = smul.u32 4, %s22
      %p265 = scmp.lt.s32.totalorder %s21, 1
      %s266 = scalar_select %p265, %s21, 1
      %p267 = scmp.lt.s32.totalorder %s264, 3
      %s268 = scalar_select %p267, %s264, 3
      %s269 = smul.addr %s266, 64
      %s270 = sadd.s32 %s268, %s269
      %s271 = smul.addr %s270, 8
      %s272 = scalar_lea.vmem %s4, %s271
      %p273 = pneg %p136
      %p274 = pneg %p133
      %s275 = smul.u32 4, %s22
      %p276 = scmp.lt.s32.totalorder %s21, 1
      %s277 = scalar_select %p276, %s21, 1
      %p278 = scmp.lt.s32.totalorder %s275, 3
      %s279 = scalar_select %p278, %s275, 3
      %s280 = smul.addr %s277, 16
      %s281 = sadd.s32 %s279, %s280
      %s282 = smul.addr %s281, 8
      %s283 = scalar_lea.vmem %s5, %s282
      %p284 = pneg %p164
      %p285 = pneg %p161
      %p286 = pneg %p192
      %p287 = pneg %p189
      %s288 = smul.u32 4, %s22
      %p289 = scmp.lt.s32.totalorder %s21, 1
      %s290 = scalar_select %p289, %s21, 1
      %p291 = scmp.lt.s32.totalorder %s288, 3
      %s292 = scalar_select %p291, %s288, 3
      %s293 = smul.addr %s290, 16
      %s294 = sadd.s32 %s292, %s293
      %s295 = smul.addr %s294, 8
      %s296 = scalar_lea.vmem %s6, %s295
      %s297 = smul.u32 4, %s22
      %p298 = scmp.lt.s32.totalorder %s21, 1
      %s299 = scalar_select %p298, %s21, 1
      %p300 = scmp.lt.s32.totalorder %s297, 3
      %s301 = scalar_select %p300, %s297, 3
      %s302 = smul.addr %s299, 64
      %s303 = sadd.s32 %s301, %s302
      %s304 = smul.addr %s303, 8
      %s305 = scalar_lea.vmem %s4, %s304
      %s306 = smul.u32 4, %s22
      %s307 = smul.u32 4, %s22
      %p308 = scmp.lt.s32.totalorder %s21, 1
      %s309 = scalar_select %p308, %s21, 1
      %p310 = scmp.lt.s32.totalorder %s307, 3
      %s311 = scalar_select %p310, %s307, 3
      %s312 = smul.addr %s309, 16
      %s313 = sadd.s32 %s311, %s312
      %s314 = smul.addr %s313, 8
      %s315 = scalar_lea.vmem %s5, %s314
      %s316 = smul.u32 4, %s22
      %s317 = smul.u32 4, %s22
      %p318 = scmp.lt.s32.totalorder %s21, 1
      %s319 = scalar_select %p318, %s21, 1
      %p320 = scmp.lt.s32.totalorder %s317, 3
      %s321 = scalar_select %p320, %s317, 3
      %s322 = smul.addr %s319, 16
      %s323 = sadd.s32 %s321, %s322
      %s324 = smul.addr %s323, 8
      %s325 = scalar_lea.vmem %s6, %s324
      %s326 = smul.u32 4, %s22
      %v327 = vld [vmem:[%s305] sm:$0xff]
      %v328 = vld [vmem:[%s305 + $0x8] sm:$0xff]
      %v329 = vld [vmem:[%s305 + $0x10] sm:$0xff]
      %v330 = vld [vmem:[%s305 + $0x18] sm:$0xff]
      %v331 = vld [vmem:[%s305 + $0x20] sm:$0xff]
      %v332 = vld [vmem:[%s305 + $0x28] sm:$0xff]
      %v333 = vld [vmem:[%s305 + $0x30] sm:$0xff]
      %v334 = vld [vmem:[%s305 + $0x38] sm:$0xff]
      %v335 = vld [vmem:[%s305 + $0x40] sm:$0xff]
      %v336 = vld [vmem:[%s305 + $0x48] sm:$0xff]
      %v337 = vld [vmem:[%s305 + $0x50] sm:$0xff]
      %v338 = vld [vmem:[%s305 + $0x58] sm:$0xff]
      %v339 = vld [vmem:[%s305 + $0x60] sm:$0xff]
      %v340 = vld [vmem:[%s305 + $0x68] sm:$0xff]
      %v341 = vld [vmem:[%s305 + $0x70] sm:$0xff]
      %v342 = vld [vmem:[%s305 + $0x78] sm:$0xff]
      %v343 = vld [vmem:[%s305 + $0x80] sm:$0xff]
      %v344 = vld [vmem:[%s305 + $0x88] sm:$0xff]
      %v345 = vld [vmem:[%s305 + $0x90] sm:$0xff]
      %v346 = vld [vmem:[%s305 + $0x98] sm:$0xff]
      %v347 = vld [vmem:[%s305 + $0xa0] sm:$0xff]
      %v348 = vld [vmem:[%s305 + $0xa8] sm:$0xff]
      %v349 = vld [vmem:[%s305 + $0xb0] sm:$0xff]
      %v350 = vld [vmem:[%s305 + $0xb8] sm:$0xff]
      %v351 = vld [vmem:[%s305 + $0xc0] sm:$0xff]
      %v352 = vld [vmem:[%s305 + $0xc8] sm:$0xff]
      %v353 = vld [vmem:[%s305 + $0xd0] sm:$0xff]
      %v354 = vld [vmem:[%s305 + $0xd8] sm:$0xff]
      %v355 = vld [vmem:[%s305 + $0xe0] sm:$0xff]
      %v356 = vld [vmem:[%s305 + $0xe8] sm:$0xff]
      %v357 = vld [vmem:[%s305 + $0xf0] sm:$0xff]
      %v358 = vld [vmem:[%s305 + $0xf8] sm:$0xff]
      %v359 = vld [vmem:[%s305 + $0x100] sm:$0xff]
      %v360 = vld [vmem:[%s305 + $0x108] sm:$0xff]
      %v361 = vld [vmem:[%s305 + $0x110] sm:$0xff]
      %v362 = vld [vmem:[%s305 + $0x118] sm:$0xff]
      %v363 = vld [vmem:[%s305 + $0x120] sm:$0xff]
      %v364 = vld [vmem:[%s305 + $0x128] sm:$0xff]
      %v365 = vld [vmem:[%s305 + $0x130] sm:$0xff]
      %v366 = vld [vmem:[%s305 + $0x138] sm:$0xff]
      %v367 = vld [vmem:[%s305 + $0x140] sm:$0xff]
      %v368 = vld [vmem:[%s305 + $0x148] sm:$0xff]
      %v369 = vld [vmem:[%s305 + $0x150] sm:$0xff]
      %v370 = vld [vmem:[%s305 + $0x158] sm:$0xff]
      %v371 = vld [vmem:[%s305 + $0x160] sm:$0xff]
      %v372 = vld [vmem:[%s305 + $0x168] sm:$0xff]
      %v373 = vld [vmem:[%s305 + $0x170] sm:$0xff]
      %v374 = vld [vmem:[%s305 + $0x178] sm:$0xff]
      %v375 = vld [vmem:[%s305 + $0x180] sm:$0xff]
      %v376 = vld [vmem:[%s305 + $0x188] sm:$0xff]
      %v377 = vld [vmem:[%s305 + $0x190] sm:$0xff]
      %v378 = vld [vmem:[%s305 + $0x198] sm:$0xff]
      %v379 = vld [vmem:[%s305 + $0x1a0] sm:$0xff]
      %v380 = vld [vmem:[%s305 + $0x1a8] sm:$0xff]
      %v381 = vld [vmem:[%s305 + $0x1b0] sm:$0xff]
      %v382 = vld [vmem:[%s305 + $0x1b8] sm:$0xff]
      %v383 = vld [vmem:[%s305 + $0x1c0] sm:$0xff]
      %v384 = vld [vmem:[%s305 + $0x1c8] sm:$0xff]
      %v385 = vld [vmem:[%s305 + $0x1d0] sm:$0xff]
      %v386 = vld [vmem:[%s305 + $0x1d8] sm:$0xff]
      %v387 = vld [vmem:[%s305 + $0x1e0] sm:$0xff]
      %v388 = vld [vmem:[%s305 + $0x1e8] sm:$0xff]
      %v389 = vld [vmem:[%s305 + $0x1f0] sm:$0xff]
      %v390 = vld [vmem:[%s305 + $0x1f8] sm:$0xff]
      %v391 = vmul.f32 %v327, %v327
      %v392 = vmul.f32 %v328, %v328
      %v393 = vmul.f32 %v329, %v329
      %v394 = vmul.f32 %v330, %v330
      %v395 = vmul.f32 %v331, %v331
      %v396 = vmul.f32 %v332, %v332
      %v397 = vmul.f32 %v333, %v333
      %v398 = vmul.f32 %v334, %v334
      %v399 = vmul.f32 %v335, %v335
      %v400 = vmul.f32 %v336, %v336
      %v401 = vmul.f32 %v337, %v337
      %v402 = vmul.f32 %v338, %v338
      %v403 = vmul.f32 %v339, %v339
      %v404 = vmul.f32 %v340, %v340
      %v405 = vmul.f32 %v341, %v341
      %v406 = vmul.f32 %v342, %v342
      %v407 = vmul.f32 %v343, %v343
      %v408 = vmul.f32 %v344, %v344
      %v409 = vmul.f32 %v345, %v345
      %v410 = vmul.f32 %v346, %v346
      %v411 = vmul.f32 %v347, %v347
      %v412 = vmul.f32 %v348, %v348
      %v413 = vmul.f32 %v349, %v349
      %v414 = vmul.f32 %v350, %v350
      %v415 = vmul.f32 %v351, %v351
      %v416 = vmul.f32 %v352, %v352
      %v417 = vmul.f32 %v353, %v353
      %v418 = vmul.f32 %v354, %v354
      %v419 = vmul.f32 %v355, %v355
      %v420 = vmul.f32 %v356, %v356
      %v421 = vmul.f32 %v357, %v357
      %v422 = vmul.f32 %v358, %v358
      %v423 = vmul.f32 %v359, %v359
      %v424 = vmul.f32 %v360, %v360
      %v425 = vmul.f32 %v361, %v361
      %v426 = vmul.f32 %v362, %v362
      %v427 = vmul.f32 %v363, %v363
      %v428 = vmul.f32 %v364, %v364
      %v429 = vmul.f32 %v365, %v365
      %v430 = vmul.f32 %v366, %v366
      %v431 = vmul.f32 %v367, %v367
      %v432 = vmul.f32 %v368, %v368
      %v433 = vmul.f32 %v369, %v369
      %v434 = vmul.f32 %v370, %v370
      %v435 = vmul.f32 %v371, %v371
      %v436 = vmul.f32 %v372, %v372
      %v437 = vmul.f32 %v373, %v373
      %v438 = vmul.f32 %v374, %v374
      %v439 = vmul.f32 %v375, %v375
      %v440 = vmul.f32 %v376, %v376
      %v441 = vmul.f32 %v377, %v377
      %v442 = vmul.f32 %v378, %v378
      %v443 = vmul.f32 %v379, %v379
      %v444 = vmul.f32 %v380, %v380
      %v445 = vmul.f32 %v381, %v381
      %v446 = vmul.f32 %v382, %v382
      %v447 = vmul.f32 %v383, %v383
      %v448 = vmul.f32 %v384, %v384
      %v449 = vmul.f32 %v385, %v385
      %v450 = vmul.f32 %v386, %v386
      %v451 = vmul.f32 %v387, %v387
      %v452 = vmul.f32 %v388, %v388
      %v453 = vmul.f32 %v389, %v389
      %v454 = vmul.f32 %v390, %v390
      %v455 = vmul.f32 %v327, %v391
      %v456 = vmul.f32 %v328, %v392
      %v457 = vmul.f32 %v329, %v393
      %v458 = vmul.f32 %v330, %v394
      %v459 = vmul.f32 %v331, %v395
      %v460 = vmul.f32 %v332, %v396
      %v461 = vmul.f32 %v333, %v397
      %v462 = vmul.f32 %v334, %v398
      %v463 = vmul.f32 %v335, %v399
      %v464 = vmul.f32 %v336, %v400
      %v465 = vmul.f32 %v337, %v401
      %v466 = vmul.f32 %v338, %v402
      %v467 = vmul.f32 %v339, %v403
      %v468 = vmul.f32 %v340, %v404
      %v469 = vmul.f32 %v341, %v405
      %v470 = vmul.f32 %v342, %v406
      %v471 = vmul.f32 %v343, %v407
      %v472 = vmul.f32 %v344, %v408
      %v473 = vmul.f32 %v345, %v409
      %v474 = vmul.f32 %v346, %v410
      %v475 = vmul.f32 %v347, %v411
      %v476 = vmul.f32 %v348, %v412
      %v477 = vmul.f32 %v349, %v413
      %v478 = vmul.f32 %v350, %v414
      %v479 = vmul.f32 %v351, %v415
      %v480 = vmul.f32 %v352, %v416
      %v481 = vmul.f32 %v353, %v417
      %v482 = vmul.f32 %v354, %v418
      %v483 = vmul.f32 %v355, %v419
      %v484 = vmul.f32 %v356, %v420
      %v485 = vmul.f32 %v357, %v421
      %v486 = vmul.f32 %v358, %v422
      %v487 = vmul.f32 %v359, %v423
      %v488 = vmul.f32 %v360, %v424
      %v489 = vmul.f32 %v361, %v425
      %v490 = vmul.f32 %v362, %v426
      %v491 = vmul.f32 %v363, %v427
      %v492 = vmul.f32 %v364, %v428
      %v493 = vmul.f32 %v365, %v429
      %v494 = vmul.f32 %v366, %v430
      %v495 = vmul.f32 %v367, %v431
      %v496 = vmul.f32 %v368, %v432
      %v497 = vmul.f32 %v369, %v433
      %v498 = vmul.f32 %v370, %v434
      %v499 = vmul.f32 %v371, %v435
      %v500 = vmul.f32 %v372, %v436
      %v501 = vmul.f32 %v373, %v437
      %v502 = vmul.f32 %v374, %v438
      %v503 = vmul.f32 %v375, %v439
      %v504 = vmul.f32 %v376, %v440
      %v505 = vmul.f32 %v377, %v441
      %v506 = vmul.f32 %v378, %v442
      %v507 = vmul.f32 %v379, %v443
      %v508 = vmul.f32 %v380, %v444
      %v509 = vmul.f32 %v381, %v445
      %v510 = vmul.f32 %v382, %v446
      %v511 = vmul.f32 %v383, %v447
      %v512 = vmul.f32 %v384, %v448
      %v513 = vmul.f32 %v385, %v449
      %v514 = vmul.f32 %v386, %v450
      %v515 = vmul.f32 %v387, %v451
      %v516 = vmul.f32 %v388, %v452
      %v517 = vmul.f32 %v389, %v453
      %v518 = vmul.f32 %v390, %v454
      %v519 = vmul.f32 %v455, 0.044715
      %v520 = vmul.f32 %v456, 0.044715
      %v521 = vmul.f32 %v457, 0.044715
      %v522 = vmul.f32 %v458, 0.044715
      %v523 = vmul.f32 %v459, 0.044715
      %v524 = vmul.f32 %v460, 0.044715
      %v525 = vmul.f32 %v461, 0.044715
      %v526 = vmul.f32 %v462, 0.044715
      %v527 = vmul.f32 %v463, 0.044715
      %v528 = vmul.f32 %v464, 0.044715
      %v529 = vmul.f32 %v465, 0.044715
      %v530 = vmul.f32 %v466, 0.044715
      %v531 = vmul.f32 %v467, 0.044715
      %v532 = vmul.f32 %v468, 0.044715
      %v533 = vmul.f32 %v469, 0.044715
      %v534 = vmul.f32 %v470, 0.044715
      %v535 = vmul.f32 %v471, 0.044715
      %v536 = vmul.f32 %v472, 0.044715
      %v537 = vmul.f32 %v473, 0.044715
      %v538 = vmul.f32 %v474, 0.044715
      %v539 = vmul.f32 %v475, 0.044715
      %v540 = vmul.f32 %v476, 0.044715
      %v541 = vmul.f32 %v477, 0.044715
      %v542 = vmul.f32 %v478, 0.044715
      %v543 = vmul.f32 %v479, 0.044715
      %v544 = vmul.f32 %v480, 0.044715
      %v545 = vmul.f32 %v481, 0.044715
      %v546 = vmul.f32 %v482, 0.044715
      %v547 = vmul.f32 %v483, 0.044715
      %v548 = vmul.f32 %v484, 0.044715
      %v549 = vmul.f32 %v485, 0.044715
      %v550 = vmul.f32 %v486, 0.044715
      %v551 = vmul.f32 %v487, 0.044715
      %v552 = vmul.f32 %v488, 0.044715
      %v553 = vmul.f32 %v489, 0.044715
      %v554 = vmul.f32 %v490, 0.044715
      %v555 = vmul.f32 %v491, 0.044715
      %v556 = vmul.f32 %v492, 0.044715
      %v557 = vmul.f32 %v493, 0.044715
      %v558 = vmul.f32 %v494, 0.044715
      %v559 = vmul.f32 %v495, 0.044715
      %v560 = vmul.f32 %v496, 0.044715
      %v561 = vmul.f32 %v497, 0.044715
      %v562 = vmul.f32 %v498, 0.044715
      %v563 = vmul.f32 %v499, 0.044715
      %v564 = vmul.f32 %v500, 0.044715
      %v565 = vmul.f32 %v501, 0.044715
      %v566 = vmul.f32 %v502, 0.044715
      %v567 = vmul.f32 %v503, 0.044715
      %v568 = vmul.f32 %v504, 0.044715
      %v569 = vmul.f32 %v505, 0.044715
      %v570 = vmul.f32 %v506, 0.044715
      %v571 = vmul.f32 %v507, 0.044715
      %v572 = vmul.f32 %v508, 0.044715
      %v573 = vmul.f32 %v509, 0.044715
      %v574 = vmul.f32 %v510, 0.044715
      %v575 = vmul.f32 %v511, 0.044715
      %v576 = vmul.f32 %v512, 0.044715
      %v577 = vmul.f32 %v513, 0.044715
      %v578 = vmul.f32 %v514, 0.044715
      %v579 = vmul.f32 %v515, 0.044715
      %v580 = vmul.f32 %v516, 0.044715
      %v581 = vmul.f32 %v517, 0.044715
      %v582 = vmul.f32 %v518, 0.044715
      %v583 = vadd.f32 %v327, %v519
      %v584 = vadd.f32 %v328, %v520
      %v585 = vadd.f32 %v329, %v521
      %v586 = vadd.f32 %v330, %v522
      %v587 = vadd.f32 %v331, %v523
      %v588 = vadd.f32 %v332, %v524
      %v589 = vadd.f32 %v333, %v525
      %v590 = vadd.f32 %v334, %v526
      %v591 = vadd.f32 %v335, %v527
      %v592 = vadd.f32 %v336, %v528
      %v593 = vadd.f32 %v337, %v529
      %v594 = vadd.f32 %v338, %v530
      %v595 = vadd.f32 %v339, %v531
      %v596 = vadd.f32 %v340, %v532
      %v597 = vadd.f32 %v341, %v533
      %v598 = vadd.f32 %v342, %v534
      %v599 = vadd.f32 %v343, %v535
      %v600 = vadd.f32 %v344, %v536
      %v601 = vadd.f32 %v345, %v537
      %v602 = vadd.f32 %v346, %v538
      %v603 = vadd.f32 %v347, %v539
      %v604 = vadd.f32 %v348, %v540
      %v605 = vadd.f32 %v349, %v541
      %v606 = vadd.f32 %v350, %v542
      %v607 = vadd.f32 %v351, %v543
      %v608 = vadd.f32 %v352, %v544
      %v609 = vadd.f32 %v353, %v545
      %v610 = vadd.f32 %v354, %v546
      %v611 = vadd.f32 %v355, %v547
      %v612 = vadd.f32 %v356, %v548
      %v613 = vadd.f32 %v357, %v549
      %v614 = vadd.f32 %v358, %v550
      %v615 = vadd.f32 %v359, %v551
      %v616 = vadd.f32 %v360, %v552
      %v617 = vadd.f32 %v361, %v553
      %v618 = vadd.f32 %v362, %v554
      %v619 = vadd.f32 %v363, %v555
      %v620 = vadd.f32 %v364, %v556
      %v621 = vadd.f32 %v365, %v557
      %v622 = vadd.f32 %v366, %v558
      %v623 = vadd.f32 %v367, %v559
      %v624 = vadd.f32 %v368, %v560
      %v625 = vadd.f32 %v369, %v561
      %v626 = vadd.f32 %v370, %v562
      %v627 = vadd.f32 %v371, %v563
      %v628 = vadd.f32 %v372, %v564
      %v629 = vadd.f32 %v373, %v565
      %v630 = vadd.f32 %v374, %v566
      %v631 = vadd.f32 %v375, %v567
      %v632 = vadd.f32 %v376, %v568
      %v633 = vadd.f32 %v377, %v569
      %v634 = vadd.f32 %v378, %v570
      %v635 = vadd.f32 %v379, %v571
      %v636 = vadd.f32 %v380, %v572
      %v637 = vadd.f32 %v381, %v573
      %v638 = vadd.f32 %v382, %v574
      %v639 = vadd.f32 %v383, %v575
      %v640 = vadd.f32 %v384, %v576
      %v641 = vadd.f32 %v385, %v577
      %v642 = vadd.f32 %v386, %v578
      %v643 = vadd.f32 %v387, %v579
      %v644 = vadd.f32 %v388, %v580
      %v645 = vadd.f32 %v389, %v581
      %v646 = vadd.f32 %v390, %v582
      %v647 = vmul.f32 %v583, 0.7978846
      %v648 = vmul.f32 %v584, 0.7978846
      %v649 = vmul.f32 %v585, 0.7978846
      %v650 = vmul.f32 %v586, 0.7978846
      %v651 = vmul.f32 %v587, 0.7978846
      %v652 = vmul.f32 %v588, 0.7978846
      %v653 = vmul.f32 %v589, 0.7978846
      %v654 = vmul.f32 %v590, 0.7978846
      %v655 = vmul.f32 %v591, 0.7978846
      %v656 = vmul.f32 %v592, 0.7978846
      %v657 = vmul.f32 %v593, 0.7978846
      %v658 = vmul.f32 %v594, 0.7978846
      %v659 = vmul.f32 %v595, 0.7978846
      %v660 = vmul.f32 %v596, 0.7978846
      %v661 = vmul.f32 %v597, 0.7978846
      %v662 = vmul.f32 %v598, 0.7978846
      %v663 = vmul.f32 %v599, 0.7978846
      %v664 = vmul.f32 %v600, 0.7978846
      %v665 = vmul.f32 %v601, 0.7978846
      %v666 = vmul.f32 %v602, 0.7978846
      %v667 = vmul.f32 %v603, 0.7978846
      %v668 = vmul.f32 %v604, 0.7978846
      %v669 = vmul.f32 %v605, 0.7978846
      %v670 = vmul.f32 %v606, 0.7978846
      %v671 = vmul.f32 %v607, 0.7978846
      %v672 = vmul.f32 %v608, 0.7978846
      %v673 = vmul.f32 %v609, 0.7978846
      %v674 = vmul.f32 %v610, 0.7978846
      %v675 = vmul.f32 %v611, 0.7978846
      %v676 = vmul.f32 %v612, 0.7978846
      %v677 = vmul.f32 %v613, 0.7978846
      %v678 = vmul.f32 %v614, 0.7978846
      %v679 = vmul.f32 %v615, 0.7978846
      %v680 = vmul.f32 %v616, 0.7978846
      %v681 = vmul.f32 %v617, 0.7978846
      %v682 = vmul.f32 %v618, 0.7978846
      %v683 = vmul.f32 %v619, 0.7978846
      %v684 = vmul.f32 %v620, 0.7978846
      %v685 = vmul.f32 %v621, 0.7978846
      %v686 = vmul.f32 %v622, 0.7978846
      %v687 = vmul.f32 %v623, 0.7978846
      %v688 = vmul.f32 %v624, 0.7978846
      %v689 = vmul.f32 %v625, 0.7978846
      %v690 = vmul.f32 %v626, 0.7978846
      %v691 = vmul.f32 %v627, 0.7978846
      %v692 = vmul.f32 %v628, 0.7978846
      %v693 = vmul.f32 %v629, 0.7978846
      %v694 = vmul.f32 %v630, 0.7978846
      %v695 = vmul.f32 %v631, 0.7978846
      %v696 = vmul.f32 %v632, 0.7978846
      %v697 = vmul.f32 %v633, 0.7978846
      %v698 = vmul.f32 %v634, 0.7978846
      %v699 = vmul.f32 %v635, 0.7978846
      %v700 = vmul.f32 %v636, 0.7978846
      %v701 = vmul.f32 %v637, 0.7978846
      %v702 = vmul.f32 %v638, 0.7978846
      %v703 = vmul.f32 %v639, 0.7978846
      %v704 = vmul.f32 %v640, 0.7978846
      %v705 = vmul.f32 %v641, 0.7978846
      %v706 = vmul.f32 %v642, 0.7978846
      %v707 = vmul.f32 %v643, 0.7978846
      %v708 = vmul.f32 %v644, 0.7978846
      %v709 = vmul.f32 %v645, 0.7978846
      %v710 = vmul.f32 %v646, 0.7978846
      %v711 = vtanh.pop %v647
      %v712 = vtanh.pop %v648
      %v713 = vtanh.pop %v649
      %v714 = vtanh.pop %v650
      %v715 = vtanh.pop %v651
      %v716 = vtanh.pop %v652
      %v717 = vtanh.pop %v653
      %v718 = vtanh.pop %v654
      %v719 = vtanh.pop %v655
      %v720 = vtanh.pop %v656
      %v721 = vtanh.pop %v657
      %v722 = vtanh.pop %v658
      %v723 = vtanh.pop %v659
      %v724 = vtanh.pop %v660
      %v725 = vtanh.pop %v661
      %v726 = vtanh.pop %v662
      %v727 = vtanh.pop %v663
      %v728 = vtanh.pop %v664
      %v729 = vtanh.pop %v665
      %v730 = vtanh.pop %v666
      %v731 = vtanh.pop %v667
      %v732 = vtanh.pop %v668
      %v733 = vtanh.pop %v669
      %v734 = vtanh.pop %v670
      %v735 = vtanh.pop %v671
      %v736 = vtanh.pop %v672
      %v737 = vtanh.pop %v673
      %v738 = vtanh.pop %v674
      %v739 = vtanh.pop %v675
      %v740 = vtanh.pop %v676
      %v741 = vtanh.pop %v677
      %v742 = vtanh.pop %v678
      %v743 = vtanh.pop %v679
      %v744 = vtanh.pop %v680
      %v745 = vtanh.pop %v681
      %v746 = vtanh.pop %v682
      %v747 = vtanh.pop %v683
      %v748 = vtanh.pop %v684
      %v749 = vtanh.pop %v685
      %v750 = vtanh.pop %v686
      %v751 = vtanh.pop %v687
      %v752 = vtanh.pop %v688
      %v753 = vtanh.pop %v689
      %v754 = vtanh.pop %v690
      %v755 = vtanh.pop %v691
      %v756 = vtanh.pop %v692
      %v757 = vtanh.pop %v693
      %v758 = vtanh.pop %v694
      %v759 = vtanh.pop %v695
      %v760 = vtanh.pop %v696
      %v761 = vtanh.pop %v697
      %v762 = vtanh.pop %v698
      %v763 = vtanh.pop %v699
      %v764 = vtanh.pop %v700
      %v765 = vtanh.pop %v701
      %v766 = vtanh.pop %v702
      %v767 = vtanh.pop %v703
      %v768 = vtanh.pop %v704
      %v769 = vtanh.pop %v705
      %v770 = vtanh.pop %v706
      %v771 = vtanh.pop %v707
      %v772 = vtanh.pop %v708
      %v773 = vtanh.pop %v709
      %v774 = vtanh.pop %v710
      %v775 = vadd.f32 %v711, 1.0
      %v776 = vadd.f32 %v712, 1.0
      %v777 = vadd.f32 %v713, 1.0
      %v778 = vadd.f32 %v714, 1.0
      %v779 = vadd.f32 %v715, 1.0
      %v780 = vadd.f32 %v716, 1.0
      %v781 = vadd.f32 %v717, 1.0
      %v782 = vadd.f32 %v718, 1.0
      %v783 = vadd.f32 %v719, 1.0
      %v784 = vadd.f32 %v720, 1.0
      %v785 = vadd.f32 %v721, 1.0
      %v786 = vadd.f32 %v722, 1.0
      %v787 = vadd.f32 %v723, 1.0
      %v788 = vadd.f32 %v724, 1.0
      %v789 = vadd.f32 %v725, 1.0
      %v790 = vadd.f32 %v726, 1.0
      %v791 = vadd.f32 %v727, 1.0
      %v792 = vadd.f32 %v728, 1.0
      %v793 = vadd.f32 %v729, 1.0
      %v794 = vadd.f32 %v730, 1.0
      %v795 = vadd.f32 %v731, 1.0
      %v796 = vadd.f32 %v732, 1.0
      %v797 = vadd.f32 %v733, 1.0
      %v798 = vadd.f32 %v734, 1.0
      %v799 = vadd.f32 %v735, 1.0
      %v800 = vadd.f32 %v736, 1.0
      %v801 = vadd.f32 %v737, 1.0
      %v802 = vadd.f32 %v738, 1.0
      %v803 = vadd.f32 %v739, 1.0
      %v804 = vadd.f32 %v740, 1.0
      %v805 = vadd.f32 %v741, 1.0
      %v806 = vadd.f32 %v742, 1.0
      %v807 = vadd.f32 %v743, 1.0
      %v808 = vadd.f32 %v744, 1.0
      %v809 = vadd.f32 %v745, 1.0
      %v810 = vadd.f32 %v746, 1.0
      %v811 = vadd.f32 %v747, 1.0
      %v812 = vadd.f32 %v748, 1.0
      %v813 = vadd.f32 %v749, 1.0
      %v814 = vadd.f32 %v750, 1.0
      %v815 = vadd.f32 %v751, 1.0
      %v816 = vadd.f32 %v752, 1.0
      %v817 = vadd.f32 %v753, 1.0
      %v818 = vadd.f32 %v754, 1.0
      %v819 = vadd.f32 %v755, 1.0
      %v820 = vadd.f32 %v756, 1.0
      %v821 = vadd.f32 %v757, 1.0
      %v822 = vadd.f32 %v758, 1.0
      %v823 = vadd.f32 %v759, 1.0
      %v824 = vadd.f32 %v760, 1.0
      %v825 = vadd.f32 %v761, 1.0
      %v826 = vadd.f32 %v762, 1.0
      %v827 = vadd.f32 %v763, 1.0
      %v828 = vadd.f32 %v764, 1.0
      %v829 = vadd.f32 %v765, 1.0
      %v830 = vadd.f32 %v766, 1.0
      %v831 = vadd.f32 %v767, 1.0
      %v832 = vadd.f32 %v768, 1.0
      %v833 = vadd.f32 %v769, 1.0
      %v834 = vadd.f32 %v770, 1.0
      %v835 = vadd.f32 %v771, 1.0
      %v836 = vadd.f32 %v772, 1.0
      %v837 = vadd.f32 %v773, 1.0
      %v838 = vadd.f32 %v774, 1.0
      %v839 = vmul.f32 %v775, 0.5
      %v840 = vmul.f32 %v776, 0.5
      %v841 = vmul.f32 %v777, 0.5
      %v842 = vmul.f32 %v778, 0.5
      %v843 = vmul.f32 %v779, 0.5
      %v844 = vmul.f32 %v780, 0.5
      %v845 = vmul.f32 %v781, 0.5
      %v846 = vmul.f32 %v782, 0.5
      %v847 = vmul.f32 %v783, 0.5
      %v848 = vmul.f32 %v784, 0.5
      %v849 = vmul.f32 %v785, 0.5
      %v850 = vmul.f32 %v786, 0.5
      %v851 = vmul.f32 %v787, 0.5
      %v852 = vmul.f32 %v788, 0.5
      %v853 = vmul.f32 %v789, 0.5
      %v854 = vmul.f32 %v790, 0.5
      %v855 = vmul.f32 %v791, 0.5
      %v856 = vmul.f32 %v792, 0.5
      %v857 = vmul.f32 %v793, 0.5
      %v858 = vmul.f32 %v794, 0.5
      %v859 = vmul.f32 %v795, 0.5
      %v860 = vmul.f32 %v796, 0.5
      %v861 = vmul.f32 %v797, 0.5
      %v862 = vmul.f32 %v798, 0.5
      %v863 = vmul.f32 %v799, 0.5
      %v864 = vmul.f32 %v800, 0.5
      %v865 = vmul.f32 %v801, 0.5
      %v866 = vmul.f32 %v802, 0.5
      %v867 = vmul.f32 %v803, 0.5
      %v868 = vmul.f32 %v804, 0.5
      %v869 = vmul.f32 %v805, 0.5
      %v870 = vmul.f32 %v806, 0.5
      %v871 = vmul.f32 %v807, 0.5
      %v872 = vmul.f32 %v808, 0.5
      %v873 = vmul.f32 %v809, 0.5
      %v874 = vmul.f32 %v810, 0.5
      %v875 = vmul.f32 %v811, 0.5
      %v876 = vmul.f32 %v812, 0.5
      %v877 = vmul.f32 %v813, 0.5
      %v878 = vmul.f32 %v814, 0.5
      %v879 = vmul.f32 %v815, 0.5
      %v880 = vmul.f32 %v816, 0.5
      %v881 = vmul.f32 %v817, 0.5
      %v882 = vmul.f32 %v818, 0.5
      %v883 = vmul.f32 %v819, 0.5
      %v884 = vmul.f32 %v820, 0.5
      %v885 = vmul.f32 %v821, 0.5
      %v886 = vmul.f32 %v822, 0.5
      %v887 = vmul.f32 %v823, 0.5
      %v888 = vmul.f32 %v824, 0.5
      %v889 = vmul.f32 %v825, 0.5
      %v890 = vmul.f32 %v826, 0.5
      %v891 = vmul.f32 %v827, 0.5
      %v892 = vmul.f32 %v828, 0.5
      %v893 = vmul.f32 %v829, 0.5
      %v894 = vmul.f32 %v830, 0.5
      %v895 = vmul.f32 %v831, 0.5
      %v896 = vmul.f32 %v832, 0.5
      %v897 = vmul.f32 %v833, 0.5
      %v898 = vmul.f32 %v834, 0.5
      %v899 = vmul.f32 %v835, 0.5
      %v900 = vmul.f32 %v836, 0.5
      %v901 = vmul.f32 %v837, 0.5
      %v902 = vmul.f32 %v838, 0.5
      %v903 = vmul.f32 %v327, %v839
      %v904 = vmul.f32 %v328, %v840
      %v905 = vmul.f32 %v329, %v841
      %v906 = vmul.f32 %v330, %v842
      %v907 = vmul.f32 %v331, %v843
      %v908 = vmul.f32 %v332, %v844
      %v909 = vmul.f32 %v333, %v845
      %v910 = vmul.f32 %v334, %v846
      %v911 = vmul.f32 %v335, %v847
      %v912 = vmul.f32 %v336, %v848
      %v913 = vmul.f32 %v337, %v849
      %v914 = vmul.f32 %v338, %v850
      %v915 = vmul.f32 %v339, %v851
      %v916 = vmul.f32 %v340, %v852
      %v917 = vmul.f32 %v341, %v853
      %v918 = vmul.f32 %v342, %v854
      %v919 = vmul.f32 %v343, %v855
      %v920 = vmul.f32 %v344, %v856
      %v921 = vmul.f32 %v345, %v857
      %v922 = vmul.f32 %v346, %v858
      %v923 = vmul.f32 %v347, %v859
      %v924 = vmul.f32 %v348, %v860
      %v925 = vmul.f32 %v349, %v861
      %v926 = vmul.f32 %v350, %v862
      %v927 = vmul.f32 %v351, %v863
      %v928 = vmul.f32 %v352, %v864
      %v929 = vmul.f32 %v353, %v865
      %v930 = vmul.f32 %v354, %v866
      %v931 = vmul.f32 %v355, %v867
      %v932 = vmul.f32 %v356, %v868
      %v933 = vmul.f32 %v357, %v869
      %v934 = vmul.f32 %v358, %v870
      %v935 = vmul.f32 %v359, %v871
      %v936 = vmul.f32 %v360, %v872
      %v937 = vmul.f32 %v361, %v873
      %v938 = vmul.f32 %v362, %v874
      %v939 = vmul.f32 %v363, %v875
      %v940 = vmul.f32 %v364, %v876
      %v941 = vmul.f32 %v365, %v877
      %v942 = vmul.f32 %v366, %v878
      %v943 = vmul.f32 %v367, %v879
      %v944 = vmul.f32 %v368, %v880
      %v945 = vmul.f32 %v369, %v881
      %v946 = vmul.f32 %v370, %v882
      %v947 = vmul.f32 %v371, %v883
      %v948 = vmul.f32 %v372, %v884
      %v949 = vmul.f32 %v373, %v885
      %v950 = vmul.f32 %v374, %v886
      %v951 = vmul.f32 %v375, %v887
      %v952 = vmul.f32 %v376, %v888
      %v953 = vmul.f32 %v377, %v889
      %v954 = vmul.f32 %v378, %v890
      %v955 = vmul.f32 %v379, %v891
      %v956 = vmul.f32 %v380, %v892
      %v957 = vmul.f32 %v381, %v893
      %v958 = vmul.f32 %v382, %v894
      %v959 = vmul.f32 %v383, %v895
      %v960 = vmul.f32 %v384, %v896
      %v961 = vmul.f32 %v385, %v897
      %v962 = vmul.f32 %v386, %v898
      %v963 = vmul.f32 %v387, %v899
      %v964 = vmul.f32 %v388, %v900
      %v965 = vmul.f32 %v389, %v901
      %v966 = vmul.f32 %v390, %v902
      %v967 = vpack.c.bf16 %v907, %v903
      %v968 = vpack.c.bf16 %v908, %v904
      %v969 = vpack.c.bf16 %v909, %v905
      %v970 = vpack.c.bf16 %v910, %v906
      %v971 = vpack.c.bf16 %v915, %v911
      %v972 = vpack.c.bf16 %v916, %v912
      %v973 = vpack.c.bf16 %v917, %v913
      %v974 = vpack.c.bf16 %v918, %v914
      %v975 = vpack.c.bf16 %v923, %v919
      %v976 = vpack.c.bf16 %v924, %v920
      %v977 = vpack.c.bf16 %v925, %v921
      %v978 = vpack.c.bf16 %v926, %v922
      %v979 = vpack.c.bf16 %v931, %v927
      %v980 = vpack.c.bf16 %v932, %v928
      %v981 = vpack.c.bf16 %v933, %v929
      %v982 = vpack.c.bf16 %v934, %v930
      %v983 = vpack.c.bf16 %v939, %v935
      %v984 = vpack.c.bf16 %v940, %v936
      %v985 = vpack.c.bf16 %v941, %v937
      %v986 = vpack.c.bf16 %v942, %v938
      %v987 = vpack.c.bf16 %v947, %v943
      %v988 = vpack.c.bf16 %v948, %v944
      %v989 = vpack.c.bf16 %v949, %v945
      %v990 = vpack.c.bf16 %v950, %v946
      %v991 = vpack.c.bf16 %v955, %v951
      %v992 = vpack.c.bf16 %v956, %v952
      %v993 = vpack.c.bf16 %v957, %v953
      %v994 = vpack.c.bf16 %v958, %v954
      %v995 = vpack.c.bf16 %v963, %v959
      %v996 = vpack.c.bf16 %v964, %v960
      %v997 = vpack.c.bf16 %v965, %v961
      %v998 = vpack.c.bf16 %v966, %v962
      %v999 = vld [vmem:[%s0] sm:$0xf]
      %v1000 = vld [vmem:[%s0 + $0x4] sm:$0xf]
      %v1001 = vld [vmem:[%s0 + $0x8] sm:$0xf]
      %v1002 = vld [vmem:[%s0 + $0xc] sm:$0xf]
      %v1003 = vld [vmem:[%s1] sm:$0xff]
      %v1004 = vld [vmem:[%s1 + $0x8] sm:$0xff]
      %v1005 = vld [vmem:[%s1 + $0x10] sm:$0xff]
      %v1006 = vld [vmem:[%s1 + $0x18] sm:$0xff]
      %1008 = vset.pattern.permute.xlu0 0
      %1009 = vperm.xlu0 %1008, %v1003
      %v1010 = vpop.permute.xlu0 %1009
      %1013 = vset.pattern.permute.xlu0 0
      %1014 = vperm.xlu0 %1013, %v1004
      %v1015 = vpop.permute.xlu0 %1014
      %1018 = vset.pattern.permute.xlu0 0
      %1019 = vperm.xlu0 %1018, %v1005
      %v1020 = vpop.permute.xlu0 %1019
      %1023 = vset.pattern.permute.xlu0 0
      %1024 = vperm.xlu0 %1023, %v1006
      %v1025 = vpop.permute.xlu0 %1024
      %v1031 = vunpack.c.l.b16 %v999
      %v1032 = vunpack.c.l.b16 %v1000
      %v1033 = vunpack.c.l.b16 %v1001
      %v1034 = vunpack.c.l.b16 %v1002
      %v1035 = vpack.c.b16 %v1032, %v1031
      %v1036 = vpack.c.b16 %v1034, %v1033
      %1039 = vmatpush.bf16.msra.mxu0 %v995
      %1040 = vmatpush.bf16.msra.mxu0 %v991
      %1041 = vmatpush.bf16.msra.mxu0 %v987
      %1042 = vmatpush.bf16.msra.mxu0 %v983
      %1043 = vmatpush.bf16.msra.mxu0 %v979
      %1044 = vmatpush.bf16.msra.mxu0 %v975
      %1045 = vmatpush.bf16.msra.mxu0 %v971
      %1046 = vmatpush.bf16.msra.mxu0 %v967
      %1047 = vmatmul.bf16.gmra.mxu0 %v1035
      %v1048 = vpop.f32.mrf.mxu0
      %v1049 = vadd.f32 %v1010, %v1048
      %v1050 = vpop.f32.mrf.mxu0
      %v1051 = vadd.f32 %v1015, %v1050
      %1052 = vmatmul.bf16.gmra.mxu0 %v1036
      %v1053 = vpop.f32.mrf.mxu0
      %v1054 = vadd.f32 %v1020, %v1053
      %v1055 = vpop.f32.mrf.mxu0
      %v1056 = vadd.f32 %v1025, %v1055
      %1057 = vdwg.mxu0
      %1058 = vmatpush.bf16.msra.mxu0 %v996
      %1059 = vmatpush.bf16.msra.mxu0 %v992
      %1060 = vmatpush.bf16.msra.mxu0 %v988
      %1061 = vmatpush.bf16.msra.mxu0 %v984
      %1062 = vmatpush.bf16.msra.mxu0 %v980
      %1063 = vmatpush.bf16.msra.mxu0 %v976
      %1064 = vmatpush.bf16.msra.mxu0 %v972
      %1065 = vmatpush.bf16.msra.mxu0 %v968
      %1066 = vmatmul.bf16.gmra.mxu0 %v1035
      %v1067 = vpop.f32.mrf.mxu0
      %v1068 = vadd.f32 %v1010, %v1067
      %v1069 = vpop.f32.mrf.mxu0
      %v1070 = vadd.f32 %v1015, %v1069
      %1071 = vmatmul.bf16.gmra.mxu0 %v1036
      %v1072 = vpop.f32.mrf.mxu0
      %v1073 = vadd.f32 %v1020, %v1072
      %v1074 = vpop.f32.mrf.mxu0
      %v1075 = vadd.f32 %v1025, %v1074
      %1076 = vdwg.mxu0
      %1077 = vmatpush.bf16.msra.mxu0 %v997
      %1078 = vmatpush.bf16.msra.mxu0 %v993
      %1079 = vmatpush.bf16.msra.mxu0 %v989
      %1080 = vmatpush.bf16.msra.mxu0 %v985
      %1081 = vmatpush.bf16.msra.mxu0 %v981
      %1082 = vmatpush.bf16.msra.mxu0 %v977
      %1083 = vmatpush.bf16.msra.mxu0 %v973
      %1084 = vmatpush.bf16.msra.mxu0 %v969
      %1085 = vmatmul.bf16.gmra.mxu0 %v1035
      %v1086 = vpop.f32.mrf.mxu0
      %v1087 = vadd.f32 %v1010, %v1086
      %v1088 = vpop.f32.mrf.mxu0
      %v1089 = vadd.f32 %v1015, %v1088
      %1090 = vmatmul.bf16.gmra.mxu0 %v1036
      %v1091 = vpop.f32.mrf.mxu0
      %v1092 = vadd.f32 %v1020, %v1091
      %v1093 = vpop.f32.mrf.mxu0
      %v1094 = vadd.f32 %v1025, %v1093
      %1095 = vdwg.mxu0
      %1096 = vmatpush.bf16.msra.mxu0 %v998
      %1097 = vmatpush.bf16.msra.mxu0 %v994
      %1098 = vmatpush.bf16.msra.mxu0 %v990
      %1099 = vmatpush.bf16.msra.mxu0 %v986
      %1100 = vmatpush.bf16.msra.mxu0 %v982
      %1101 = vmatpush.bf16.msra.mxu0 %v978
      %1102 = vmatpush.bf16.msra.mxu0 %v974
      %1103 = vmatpush.bf16.msra.mxu0 %v970
      %1104 = vmatmul.bf16.gmra.mxu0 %v1035
      %v1105 = vpop.f32.mrf.mxu0
      %v1106 = vadd.f32 %v1010, %v1105
      %v1107 = vpop.f32.mrf.mxu0
      %v1108 = vadd.f32 %v1015, %v1107
      %1109 = vmatmul.bf16.gmra.mxu0 %v1036
      %v1110 = vpop.f32.mrf.mxu0
      %v1111 = vadd.f32 %v1020, %v1110
      %v1112 = vpop.f32.mrf.mxu0
      %v1113 = vadd.f32 %v1025, %v1112
      %1114 = vdwg.mxu0
      %v1115 = vld [vmem:[%s315] sm:$0xff]
      %v1116 = vld [vmem:[%s315 + $0x8] sm:$0xff]
      %v1117 = vld [vmem:[%s315 + $0x10] sm:$0xff]
      %v1118 = vld [vmem:[%s315 + $0x18] sm:$0xff]
      %v1119 = vld [vmem:[%s315 + $0x20] sm:$0xff]
      %v1120 = vld [vmem:[%s315 + $0x28] sm:$0xff]
      %v1121 = vld [vmem:[%s315 + $0x30] sm:$0xff]
      %v1122 = vld [vmem:[%s315 + $0x38] sm:$0xff]
      %v1123 = vld [vmem:[%s315 + $0x40] sm:$0xff]
      %v1124 = vld [vmem:[%s315 + $0x48] sm:$0xff]
      %v1125 = vld [vmem:[%s315 + $0x50] sm:$0xff]
      %v1126 = vld [vmem:[%s315 + $0x58] sm:$0xff]
      %v1127 = vld [vmem:[%s315 + $0x60] sm:$0xff]
      %v1128 = vld [vmem:[%s315 + $0x68] sm:$0xff]
      %v1129 = vld [vmem:[%s315 + $0x70] sm:$0xff]
      %v1130 = vld [vmem:[%s315 + $0x78] sm:$0xff]
      %v1131 = vadd.f32 %v1115, %v1049
      %v1132 = vadd.f32 %v1116, %v1068
      %v1133 = vadd.f32 %v1117, %v1087
      %v1134 = vadd.f32 %v1118, %v1106
      %v1135 = vadd.f32 %v1119, %v1051
      %v1136 = vadd.f32 %v1120, %v1070
      %v1137 = vadd.f32 %v1121, %v1089
      %v1138 = vadd.f32 %v1122, %v1108
      %v1139 = vadd.f32 %v1123, %v1054
      %v1140 = vadd.f32 %v1124, %v1073
      %v1141 = vadd.f32 %v1125, %v1092
      %v1142 = vadd.f32 %v1126, %v1111
      %v1143 = vadd.f32 %v1127, %v1056
      %v1144 = vadd.f32 %v1128, %v1075
      %v1145 = vadd.f32 %v1129, %v1094
      %v1146 = vadd.f32 %v1130, %v1113
      %v1147 = vadd.f32 %v1131, %v1135
      %v1148 = vadd.f32 %v1147, %v1139
      %v1149 = vadd.f32 %v1148, %v1143
      %v1150 = vrot.slane %v1149, 4
      %v1151 = vadd.f32 %v1149, %v1150
      %v1152 = vrot.slane %v1151, 2
      %v1153 = vadd.f32 %v1151, %v1152
      %v1154 = vrot.slane %v1153, 1
      %v1155 = vadd.f32 %v1153, %v1154
      %v1156 = vadd.f32 %v1132, %v1136
      %v1157 = vadd.f32 %v1156, %v1140
      %v1158 = vadd.f32 %v1157, %v1144
      %v1159 = vrot.slane %v1158, 4
      %v1160 = vadd.f32 %v1158, %v1159
      %v1161 = vrot.slane %v1160, 2
      %v1162 = vadd.f32 %v1160, %v1161
      %v1163 = vrot.slane %v1162, 1
      %v1164 = vadd.f32 %v1162, %v1163
      %v1165 = vadd.f32 %v1133, %v1137
      %v1166 = vadd.f32 %v1165, %v1141
      %v1167 = vadd.f32 %v1166, %v1145
      %v1168 = vrot.slane %v1167, 4
      %v1169 = vadd.f32 %v1167, %v1168
      %v1170 = vrot.slane %v1169, 2
      %v1171 = vadd.f32 %v1169, %v1170
      %v1172 = vrot.slane %v1171, 1
      %v1173 = vadd.f32 %v1171, %v1172
      %v1174 = vadd.f32 %v1134, %v1138
      %v1175 = vadd.f32 %v1174, %v1142
      %v1176 = vadd.f32 %v1175, %v1146
      %v1177 = vrot.slane %v1176, 4
      %v1178 = vadd.f32 %v1176, %v1177
      %v1179 = vrot.slane %v1178, 2
      %v1180 = vadd.f32 %v1178, %v1179
      %v1181 = vrot.slane %v1180, 1
      %v1182 = vadd.f32 %v1180, %v1181
      %v1183 = vrcp.pop 32.0
      %v1184 = vmul.f32 32.0, %v1183
      %v1185 = vsub.f32 1.0, %v1184
      %v1186 = vmul.f32 %v1183, %v1185
      %v1187 = vadd.f32 %v1183, %v1186
      %vm1188 = vweird.f32 %v1183
      %v1189 = vsel %vm1188, %v1183, %v1187
      %v1190 = vmul.f32 %v1155, %v1189
      %v1191 = vmul.f32 %v1164, %v1189
      %v1192 = vmul.f32 %v1173, %v1189
      %v1193 = vmul.f32 %v1182, %v1189
      %v1194 = vsub.f32 %v1131, %v1190
      %v1195 = vsub.f32 %v1132, %v1191
      %v1196 = vsub.f32 %v1133, %v1192
      %v1197 = vsub.f32 %v1134, %v1193
      %v1198 = vsub.f32 %v1135, %v1190
      %v1199 = vsub.f32 %v1136, %v1191
      %v1200 = vsub.f32 %v1137, %v1192
      %v1201 = vsub.f32 %v1138, %v1193
      %v1202 = vsub.f32 %v1139, %v1190
      %v1203 = vsub.f32 %v1140, %v1191
      %v1204 = vsub.f32 %v1141, %v1192
      %v1205 = vsub.f32 %v1142, %v1193
      %v1206 = vsub.f32 %v1143, %v1190
      %v1207 = vsub.f32 %v1144, %v1191
      %v1208 = vsub.f32 %v1145, %v1192
      %v1209 = vsub.f32 %v1146, %v1193
      %v1210 = vmul.f32 %v1194, %v1194
      %v1211 = vmul.f32 %v1195, %v1195
      %v1212 = vmul.f32 %v1196, %v1196
      %v1213 = vmul.f32 %v1197, %v1197
      %v1214 = vmul.f32 %v1198, %v1198
      %v1215 = vmul.f32 %v1199, %v1199
      %v1216 = vmul.f32 %v1200, %v1200
      %v1217 = vmul.f32 %v1201, %v1201
      %v1218 = vmul.f32 %v1202, %v1202
      %v1219 = vmul.f32 %v1203, %v1203
      %v1220 = vmul.f32 %v1204, %v1204
      %v1221 = vmul.f32 %v1205, %v1205
      %v1222 = vmul.f32 %v1206, %v1206
      %v1223 = vmul.f32 %v1207, %v1207
      %v1224 = vmul.f32 %v1208, %v1208
      %v1225 = vmul.f32 %v1209, %v1209
      %v1226 = vadd.f32 %v1210, %v1214
      %v1227 = vadd.f32 %v1226, %v1218
      %v1228 = vadd.f32 %v1227, %v1222
      %v1229 = vrot.slane %v1228, 4
      %v1230 = vadd.f32 %v1228, %v1229
      %v1231 = vrot.slane %v1230, 2
      %v1232 = vadd.f32 %v1230, %v1231
      %v1233 = vrot.slane %v1232, 1
      %v1234 = vadd.f32 %v1232, %v1233
      %v1235 = vadd.f32 %v1211, %v1215
      %v1236 = vadd.f32 %v1235, %v1219
      %v1237 = vadd.f32 %v1236, %v1223
      %v1238 = vrot.slane %v1237, 4
      %v1239 = vadd.f32 %v1237, %v1238
      %v1240 = vrot.slane %v1239, 2
      %v1241 = vadd.f32 %v1239, %v1240
      %v1242 = vrot.slane %v1241, 1
      %v1243 = vadd.f32 %v1241, %v1242
      %v1244 = vadd.f32 %v1212, %v1216
      %v1245 = vadd.f32 %v1244, %v1220
      %v1246 = vadd.f32 %v1245, %v1224
      %v1247 = vrot.slane %v1246, 4
      %v1248 = vadd.f32 %v1246, %v1247
      %v1249 = vrot.slane %v1248, 2
      %v1250 = vadd.f32 %v1248, %v1249
      %v1251 = vrot.slane %v1250, 1
      %v1252 = vadd.f32 %v1250, %v1251
      %v1253 = vadd.f32 %v1213, %v1217
      %v1254 = vadd.f32 %v1253, %v1221
      %v1255 = vadd.f32 %v1254, %v1225
      %v1256 = vrot.slane %v1255, 4
      %v1257 = vadd.f32 %v1255, %v1256
      %v1258 = vrot.slane %v1257, 2
      %v1259 = vadd.f32 %v1257, %v1258
      %v1260 = vrot.slane %v1259, 1
      %v1261 = vadd.f32 %v1259, %v1260
      %v1262 = vmul.f32 %v1234, %v1189
      %v1263 = vmul.f32 %v1243, %v1189
      %v1264 = vmul.f32 %v1252, %v1189
      %v1265 = vmul.f32 %v1261, %v1189
      %v1266 = vadd.f32 %v1262, 1e-05
      %v1267 = vadd.f32 %v1263, 1e-05
      %v1268 = vadd.f32 %v1264, 1e-05
      %v1269 = vadd.f32 %v1265, 1e-05
      %v1270 = vrsqrt.pop %v1266
      %v1271 = vmul.f32 %v1270, %v1266
      %v1272 = vmul.f32 %v1271, %v1270
      %v1273 = vmul.f32 0.5, %v1272
      %v1274 = vsub.f32 1.5, %v1273
      %v1275 = vmul.f32 %v1270, %v1274
      %vm1276 = vweird.f32 %v1266
      %vm1277 = vweird.f32 %v1270
      %vm1278 = vmor %vm1276, %vm1277
      %v1279 = vsel %vm1278, %v1270, %v1275
      %v1280 = vrsqrt.pop %v1267
      %v1281 = vmul.f32 %v1280, %v1267
      %v1282 = vmul.f32 %v1281, %v1280
      %v1283 = vmul.f32 0.5, %v1282
      %v1284 = vsub.f32 1.5, %v1283
      %v1285 = vmul.f32 %v1280, %v1284
      %vm1286 = vweird.f32 %v1267
      %vm1287 = vweird.f32 %v1280
      %vm1288 = vmor %vm1286, %vm1287
      %v1289 = vsel %vm1288, %v1280, %v1285
      %v1290 = vrsqrt.pop %v1268
      %v1291 = vmul.f32 %v1290, %v1268
      %v1292 = vmul.f32 %v1291, %v1290
      %v1293 = vmul.f32 0.5, %v1292
      %v1294 = vsub.f32 1.5, %v1293
      %v1295 = vmul.f32 %v1290, %v1294
      %vm1296 = vweird.f32 %v1268
      %vm1297 = vweird.f32 %v1290
      %vm1298 = vmor %vm1296, %vm1297
      %v1299 = vsel %vm1298, %v1290, %v1295
      %v1300 = vrsqrt.pop %v1269
      %v1301 = vmul.f32 %v1300, %v1269
      %v1302 = vmul.f32 %v1301, %v1300
      %v1303 = vmul.f32 0.5, %v1302
      %v1304 = vsub.f32 1.5, %v1303
      %v1305 = vmul.f32 %v1300, %v1304
      %vm1306 = vweird.f32 %v1269
      %vm1307 = vweird.f32 %v1300
      %vm1308 = vmor %vm1306, %vm1307
      %v1309 = vsel %vm1308, %v1300, %v1305
      %v1310 = vmul.f32 %v1194, %v1279
      %v1311 = vmul.f32 %v1195, %v1289
      %v1312 = vmul.f32 %v1196, %v1299
      %v1313 = vmul.f32 %v1197, %v1309
      %v1314 = vmul.f32 %v1198, %v1279
      %v1315 = vmul.f32 %v1199, %v1289
      %v1316 = vmul.f32 %v1200, %v1299
      %v1317 = vmul.f32 %v1201, %v1309
      %v1318 = vmul.f32 %v1202, %v1279
      %v1319 = vmul.f32 %v1203, %v1289
      %v1320 = vmul.f32 %v1204, %v1299
      %v1321 = vmul.f32 %v1205, %v1309
      %v1322 = vmul.f32 %v1206, %v1279
      %v1323 = vmul.f32 %v1207, %v1289
      %v1324 = vmul.f32 %v1208, %v1299
      %v1325 = vmul.f32 %v1209, %v1309
      %v1326 = vld [vmem:[%s2] sm:$0xff]
      %v1327 = vld [vmem:[%s2 + $0x8] sm:$0xff]
      %v1328 = vld [vmem:[%s2 + $0x10] sm:$0xff]
      %v1329 = vld [vmem:[%s2 + $0x18] sm:$0xff]
      %1331 = vset.pattern.permute.xlu0 0
      %1332 = vperm.xlu0 %1331, %v1326
      %v1333 = vpop.permute.xlu0 %1332
      %1336 = vset.pattern.permute.xlu0 0
      %1337 = vperm.xlu0 %1336, %v1327
      %v1338 = vpop.permute.xlu0 %1337
      %1341 = vset.pattern.permute.xlu0 0
      %1342 = vperm.xlu0 %1341, %v1328
      %v1343 = vpop.permute.xlu0 %1342
      %1346 = vset.pattern.permute.xlu0 0
      %1347 = vperm.xlu0 %1346, %v1329
      %v1348 = vpop.permute.xlu0 %1347
      %v1350 = vmul.f32 %v1310, %v1333
      %v1351 = vmul.f32 %v1311, %v1333
      %v1352 = vmul.f32 %v1312, %v1333
      %v1353 = vmul.f32 %v1313, %v1333
      %v1354 = vmul.f32 %v1314, %v1338
      %v1355 = vmul.f32 %v1315, %v1338
      %v1356 = vmul.f32 %v1316, %v1338
      %v1357 = vmul.f32 %v1317, %v1338
      %v1358 = vmul.f32 %v1318, %v1343
      %v1359 = vmul.f32 %v1319, %v1343
      %v1360 = vmul.f32 %v1320, %v1343
      %v1361 = vmul.f32 %v1321, %v1343
      %v1362 = vmul.f32 %v1322, %v1348
      %v1363 = vmul.f32 %v1323, %v1348
      %v1364 = vmul.f32 %v1324, %v1348
      %v1365 = vmul.f32 %v1325, %v1348
      %v1366 = vld [vmem:[%s3] sm:$0xff]
      %v1367 = vld [vmem:[%s3 + $0x8] sm:$0xff]
      %v1368 = vld [vmem:[%s3 + $0x10] sm:$0xff]
      %v1369 = vld [vmem:[%s3 + $0x18] sm:$0xff]
      %1371 = vset.pattern.permute.xlu0 0
      %1372 = vperm.xlu0 %1371, %v1366
      %v1373 = vpop.permute.xlu0 %1372
      %1376 = vset.pattern.permute.xlu0 0
      %1377 = vperm.xlu0 %1376, %v1367
      %v1378 = vpop.permute.xlu0 %1377
      %1381 = vset.pattern.permute.xlu0 0
      %1382 = vperm.xlu0 %1381, %v1368
      %v1383 = vpop.permute.xlu0 %1382
      %1386 = vset.pattern.permute.xlu0 0
      %1387 = vperm.xlu0 %1386, %v1369
      %v1388 = vpop.permute.xlu0 %1387
      %v1390 = vadd.f32 %v1350, %v1373
      %v1391 = vadd.f32 %v1351, %v1373
      %v1392 = vadd.f32 %v1352, %v1373
      %v1393 = vadd.f32 %v1353, %v1373
      %v1394 = vadd.f32 %v1354, %v1378
      %v1395 = vadd.f32 %v1355, %v1378
      %v1396 = vadd.f32 %v1356, %v1378
      %v1397 = vadd.f32 %v1357, %v1378
      %v1398 = vadd.f32 %v1358, %v1383
      %v1399 = vadd.f32 %v1359, %v1383
      %v1400 = vadd.f32 %v1360, %v1383
      %v1401 = vadd.f32 %v1361, %v1383
      %v1402 = vadd.f32 %v1362, %v1388
      %v1403 = vadd.f32 %v1363, %v1388
      %v1404 = vadd.f32 %v1364, %v1388
      %v1405 = vadd.f32 %v1365, %v1388
      %1406 = vst [vmem:[%s325] sm:$0xff] %v1390
      %1407 = vst [vmem:[%s325 + $0x8] sm:$0xff] %v1391
      %1408 = vst [vmem:[%s325 + $0x10] sm:$0xff] %v1392
      %1409 = vst [vmem:[%s325 + $0x18] sm:$0xff] %v1393
      %1410 = vst [vmem:[%s325 + $0x20] sm:$0xff] %v1394
      %1411 = vst [vmem:[%s325 + $0x28] sm:$0xff] %v1395
      %1412 = vst [vmem:[%s325 + $0x30] sm:$0xff] %v1396
      %1413 = vst [vmem:[%s325 + $0x38] sm:$0xff] %v1397
      %1414 = vst [vmem:[%s325 + $0x40] sm:$0xff] %v1398
      %1415 = vst [vmem:[%s325 + $0x48] sm:$0xff] %v1399
      %1416 = vst [vmem:[%s325 + $0x50] sm:$0xff] %v1400
      %1417 = vst [vmem:[%s325 + $0x58] sm:$0xff] %v1401
      %1418 = vst [vmem:[%s325 + $0x60] sm:$0xff] %v1402
      %1419 = vst [vmem:[%s325 + $0x68] sm:$0xff] %v1403
      %1420 = vst [vmem:[%s325 + $0x70] sm:$0xff] %v1404
      %1421 = vst [vmem:[%s325 + $0x78] sm:$0xff] %v1405
      %s1422 = smul.u32 4, %s22
      %p1423 = scmp.lt.s32.totalorder %s21, 1
      %s1424 = scalar_select %p1423, %s21, 1
      %p1425 = scmp.lt.s32.totalorder %s1422, 3
      %s1426 = scalar_select %p1425, %s1422, 3
      %s1427 = smul.addr %s1424, 16
      %s1428 = sadd.s32 %s1426, %s1427
      %s1429 = smul.addr %s1428, 8
      %s1430 = scalar_lea.vmem %s6, %s1429
      // Predicated region
      $region45: #{mdblock_forward.9} parent=43 // pred_check
        %p1431 = pneg %p189
      $region46: #{mdblock_forward.9} parent=43 // pred_check_branch
        %1433 = sbr.rel (%p1431) target = $region48
      $region47: #{mdblock_forward.9} parent=43 // pred_region
        %s1434 = smul.u32 4, %s22
      $region48: #{mdblock_forward.9} parent=43 // pred_fallthru
        _
    $region44: #{mdblock_forward.9} parent=5 // pred_fallthru
      _
    %p1435 = scmp.le.s32.totalorder 2, %s12
    // Predicated region
    $region49: #{mdblock_forward.9} parent=5 // pred_check
      %p1436 = pneg %p1435
    $region50: #{mdblock_forward.9} parent=5 // pred_check_branch
      %1438 = sbr.rel (%p1436) target = $region52
    $region51: #{mdblock_forward.9} parent=5 // pred_region
      %s1439 = ssub.s32 %s12, 2
      // Predicated region
      $region53: #{mdblock_forward.9} parent=51 // pred_check
        %p1440 = pneg %p195
      $region54: #{mdblock_forward.9} parent=51 // pred_check_branch
        %1442 = sbr.rel (%p1440) target = $region56
      $region55: #{mdblock_forward.9} parent=51 // pred_region
        %s1443 = smul.u32 4, %s24
        %p1444 = scmp.lt.s32.totalorder %s23, 1
        %s1445 = scalar_select %p1444, %s23, 1
        %p1446 = scmp.lt.s32.totalorder %s1443, 3
        %s1447 = scalar_select %p1446, %s1443, 3
        %s1448 = smul.addr %s1445, 16
        %s1449 = sadd.s32 %s1447, %s1448
        %s1450 = smul.addr %s1449, 8
        %s1451 = scalar_lea.vmem %s6, %s1450
      $region56: #{mdblock_forward.9} parent=51 // pred_fallthru
        _
    $region52: #{mdblock_forward.9} parent=5 // pred_fallthru
      _
  $region6: #{mdblock_forward.9} parent=0 // loop_footer
    %s16 = sadd.s32 1, %s12
  $region7: #{mdblock_forward.9} parent=0 // loop_footer_branch
    %11 = sbr.rel target = $region3
  $region8: #{mdblock_forward.9} parent=0 // loop_exit
    _

</llo_original>
